<compile_context>
chip_gen: v6e
topology: v6e:2x2x1
jax: 0.10.0
libtpu: 0.0.40
codegen_flags: <defaults>
</compile_context>

<pallas_src>
import jax
import jax.numpy as jnp
from jax.experimental import pallas as pl
from jax.experimental.pallas import tpu as pltpu


def _round_up(x, m):
    return ((x + m - 1) // m) * m


def gru_seq_kernel(x_ref, w_i_ref, w_h_ref, b_i_ref, b_h_ref,
                   w_out_ref, b_out_ref, o_ref, h_all):
    """Whole-sequence GRU + linear head in one kernel invocation.

    PyTorch GRU cell (gate order [r, z, n]):
      r = sigmoid(x W_ir^T + b_ir + h W_hr^T + b_hr)
      z = sigmoid(x W_iz^T + b_iz + h W_hz^T + b_hz)
      n = tanh  (x W_in^T + b_in + r * (h W_hn^T + b_hn))
      h' = (1 - z) * n + z * h
    followed by logits_t = h_t' @ W_lin^T + b_lin (done once, batched over T*B).

    x_ref:   (T, B, Din)      time-major input
    w_i_ref: (Din, 3*Hp)      fused input-gate weights, each gate lane-padded
    w_h_ref: (Hp, 3*Hp)       fused hidden-gate weights
    b_i_ref: (1, 3*Hp)        fused input biases   [b_ir | b_iz | b_in]
    b_h_ref: (1, 3*Hp)        fused hidden biases  [b_hr | b_hz | b_hn]
    w_out_ref: (Hp, Dout), b_out_ref: (1, Dout)
    o_ref:   (T*B, Dout)      flat time-major logits
    h_all:   (T*B, Hp)        VMEM scratch holding every hidden state
    """
    T, B, _ = x_ref.shape
    Hp = w_h_ref.shape[0]            # lane-padded hidden size (multiple of 128)

    # Hoist weight loads and bias broadcasts out of the time loop.
    w_i = w_i_ref[...]                                   # (Din, 3*Hp)
    w_h = w_h_ref[...]                                   # (Hp, 3*Hp)
    b_i = jnp.broadcast_to(b_i_ref[...], (B, 3 * Hp))
    b_h = jnp.broadcast_to(b_h_ref[...], (B, 3 * Hp))

    # h_0 = zeros (PyTorch default); padded lanes stay exactly 0 throughout.
    h = jnp.zeros((B, Hp), jnp.float32)

    # Fully-unrolled static time loop: all Ref indices / scratch offsets are
    # static, no per-step grid or DMA bookkeeping. (For large T, switch to a
    # lax.fori_loop with a (T, B, Hp) scratch.)
    for t in range(T):
        x_t = x_ref[t].astype(jnp.float32)               # (B, Din)
        gi = jnp.dot(x_t, w_i, preferred_element_type=jnp.float32) + b_i  # (B, 3Hp)
        gh = jnp.dot(h, w_h, preferred_element_type=jnp.float32) + b_h    # (B, 3Hp)

        # Gate splits land on 128-aligned lane blocks.
        r = jax.nn.sigmoid(gi[:, 0:Hp] + gh[:, 0:Hp])
        z = jax.nn.sigmoid(gi[:, Hp:2 * Hp] + gh[:, Hp:2 * Hp])
        n = jnp.tanh(gi[:, 2 * Hp:3 * Hp] + r * gh[:, 2 * Hp:3 * Hp])
        h = (1.0 - z) * n + z * h

        # Stash hidden state for the batched output projection (static offsets).
        h_all[t * B:(t + 1) * B, :] = h

    # One batched projection + one store instead of T tiny matmuls / stores.
    hs = h_all[...]                                      # (T*B, Hp)
    logits = (jnp.dot(hs, w_out_ref[...], preferred_element_type=jnp.float32)
              + b_out_ref[...])                          # (T*B, Dout)
    o_ref[...] = logits.astype(o_ref.dtype)


def _prepare_kernel_params(params, h_dim, h_pad):
    """Repack PyTorch-layout params into fused, lane-padded kernel layout."""
    H, Hp = h_dim, h_pad
    w_ih, w_hh = params["w_ih"], params["w_hh"]       # (3H, Din), (3H, H)
    b_ih, b_hh = params["b_ih"], params["b_hh"]       # (3H,), (3H,)
    w_lin, b_lin = params["w_lin"], params["b_lin"]   # (Dout, H), (Dout,)

    def pad_gate_i(g):   # -> (Din, Hp)
        return jnp.pad(w_ih[g * H:(g + 1) * H, :].T, ((0, 0), (0, Hp - H)))

    def pad_gate_h(g):   # -> (Hp, Hp)
        return jnp.pad(w_hh[g * H:(g + 1) * H, :].T, ((0, Hp - H), (0, Hp - H)))

    def pad_bias(b, g):  # -> (Hp,)
        return jnp.pad(b[g * H:(g + 1) * H], (0, Hp - H))

    w_i = jnp.concatenate([pad_gate_i(g) for g in range(3)], axis=1)        # (Din, 3Hp)
    w_h = jnp.concatenate([pad_gate_h(g) for g in range(3)], axis=1)        # (Hp, 3Hp)
    b_i = jnp.concatenate([pad_bias(b_ih, g) for g in range(3)])[None, :]   # (1, 3Hp)
    b_h = jnp.concatenate([pad_bias(b_hh, g) for g in range(3)])[None, :]   # (1, 3Hp)
    w_o = jnp.pad(w_lin.T, ((0, Hp - H), (0, 0)))                           # (Hp, Dout)
    b_o = b_lin[None, :]                                                    # (1, Dout)
    return w_i, w_h, b_i, b_h, w_o, b_o


def general_rnn_forward(X, params):
    """X: (B, T, in_dim) batch-first, like the PyTorch module. Returns (B, T, out_dim)."""
    B, T, Din = X.shape
    H = params["w_hh"].shape[1]
    Dout = params["w_lin"].shape[0]
    Hp = _round_up(H, 128)   # each gate padded to a whole 128-lane block (exact)

    w_i, w_h, b_i, b_h, w_o, b_o = _prepare_kernel_params(params, H, Hp)
    x_tm = jnp.transpose(X, (1, 0, 2)).astype(jnp.float32)   # time-major (T, B, Din)

    def full(a):
        return pl.BlockSpec(a.shape, lambda i, _r=a.ndim: (0,) * _r)

    grid_spec = pltpu.PrefetchScalarGridSpec(
        num_scalar_prefetch=0,
        grid=(1,),   # single invocation: the time recurrence lives inside the kernel
        in_specs=[full(x_tm), full(w_i), full(w_h), full(b_i), full(b_h),
                  full(w_o), full(b_o)],
        out_specs=pl.BlockSpec((T * B, Dout), lambda i: (0, 0)),
        scratch_shapes=[pltpu.VMEM((T * B, Hp), jnp.float32)],
    )

    out2d = pl.pallas_call(
        gru_seq_kernel,
        out_shape=jax.ShapeDtypeStruct((T * B, Dout), X.dtype),
        grid_spec=grid_spec,
        compiler_params=pltpu.CompilerParams(
            dimension_semantics=("arbitrary",)),   # recurrence is sequential
    )(x_tm, w_i, w_h, b_i, b_h, w_o, b_o)

    # (T*B, Dout) flat time-major -> (B, T, Dout) batch-first, as in torch.
    return jnp.transpose(out2d.reshape(T, B, Dout), (1, 0, 2))


def init_params(key, in_dim, h_dim, out_dim):
    """PyTorch-native layouts & init: uniform(-1/sqrt(H), 1/sqrt(H)), gate order [r,z,n].
    Independent keys for every parameter (fixes the correlated-init concern)."""
    ks = jax.random.split(key, 6)
    s = 1.0 / jnp.sqrt(jnp.float32(h_dim))
    u = lambda k, shape: jax.random.uniform(k, shape, jnp.float32, -s, s)
    return {
        "w_ih": u(ks[0], (3 * h_dim, in_dim)),   # GRU weight_ih_l0
        "w_hh": u(ks[1], (3 * h_dim, h_dim)),    # GRU weight_hh_l0
        "b_ih": u(ks[2], (3 * h_dim,)),          # GRU bias_ih_l0
        "b_hh": u(ks[3], (3 * h_dim,)),          # GRU bias_hh_l0
        "w_lin": u(ks[4], (out_dim, h_dim)),     # Linear weight (fan_in = h_dim)
        "b_lin": u(ks[5], (out_dim,)),           # Linear bias
    }


def reference_forward(X, p):
    """Pure-JAX reference of torch.nn.GRU(batch_first=True, n_layers=1) + Linear."""
    w_ih, w_hh, b_ih, b_hh = p["w_ih"], p["w_hh"], p["b_ih"], p["b_hh"]
    H = w_hh.shape[1]
    W_ir, W_iz, W_in = w_ih[:H], w_ih[H:2 * H], w_ih[2 * H:]
    W_hr, W_hz, W_hn = w_hh[:H], w_hh[H:2 * H], w_hh[2 * H:]
    b_ir, b_iz, b_in = b_ih[:H], b_ih[H:2 * H], b_ih[2 * H:]
    b_hr, b_hz, b_hn = b_hh[:H], b_hh[H:2 * H], b_hh[2 * H:]

    def step(h, x_t):
        r = jax.nn.sigmoid(x_t @ W_ir.T + b_ir + h @ W_hr.T + b_hr)
        z = jax.nn.sigmoid(x_t @ W_iz.T + b_iz + h @ W_hz.T + b_hz)
        n = jnp.tanh(x_t @ W_in.T + b_in + r * (h @ W_hn.T + b_hn))
        h_new = (1.0 - z) * n + z * h
        return h_new, h_new

    B = X.shape[0]
    h0 = jnp.zeros((B, H), jnp.float32)
    _, hs = jax.lax.scan(step, h0, jnp.transpose(X, (1, 0, 2)))   # (T, B, H)
    logits = hs @ p["w_lin"].T + p["b_lin"]                       # (T, B, Dout)
    return jnp.transpose(logits, (1, 0, 2))                       # (B, T, Dout)


if __name__ == "__main__":
    # args-equivalent: model_type='gru', in_dim=4, h_dim=32, out_dim=2,
    # n_layers=1, dropout=0.0, bidirectional=False, max_seq_len=8
    B, T, IN_DIM, H_DIM, OUT_DIM = 2, 8, 4, 32, 2

    key = jax.random.PRNGKey(0)
    kx, kp = jax.random.split(key)
    X = jax.random.normal(kx, (B, T, IN_DIM), jnp.float32)
    params = init_params(kp, IN_DIM, H_DIM, OUT_DIM)

    logits = general_rnn_forward(X, params)
    logits = jax.block_until_ready(logits)

    ref = reference_forward(X, params)
    assert logits.shape == (B, T, OUT_DIM)
    assert jnp.allclose(logits, ref, atol=1e-4, rtol=1e-4), "mismatch vs JAX reference"

    print("KERNEL_OK")
</pallas_src>

<mosaic_0001>
module attributes {stable_mosaic.version = 11 : i64} {
  func.func @gru_seq_kernel(%arg0: i32, %arg1: memref<8x2x4xf32, #tpu.memory_space<vmem>>, %arg2: memref<4x384xf32, #tpu.memory_space<vmem>>, %arg3: memref<128x384xf32, #tpu.memory_space<vmem>>, %arg4: memref<1x384xf32, #tpu.memory_space<vmem>>, %arg5: memref<1x384xf32, #tpu.memory_space<vmem>>, %arg6: memref<128x2xf32, #tpu.memory_space<vmem>>, %arg7: memref<1x2xf32, #tpu.memory_space<vmem>>, %arg8: memref<16x2xf32, #tpu.memory_space<vmem>>, %arg9: memref<16x128xf32, #tpu.memory_space<vmem>>) attributes {dimension_semantics = [#tpu.dimension_semantics<arbitrary>], iteration_bounds = array<i64: 1>, scalar_prefetch = 0 : i64, scratch_operands = 1 : i64, tpu.core_type = #tpu.core_type<tc>, window_params = [{pipeline_mode = #tpu.pipeline_mode<synchronous>, transform_indices = @transform_0, window_bounds = array<i64: 8, 2, 4>}, {pipeline_mode = #tpu.pipeline_mode<synchronous>, transform_indices = @transform_1, window_bounds = array<i64: 4, 384>}, {pipeline_mode = #tpu.pipeline_mode<synchronous>, transform_indices = @transform_2, window_bounds = array<i64: 128, 384>}, {pipeline_mode = #tpu.pipeline_mode<synchronous>, transform_indices = @transform_3, window_bounds = array<i64: 1, 384>}, {pipeline_mode = #tpu.pipeline_mode<synchronous>, transform_indices = @transform_4, window_bounds = array<i64: 1, 384>}, {pipeline_mode = #tpu.pipeline_mode<synchronous>, transform_indices = @transform_5, window_bounds = array<i64: 128, 2>}, {pipeline_mode = #tpu.pipeline_mode<synchronous>, transform_indices = @transform_6, window_bounds = array<i64: 1, 2>}, {pipeline_mode = #tpu.pipeline_mode<synchronous>, transform_indices = @transform_7, window_bounds = array<i64: 16, 2>}]} {
    %c0 = arith.constant 0 : index
    %c0_0 = arith.constant 0 : index
    %0 = vector.load %arg2[%c0, %c0_0] : memref<4x384xf32, #tpu.memory_space<vmem>>, vector<4x384xf32>
    %c0_1 = arith.constant 0 : index
    %c0_2 = arith.constant 0 : index
    %1 = vector.load %arg3[%c0_1, %c0_2] : memref<128x384xf32, #tpu.memory_space<vmem>>, vector<128x384xf32>
    %c0_3 = arith.constant 0 : index
    %c0_4 = arith.constant 0 : index
    %2 = vector.load %arg4[%c0_3, %c0_4] : memref<1x384xf32, #tpu.memory_space<vmem>>, vector<1x384xf32>
    %3 = vector.shape_cast %2 : vector<1x384xf32> to vector<1x384xf32>
    %4 = vector.broadcast %3 : vector<1x384xf32> to vector<2x384xf32>
    %c0_5 = arith.constant 0 : index
    %c0_6 = arith.constant 0 : index
    %5 = vector.load %arg5[%c0_5, %c0_6] : memref<1x384xf32, #tpu.memory_space<vmem>>, vector<1x384xf32>
    %6 = vector.shape_cast %5 : vector<1x384xf32> to vector<1x384xf32>
    %7 = vector.broadcast %6 : vector<1x384xf32> to vector<2x384xf32>
    %cst = arith.constant 0.000000e+00 : f32
    %8 = vector.broadcast %cst : f32 to vector<2x128xf32>
    %c0_7 = arith.constant 0 : index
    %c0_8 = arith.constant 0 : index
    %c0_9 = arith.constant 0 : index
    %9 = vector.load %arg1[%c0_7, %c0_8, %c0_9] : memref<8x2x4xf32, #tpu.memory_space<vmem>>, vector<1x2x4xf32>
    %10 = vector.shape_cast %9 : vector<1x2x4xf32> to vector<2x4xf32>
    %cst_10 = arith.constant dense<0.000000e+00> : vector<2x384xf32>
    %11 = tpu.matmul %10, %0, %cst_10 {dimension_numbers = #tpu.dot_dimension_numbers<[1], [0], [0], [1], [0, 0, 1, 1], [], []>} : vector<2x4xf32>, vector<4x384xf32>, vector<2x384xf32> -> vector<2x384xf32>
    %12 = arith.addf %11, %4 : vector<2x384xf32>
    %cst_11 = arith.constant dense<0.000000e+00> : vector<2x384xf32>
    %13 = tpu.matmul %8, %1, %cst_11 {dimension_numbers = #tpu.dot_dimension_numbers<[1], [0], [0], [1], [0, 0, 1, 1], [], []>} : vector<2x128xf32>, vector<128x384xf32>, vector<2x384xf32> -> vector<2x384xf32>
    %14 = arith.addf %13, %7 : vector<2x384xf32>
    %15 = vector.extract_strided_slice %12 {offsets = [0, 0], sizes = [2, 128], strides = [1, 1]} : vector<2x384xf32> to vector<2x128xf32>
    %16 = vector.extract_strided_slice %14 {offsets = [0, 0], sizes = [2, 128], strides = [1, 1]} : vector<2x384xf32> to vector<2x128xf32>
    %17 = arith.addf %15, %16 : vector<2x128xf32>
    %18 = arith.negf %17 : vector<2x128xf32>
    %19 = math.exp %18 : vector<2x128xf32>
    %cst_12 = arith.constant 1.000000e+00 : f32
    %20 = vector.broadcast %cst_12 : f32 to vector<2x128xf32>
    %21 = arith.addf %20, %19 : vector<2x128xf32>
    %22 = arith.divf %20, %21 : vector<2x128xf32>
    %23 = vector.extract_strided_slice %12 {offsets = [0, 128], sizes = [2, 128], strides = [1, 1]} : vector<2x384xf32> to vector<2x128xf32>
    %24 = vector.extract_strided_slice %14 {offsets = [0, 128], sizes = [2, 128], strides = [1, 1]} : vector<2x384xf32> to vector<2x128xf32>
    %25 = arith.addf %23, %24 : vector<2x128xf32>
    %26 = arith.negf %25 : vector<2x128xf32>
    %27 = math.exp %26 : vector<2x128xf32>
    %cst_13 = arith.constant 1.000000e+00 : f32
    %28 = vector.broadcast %cst_13 : f32 to vector<2x128xf32>
    %29 = arith.addf %28, %27 : vector<2x128xf32>
    %30 = arith.divf %28, %29 : vector<2x128xf32>
    %31 = vector.extract_strided_slice %12 {offsets = [0, 256], sizes = [2, 128], strides = [1, 1]} : vector<2x384xf32> to vector<2x128xf32>
    %32 = vector.extract_strided_slice %14 {offsets = [0, 256], sizes = [2, 128], strides = [1, 1]} : vector<2x384xf32> to vector<2x128xf32>
    %33 = arith.mulf %22, %32 : vector<2x128xf32>
    %34 = arith.addf %31, %33 : vector<2x128xf32>
    %35 = math.tanh %34 : vector<2x128xf32>
    %cst_14 = arith.constant 1.000000e+00 : f32
    %36 = vector.broadcast %cst_14 : f32 to vector<2x128xf32>
    %37 = arith.subf %36, %30 : vector<2x128xf32>
    %38 = arith.mulf %37, %35 : vector<2x128xf32>
    %39 = arith.mulf %30, %8 : vector<2x128xf32>
    %40 = arith.addf %38, %39 : vector<2x128xf32>
    %c0_15 = arith.constant 0 : index
    %c0_16 = arith.constant 0 : index
    %41 = vector.load %arg9[%c0_15, %c0_16] : memref<16x128xf32, #tpu.memory_space<vmem>>, vector<2x128xf32>
    tpu.vector_store %arg9[%c0_15, %c0_16], %40 {strides = array<i32>} : memref<16x128xf32, #tpu.memory_space<vmem>>, vector<2x128xf32>,
    %c1 = arith.constant 1 : index
    %c0_17 = arith.constant 0 : index
    %c0_18 = arith.constant 0 : index
    %42 = vector.load %arg1[%c1, %c0_17, %c0_18] : memref<8x2x4xf32, #tpu.memory_space<vmem>>, vector<1x2x4xf32>
    %43 = vector.shape_cast %42 : vector<1x2x4xf32> to vector<2x4xf32>
    %cst_19 = arith.constant dense<0.000000e+00> : vector<2x384xf32>
    %44 = tpu.matmul %43, %0, %cst_19 {dimension_numbers = #tpu.dot_dimension_numbers<[1], [0], [0], [1], [0, 0, 1, 1], [], []>} : vector<2x4xf32>, vector<4x384xf32>, vector<2x384xf32> -> vector<2x384xf32>
    %45 = arith.addf %44, %4 : vector<2x384xf32>
    %cst_20 = arith.constant dense<0.000000e+00> : vector<2x384xf32>
    %46 = tpu.matmul %40, %1, %cst_20 {dimension_numbers = #tpu.dot_dimension_numbers<[1], [0], [0], [1], [0, 0, 1, 1], [], []>} : vector<2x128xf32>, vector<128x384xf32>, vector<2x384xf32> -> vector<2x384xf32>
    %47 = arith.addf %46, %7 : vector<2x384xf32>
    %48 = vector.extract_strided_slice %45 {offsets = [0, 0], sizes = [2, 128], strides = [1, 1]} : vector<2x384xf32> to vector<2x128xf32>
    %49 = vector.extract_strided_slice %47 {offsets = [0, 0], sizes = [2, 128], strides = [1, 1]} : vector<2x384xf32> to vector<2x128xf32>
    %50 = arith.addf %48, %49 : vector<2x128xf32>
    %51 = arith.negf %50 : vector<2x128xf32>
    %52 = math.exp %51 : vector<2x128xf32>
    %cst_21 = arith.constant 1.000000e+00 : f32
    %53 = vector.broadcast %cst_21 : f32 to vector<2x128xf32>
    %54 = arith.addf %53, %52 : vector<2x128xf32>
    %55 = arith.divf %53, %54 : vector<2x128xf32>
    %56 = vector.extract_strided_slice %45 {offsets = [0, 128], sizes = [2, 128], strides = [1, 1]} : vector<2x384xf32> to vector<2x128xf32>
    %57 = vector.extract_strided_slice %47 {offsets = [0, 128], sizes = [2, 128], strides = [1, 1]} : vector<2x384xf32> to vector<2x128xf32>
    %58 = arith.addf %56, %57 : vector<2x128xf32>
    %59 = arith.negf %58 : vector<2x128xf32>
    %60 = math.exp %59 : vector<2x128xf32>
    %cst_22 = arith.constant 1.000000e+00 : f32
    %61 = vector.broadcast %cst_22 : f32 to vector<2x128xf32>
    %62 = arith.addf %61, %60 : vector<2x128xf32>
    %63 = arith.divf %61, %62 : vector<2x128xf32>
    %64 = vector.extract_strided_slice %45 {offsets = [0, 256], sizes = [2, 128], strides = [1, 1]} : vector<2x384xf32> to vector<2x128xf32>
    %65 = vector.extract_strided_slice %47 {offsets = [0, 256], sizes = [2, 128], strides = [1, 1]} : vector<2x384xf32> to vector<2x128xf32>
    %66 = arith.mulf %55, %65 : vector<2x128xf32>
    %67 = arith.addf %64, %66 : vector<2x128xf32>
    %68 = math.tanh %67 : vector<2x128xf32>
    %cst_23 = arith.constant 1.000000e+00 : f32
    %69 = vector.broadcast %cst_23 : f32 to vector<2x128xf32>
    %70 = arith.subf %69, %63 : vector<2x128xf32>
    %71 = arith.mulf %70, %68 : vector<2x128xf32>
    %72 = arith.mulf %63, %40 : vector<2x128xf32>
    %73 = arith.addf %71, %72 : vector<2x128xf32>
    %c2 = arith.constant 2 : index
    %c0_24 = arith.constant 0 : index
    %74 = vector.load %arg9[%c2, %c0_24] : memref<16x128xf32, #tpu.memory_space<vmem>>, vector<2x128xf32>
    tpu.vector_store %arg9[%c2, %c0_24], %73 {strides = array<i32>} : memref<16x128xf32, #tpu.memory_space<vmem>>, vector<2x128xf32>,
    %c2_25 = arith.constant 2 : index
    %c0_26 = arith.constant 0 : index
    %c0_27 = arith.constant 0 : index
    %75 = vector.load %arg1[%c2_25, %c0_26, %c0_27] : memref<8x2x4xf32, #tpu.memory_space<vmem>>, vector<1x2x4xf32>
    %76 = vector.shape_cast %75 : vector<1x2x4xf32> to vector<2x4xf32>
    %cst_28 = arith.constant dense<0.000000e+00> : vector<2x384xf32>
    %77 = tpu.matmul %76, %0, %cst_28 {dimension_numbers = #tpu.dot_dimension_numbers<[1], [0], [0], [1], [0, 0, 1, 1], [], []>} : vector<2x4xf32>, vector<4x384xf32>, vector<2x384xf32> -> vector<2x384xf32>
    %78 = arith.addf %77, %4 : vector<2x384xf32>
    %cst_29 = arith.constant dense<0.000000e+00> : vector<2x384xf32>
    %79 = tpu.matmul %73, %1, %cst_29 {dimension_numbers = #tpu.dot_dimension_numbers<[1], [0], [0], [1], [0, 0, 1, 1], [], []>} : vector<2x128xf32>, vector<128x384xf32>, vector<2x384xf32> -> vector<2x384xf32>
    %80 = arith.addf %79, %7 : vector<2x384xf32>
    %81 = vector.extract_strided_slice %78 {offsets = [0, 0], sizes = [2, 128], strides = [1, 1]} : vector<2x384xf32> to vector<2x128xf32>
    %82 = vector.extract_strided_slice %80 {offsets = [0, 0], sizes = [2, 128], strides = [1, 1]} : vector<2x384xf32> to vector<2x128xf32>
    %83 = arith.addf %81, %82 : vector<2x128xf32>
    %84 = arith.negf %83 : vector<2x128xf32>
    %85 = math.exp %84 : vector<2x128xf32>
    %cst_30 = arith.constant 1.000000e+00 : f32
    %86 = vector.broadcast %cst_30 : f32 to vector<2x128xf32>
    %87 = arith.addf %86, %85 : vector<2x128xf32>
    %88 = arith.divf %86, %87 : vector<2x128xf32>
    %89 = vector.extract_strided_slice %78 {offsets = [0, 128], sizes = [2, 128], strides = [1, 1]} : vector<2x384xf32> to vector<2x128xf32>
    %90 = vector.extract_strided_slice %80 {offsets = [0, 128], sizes = [2, 128], strides = [1, 1]} : vector<2x384xf32> to vector<2x128xf32>
    %91 = arith.addf %89, %90 : vector<2x128xf32>
    %92 = arith.negf %91 : vector<2x128xf32>
    %93 = math.exp %92 : vector<2x128xf32>
    %cst_31 = arith.constant 1.000000e+00 : f32
    %94 = vector.broadcast %cst_31 : f32 to vector<2x128xf32>
    %95 = arith.addf %94, %93 : vector<2x128xf32>
    %96 = arith.divf %94, %95 : vector<2x128xf32>
    %97 = vector.extract_strided_slice %78 {offsets = [0, 256], sizes = [2, 128], strides = [1, 1]} : vector<2x384xf32> to vector<2x128xf32>
    %98 = vector.extract_strided_slice %80 {offsets = [0, 256], sizes = [2, 128], strides = [1, 1]} : vector<2x384xf32> to vector<2x128xf32>
    %99 = arith.mulf %88, %98 : vector<2x128xf32>
    %100 = arith.addf %97, %99 : vector<2x128xf32>
    %101 = math.tanh %100 : vector<2x128xf32>
    %cst_32 = arith.constant 1.000000e+00 : f32
    %102 = vector.broadcast %cst_32 : f32 to vector<2x128xf32>
    %103 = arith.subf %102, %96 : vector<2x128xf32>
    %104 = arith.mulf %103, %101 : vector<2x128xf32>
    %105 = arith.mulf %96, %73 : vector<2x128xf32>
    %106 = arith.addf %104, %105 : vector<2x128xf32>
    %c4 = arith.constant 4 : index
    %c0_33 = arith.constant 0 : index
    %107 = vector.load %arg9[%c4, %c0_33] : memref<16x128xf32, #tpu.memory_space<vmem>>, vector<2x128xf32>
    tpu.vector_store %arg9[%c4, %c0_33], %106 {strides = array<i32>} : memref<16x128xf32, #tpu.memory_space<vmem>>, vector<2x128xf32>,
    %c3 = arith.constant 3 : index
    %c0_34 = arith.constant 0 : index
    %c0_35 = arith.constant 0 : index
    %108 = vector.load %arg1[%c3, %c0_34, %c0_35] : memref<8x2x4xf32, #tpu.memory_space<vmem>>, vector<1x2x4xf32>
    %109 = vector.shape_cast %108 : vector<1x2x4xf32> to vector<2x4xf32>
    %cst_36 = arith.constant dense<0.000000e+00> : vector<2x384xf32>
    %110 = tpu.matmul %109, %0, %cst_36 {dimension_numbers = #tpu.dot_dimension_numbers<[1], [0], [0], [1], [0, 0, 1, 1], [], []>} : vector<2x4xf32>, vector<4x384xf32>, vector<2x384xf32> -> vector<2x384xf32>
    %111 = arith.addf %110, %4 : vector<2x384xf32>
    %cst_37 = arith.constant dense<0.000000e+00> : vector<2x384xf32>
    %112 = tpu.matmul %106, %1, %cst_37 {dimension_numbers = #tpu.dot_dimension_numbers<[1], [0], [0], [1], [0, 0, 1, 1], [], []>} : vector<2x128xf32>, vector<128x384xf32>, vector<2x384xf32> -> vector<2x384xf32>
    %113 = arith.addf %112, %7 : vector<2x384xf32>
    %114 = vector.extract_strided_slice %111 {offsets = [0, 0], sizes = [2, 128], strides = [1, 1]} : vector<2x384xf32> to vector<2x128xf32>
    %115 = vector.extract_strided_slice %113 {offsets = [0, 0], sizes = [2, 128], strides = [1, 1]} : vector<2x384xf32> to vector<2x128xf32>
    %116 = arith.addf %114, %115 : vector<2x128xf32>
    %117 = arith.negf %116 : vector<2x128xf32>
    %118 = math.exp %117 : vector<2x128xf32>
    %cst_38 = arith.constant 1.000000e+00 : f32
    %119 = vector.broadcast %cst_38 : f32 to vector<2x128xf32>
    %120 = arith.addf %119, %118 : vector<2x128xf32>
    %121 = arith.divf %119, %120 : vector<2x128xf32>
    %122 = vector.extract_strided_slice %111 {offsets = [0, 128], sizes = [2, 128], strides = [1, 1]} : vector<2x384xf32> to vector<2x128xf32>
    %123 = vector.extract_strided_slice %113 {offsets = [0, 128], sizes = [2, 128], strides = [1, 1]} : vector<2x384xf32> to vector<2x128xf32>
    %124 = arith.addf %122, %123 : vector<2x128xf32>
    %125 = arith.negf %124 : vector<2x128xf32>
    %126 = math.exp %125 : vector<2x128xf32>
    %cst_39 = arith.constant 1.000000e+00 : f32
    %127 = vector.broadcast %cst_39 : f32 to vector<2x128xf32>
    %128 = arith.addf %127, %126 : vector<2x128xf32>
    %129 = arith.divf %127, %128 : vector<2x128xf32>
    %130 = vector.extract_strided_slice %111 {offsets = [0, 256], sizes = [2, 128], strides = [1, 1]} : vector<2x384xf32> to vector<2x128xf32>
    %131 = vector.extract_strided_slice %113 {offsets = [0, 256], sizes = [2, 128], strides = [1, 1]} : vector<2x384xf32> to vector<2x128xf32>
    %132 = arith.mulf %121, %131 : vector<2x128xf32>
    %133 = arith.addf %130, %132 : vector<2x128xf32>
    %134 = math.tanh %133 : vector<2x128xf32>
    %cst_40 = arith.constant 1.000000e+00 : f32
    %135 = vector.broadcast %cst_40 : f32 to vector<2x128xf32>
    %136 = arith.subf %135, %129 : vector<2x128xf32>
    %137 = arith.mulf %136, %134 : vector<2x128xf32>
    %138 = arith.mulf %129, %106 : vector<2x128xf32>
    %139 = arith.addf %137, %138 : vector<2x128xf32>
    %c6 = arith.constant 6 : index
    %c0_41 = arith.constant 0 : index
    %140 = vector.load %arg9[%c6, %c0_41] : memref<16x128xf32, #tpu.memory_space<vmem>>, vector<2x128xf32>
    tpu.vector_store %arg9[%c6, %c0_41], %139 {strides = array<i32>} : memref<16x128xf32, #tpu.memory_space<vmem>>, vector<2x128xf32>,
    %c4_42 = arith.constant 4 : index
    %c0_43 = arith.constant 0 : index
    %c0_44 = arith.constant 0 : index
    %141 = vector.load %arg1[%c4_42, %c0_43, %c0_44] : memref<8x2x4xf32, #tpu.memory_space<vmem>>, vector<1x2x4xf32>
    %142 = vector.shape_cast %141 : vector<1x2x4xf32> to vector<2x4xf32>
    %cst_45 = arith.constant dense<0.000000e+00> : vector<2x384xf32>
    %143 = tpu.matmul %142, %0, %cst_45 {dimension_numbers = #tpu.dot_dimension_numbers<[1], [0], [0], [1], [0, 0, 1, 1], [], []>} : vector<2x4xf32>, vector<4x384xf32>, vector<2x384xf32> -> vector<2x384xf32>
    %144 = arith.addf %143, %4 : vector<2x384xf32>
    %cst_46 = arith.constant dense<0.000000e+00> : vector<2x384xf32>
    %145 = tpu.matmul %139, %1, %cst_46 {dimension_numbers = #tpu.dot_dimension_numbers<[1], [0], [0], [1], [0, 0, 1, 1], [], []>} : vector<2x128xf32>, vector<128x384xf32>, vector<2x384xf32> -> vector<2x384xf32>
    %146 = arith.addf %145, %7 : vector<2x384xf32>
    %147 = vector.extract_strided_slice %144 {offsets = [0, 0], sizes = [2, 128], strides = [1, 1]} : vector<2x384xf32> to vector<2x128xf32>
    %148 = vector.extract_strided_slice %146 {offsets = [0, 0], sizes = [2, 128], strides = [1, 1]} : vector<2x384xf32> to vector<2x128xf32>
    %149 = arith.addf %147, %148 : vector<2x128xf32>
    %150 = arith.negf %149 : vector<2x128xf32>
    %151 = math.exp %150 : vector<2x128xf32>
    %cst_47 = arith.constant 1.000000e+00 : f32
    %152 = vector.broadcast %cst_47 : f32 to vector<2x128xf32>
    %153 = arith.addf %152, %151 : vector<2x128xf32>
    %154 = arith.divf %152, %153 : vector<2x128xf32>
    %155 = vector.extract_strided_slice %144 {offsets = [0, 128], sizes = [2, 128], strides = [1, 1]} : vector<2x384xf32> to vector<2x128xf32>
    %156 = vector.extract_strided_slice %146 {offsets = [0, 128], sizes = [2, 128], strides = [1, 1]} : vector<2x384xf32> to vector<2x128xf32>
    %157 = arith.addf %155, %156 : vector<2x128xf32>
    %158 = arith.negf %157 : vector<2x128xf32>
    %159 = math.exp %158 : vector<2x128xf32>
    %cst_48 = arith.constant 1.000000e+00 : f32
    %160 = vector.broadcast %cst_48 : f32 to vector<2x128xf32>
    %161 = arith.addf %160, %159 : vector<2x128xf32>
    %162 = arith.divf %160, %161 : vector<2x128xf32>
    %163 = vector.extract_strided_slice %144 {offsets = [0, 256], sizes = [2, 128], strides = [1, 1]} : vector<2x384xf32> to vector<2x128xf32>
    %164 = vector.extract_strided_slice %146 {offsets = [0, 256], sizes = [2, 128], strides = [1, 1]} : vector<2x384xf32> to vector<2x128xf32>
    %165 = arith.mulf %154, %164 : vector<2x128xf32>
    %166 = arith.addf %163, %165 : vector<2x128xf32>
    %167 = math.tanh %166 : vector<2x128xf32>
    %cst_49 = arith.constant 1.000000e+00 : f32
    %168 = vector.broadcast %cst_49 : f32 to vector<2x128xf32>
    %169 = arith.subf %168, %162 : vector<2x128xf32>
    %170 = arith.mulf %169, %167 : vector<2x128xf32>
    %171 = arith.mulf %162, %139 : vector<2x128xf32>
    %172 = arith.addf %170, %171 : vector<2x128xf32>
    %c8 = arith.constant 8 : index
    %c0_50 = arith.constant 0 : index
    %173 = vector.load %arg9[%c8, %c0_50] : memref<16x128xf32, #tpu.memory_space<vmem>>, vector<2x128xf32>
    tpu.vector_store %arg9[%c8, %c0_50], %172 {strides = array<i32>} : memref<16x128xf32, #tpu.memory_space<vmem>>, vector<2x128xf32>,
    %c5 = arith.constant 5 : index
    %c0_51 = arith.constant 0 : index
    %c0_52 = arith.constant 0 : index
    %174 = vector.load %arg1[%c5, %c0_51, %c0_52] : memref<8x2x4xf32, #tpu.memory_space<vmem>>, vector<1x2x4xf32>
    %175 = vector.shape_cast %174 : vector<1x2x4xf32> to vector<2x4xf32>
    %cst_53 = arith.constant dense<0.000000e+00> : vector<2x384xf32>
    %176 = tpu.matmul %175, %0, %cst_53 {dimension_numbers = #tpu.dot_dimension_numbers<[1], [0], [0], [1], [0, 0, 1, 1], [], []>} : vector<2x4xf32>, vector<4x384xf32>, vector<2x384xf32> -> vector<2x384xf32>
    %177 = arith.addf %176, %4 : vector<2x384xf32>
    %cst_54 = arith.constant dense<0.000000e+00> : vector<2x384xf32>
    %178 = tpu.matmul %172, %1, %cst_54 {dimension_numbers = #tpu.dot_dimension_numbers<[1], [0], [0], [1], [0, 0, 1, 1], [], []>} : vector<2x128xf32>, vector<128x384xf32>, vector<2x384xf32> -> vector<2x384xf32>
    %179 = arith.addf %178, %7 : vector<2x384xf32>
    %180 = vector.extract_strided_slice %177 {offsets = [0, 0], sizes = [2, 128], strides = [1, 1]} : vector<2x384xf32> to vector<2x128xf32>
    %181 = vector.extract_strided_slice %179 {offsets = [0, 0], sizes = [2, 128], strides = [1, 1]} : vector<2x384xf32> to vector<2x128xf32>
    %182 = arith.addf %180, %181 : vector<2x128xf32>
    %183 = arith.negf %182 : vector<2x128xf32>
    %184 = math.exp %183 : vector<2x128xf32>
    %cst_55 = arith.constant 1.000000e+00 : f32
    %185 = vector.broadcast %cst_55 : f32 to vector<2x128xf32>
    %186 = arith.addf %185, %184 : vector<2x128xf32>
    %187 = arith.divf %185, %186 : vector<2x128xf32>
    %188 = vector.extract_strided_slice %177 {offsets = [0, 128], sizes = [2, 128], strides = [1, 1]} : vector<2x384xf32> to vector<2x128xf32>
    %189 = vector.extract_strided_slice %179 {offsets = [0, 128], sizes = [2, 128], strides = [1, 1]} : vector<2x384xf32> to vector<2x128xf32>
    %190 = arith.addf %188, %189 : vector<2x128xf32>
    %191 = arith.negf %190 : vector<2x128xf32>
    %192 = math.exp %191 : vector<2x128xf32>
    %cst_56 = arith.constant 1.000000e+00 : f32
    %193 = vector.broadcast %cst_56 : f32 to vector<2x128xf32>
    %194 = arith.addf %193, %192 : vector<2x128xf32>
    %195 = arith.divf %193, %194 : vector<2x128xf32>
    %196 = vector.extract_strided_slice %177 {offsets = [0, 256], sizes = [2, 128], strides = [1, 1]} : vector<2x384xf32> to vector<2x128xf32>
    %197 = vector.extract_strided_slice %179 {offsets = [0, 256], sizes = [2, 128], strides = [1, 1]} : vector<2x384xf32> to vector<2x128xf32>
    %198 = arith.mulf %187, %197 : vector<2x128xf32>
    %199 = arith.addf %196, %198 : vector<2x128xf32>
    %200 = math.tanh %199 : vector<2x128xf32>
    %cst_57 = arith.constant 1.000000e+00 : f32
    %201 = vector.broadcast %cst_57 : f32 to vector<2x128xf32>
    %202 = arith.subf %201, %195 : vector<2x128xf32>
    %203 = arith.mulf %202, %200 : vector<2x128xf32>
    %204 = arith.mulf %195, %172 : vector<2x128xf32>
    %205 = arith.addf %203, %204 : vector<2x128xf32>
    %c10 = arith.constant 10 : index
    %c0_58 = arith.constant 0 : index
    %206 = vector.load %arg9[%c10, %c0_58] : memref<16x128xf32, #tpu.memory_space<vmem>>, vector<2x128xf32>
    tpu.vector_store %arg9[%c10, %c0_58], %205 {strides = array<i32>} : memref<16x128xf32, #tpu.memory_space<vmem>>, vector<2x128xf32>,
    %c6_59 = arith.constant 6 : index
    %c0_60 = arith.constant 0 : index
    %c0_61 = arith.constant 0 : index
    %207 = vector.load %arg1[%c6_59, %c0_60, %c0_61] : memref<8x2x4xf32, #tpu.memory_space<vmem>>, vector<1x2x4xf32>
    %208 = vector.shape_cast %207 : vector<1x2x4xf32> to vector<2x4xf32>
    %cst_62 = arith.constant dense<0.000000e+00> : vector<2x384xf32>
    %209 = tpu.matmul %208, %0, %cst_62 {dimension_numbers = #tpu.dot_dimension_numbers<[1], [0], [0], [1], [0, 0, 1, 1], [], []>} : vector<2x4xf32>, vector<4x384xf32>, vector<2x384xf32> -> vector<2x384xf32>
    %210 = arith.addf %209, %4 : vector<2x384xf32>
    %cst_63 = arith.constant dense<0.000000e+00> : vector<2x384xf32>
    %211 = tpu.matmul %205, %1, %cst_63 {dimension_numbers = #tpu.dot_dimension_numbers<[1], [0], [0], [1], [0, 0, 1, 1], [], []>} : vector<2x128xf32>, vector<128x384xf32>, vector<2x384xf32> -> vector<2x384xf32>
    %212 = arith.addf %211, %7 : vector<2x384xf32>
    %213 = vector.extract_strided_slice %210 {offsets = [0, 0], sizes = [2, 128], strides = [1, 1]} : vector<2x384xf32> to vector<2x128xf32>
    %214 = vector.extract_strided_slice %212 {offsets = [0, 0], sizes = [2, 128], strides = [1, 1]} : vector<2x384xf32> to vector<2x128xf32>
    %215 = arith.addf %213, %214 : vector<2x128xf32>
    %216 = arith.negf %215 : vector<2x128xf32>
    %217 = math.exp %216 : vector<2x128xf32>
    %cst_64 = arith.constant 1.000000e+00 : f32
    %218 = vector.broadcast %cst_64 : f32 to vector<2x128xf32>
    %219 = arith.addf %218, %217 : vector<2x128xf32>
    %220 = arith.divf %218, %219 : vector<2x128xf32>
    %221 = vector.extract_strided_slice %210 {offsets = [0, 128], sizes = [2, 128], strides = [1, 1]} : vector<2x384xf32> to vector<2x128xf32>
    %222 = vector.extract_strided_slice %212 {offsets = [0, 128], sizes = [2, 128], strides = [1, 1]} : vector<2x384xf32> to vector<2x128xf32>
    %223 = arith.addf %221, %222 : vector<2x128xf32>
    %224 = arith.negf %223 : vector<2x128xf32>
    %225 = math.exp %224 : vector<2x128xf32>
    %cst_65 = arith.constant 1.000000e+00 : f32
    %226 = vector.broadcast %cst_65 : f32 to vector<2x128xf32>
    %227 = arith.addf %226, %225 : vector<2x128xf32>
    %228 = arith.divf %226, %227 : vector<2x128xf32>
    %229 = vector.extract_strided_slice %210 {offsets = [0, 256], sizes = [2, 128], strides = [1, 1]} : vector<2x384xf32> to vector<2x128xf32>
    %230 = vector.extract_strided_slice %212 {offsets = [0, 256], sizes = [2, 128], strides = [1, 1]} : vector<2x384xf32> to vector<2x128xf32>
    %231 = arith.mulf %220, %230 : vector<2x128xf32>
    %232 = arith.addf %229, %231 : vector<2x128xf32>
    %233 = math.tanh %232 : vector<2x128xf32>
    %cst_66 = arith.constant 1.000000e+00 : f32
    %234 = vector.broadcast %cst_66 : f32 to vector<2x128xf32>
    %235 = arith.subf %234, %228 : vector<2x128xf32>
    %236 = arith.mulf %235, %233 : vector<2x128xf32>
    %237 = arith.mulf %228, %205 : vector<2x128xf32>
    %238 = arith.addf %236, %237 : vector<2x128xf32>
    %c12 = arith.constant 12 : index
    %c0_67 = arith.constant 0 : index
    %239 = vector.load %arg9[%c12, %c0_67] : memref<16x128xf32, #tpu.memory_space<vmem>>, vector<2x128xf32>
    tpu.vector_store %arg9[%c12, %c0_67], %238 {strides = array<i32>} : memref<16x128xf32, #tpu.memory_space<vmem>>, vector<2x128xf32>,
    %c7 = arith.constant 7 : index
    %c0_68 = arith.constant 0 : index
    %c0_69 = arith.constant 0 : index
    %240 = vector.load %arg1[%c7, %c0_68, %c0_69] : memref<8x2x4xf32, #tpu.memory_space<vmem>>, vector<1x2x4xf32>
    %241 = vector.shape_cast %240 : vector<1x2x4xf32> to vector<2x4xf32>
    %cst_70 = arith.constant dense<0.000000e+00> : vector<2x384xf32>
    %242 = tpu.matmul %241, %0, %cst_70 {dimension_numbers = #tpu.dot_dimension_numbers<[1], [0], [0], [1], [0, 0, 1, 1], [], []>} : vector<2x4xf32>, vector<4x384xf32>, vector<2x384xf32> -> vector<2x384xf32>
    %243 = arith.addf %242, %4 : vector<2x384xf32>
    %cst_71 = arith.constant dense<0.000000e+00> : vector<2x384xf32>
    %244 = tpu.matmul %238, %1, %cst_71 {dimension_numbers = #tpu.dot_dimension_numbers<[1], [0], [0], [1], [0, 0, 1, 1], [], []>} : vector<2x128xf32>, vector<128x384xf32>, vector<2x384xf32> -> vector<2x384xf32>
    %245 = arith.addf %244, %7 : vector<2x384xf32>
    %246 = vector.extract_strided_slice %243 {offsets = [0, 0], sizes = [2, 128], strides = [1, 1]} : vector<2x384xf32> to vector<2x128xf32>
    %247 = vector.extract_strided_slice %245 {offsets = [0, 0], sizes = [2, 128], strides = [1, 1]} : vector<2x384xf32> to vector<2x128xf32>
    %248 = arith.addf %246, %247 : vector<2x128xf32>
    %249 = arith.negf %248 : vector<2x128xf32>
    %250 = math.exp %249 : vector<2x128xf32>
    %cst_72 = arith.constant 1.000000e+00 : f32
    %251 = vector.broadcast %cst_72 : f32 to vector<2x128xf32>
    %252 = arith.addf %251, %250 : vector<2x128xf32>
    %253 = arith.divf %251, %252 : vector<2x128xf32>
    %254 = vector.extract_strided_slice %243 {offsets = [0, 128], sizes = [2, 128], strides = [1, 1]} : vector<2x384xf32> to vector<2x128xf32>
    %255 = vector.extract_strided_slice %245 {offsets = [0, 128], sizes = [2, 128], strides = [1, 1]} : vector<2x384xf32> to vector<2x128xf32>
    %256 = arith.addf %254, %255 : vector<2x128xf32>
    %257 = arith.negf %256 : vector<2x128xf32>
    %258 = math.exp %257 : vector<2x128xf32>
    %cst_73 = arith.constant 1.000000e+00 : f32
    %259 = vector.broadcast %cst_73 : f32 to vector<2x128xf32>
    %260 = arith.addf %259, %258 : vector<2x128xf32>
    %261 = arith.divf %259, %260 : vector<2x128xf32>
    %262 = vector.extract_strided_slice %243 {offsets = [0, 256], sizes = [2, 128], strides = [1, 1]} : vector<2x384xf32> to vector<2x128xf32>
    %263 = vector.extract_strided_slice %245 {offsets = [0, 256], sizes = [2, 128], strides = [1, 1]} : vector<2x384xf32> to vector<2x128xf32>
    %264 = arith.mulf %253, %263 : vector<2x128xf32>
    %265 = arith.addf %262, %264 : vector<2x128xf32>
    %266 = math.tanh %265 : vector<2x128xf32>
    %cst_74 = arith.constant 1.000000e+00 : f32
    %267 = vector.broadcast %cst_74 : f32 to vector<2x128xf32>
    %268 = arith.subf %267, %261 : vector<2x128xf32>
    %269 = arith.mulf %268, %266 : vector<2x128xf32>
    %270 = arith.mulf %261, %238 : vector<2x128xf32>
    %271 = arith.addf %269, %270 : vector<2x128xf32>
    %c14 = arith.constant 14 : index
    %c0_75 = arith.constant 0 : index
    %272 = vector.load %arg9[%c14, %c0_75] : memref<16x128xf32, #tpu.memory_space<vmem>>, vector<2x128xf32>
    tpu.vector_store %arg9[%c14, %c0_75], %271 {strides = array<i32>} : memref<16x128xf32, #tpu.memory_space<vmem>>, vector<2x128xf32>,
    %c0_76 = arith.constant 0 : index
    %c0_77 = arith.constant 0 : index
    %273 = vector.load %arg9[%c0_76, %c0_77] : memref<16x128xf32, #tpu.memory_space<vmem>>, vector<16x128xf32>
    %c0_78 = arith.constant 0 : index
    %c0_79 = arith.constant 0 : index
    %274 = vector.load %arg6[%c0_78, %c0_79] : memref<128x2xf32, #tpu.memory_space<vmem>>, vector<128x2xf32>
    %cst_80 = arith.constant dense<0.000000e+00> : vector<16x2xf32>
    %275 = tpu.matmul %273, %274, %cst_80 {dimension_numbers = #tpu.dot_dimension_numbers<[1], [0], [0], [1], [0, 0, 1, 1], [], []>} : vector<16x128xf32>, vector<128x2xf32>, vector<16x2xf32> -> vector<16x2xf32>
    %c0_81 = arith.constant 0 : index
    %c0_82 = arith.constant 0 : index
    %276 = vector.load %arg7[%c0_81, %c0_82] : memref<1x2xf32, #tpu.memory_space<vmem>>, vector<1x2xf32>
    %277 = vector.broadcast %276 : vector<1x2xf32> to vector<16x2xf32>
    %278 = arith.addf %275, %277 : vector<16x2xf32>
    %c0_83 = arith.constant 0 : index
    %c0_84 = arith.constant 0 : index
    %279 = vector.load %arg8[%c0_83, %c0_84] : memref<16x2xf32, #tpu.memory_space<vmem>>, vector<16x2xf32>
    tpu.vector_store %arg8[%c0_83, %c0_84], %278 {strides = array<i32>} : memref<16x2xf32, #tpu.memory_space<vmem>>, vector<16x2xf32>,
    return
  }
  func.func @transform_0(%arg0: i32) -> (i32, i32, i32) {
    %c0_i32 = arith.constant 0 : i32
    %c0_i32_0 = arith.constant 0 : i32
    %c0_i32_1 = arith.constant 0 : i32
    %c0_i32_2 = arith.constant 0 : i32
    return %c0_i32, %c0_i32_0, %c0_i32_1 : i32, i32, i32
  }
  func.func @transform_1(%arg0: i32) -> (i32, i32) {
    %c0_i32 = arith.constant 0 : i32
    %c0_i32_0 = arith.constant 0 : i32
    %c0_i32_1 = arith.constant 0 : i32
    return %c0_i32, %c0_i32_0 : i32, i32
  }
  func.func @transform_2(%arg0: i32) -> (i32, i32) {
    %c0_i32 = arith.constant 0 : i32
    %c0_i32_0 = arith.constant 0 : i32
    %c0_i32_1 = arith.constant 0 : i32
    return %c0_i32, %c0_i32_0 : i32, i32
  }
  func.func @transform_3(%arg0: i32) -> (i32, i32) {
    %c0_i32 = arith.constant 0 : i32
    %c0_i32_0 = arith.constant 0 : i32
    %c0_i32_1 = arith.constant 0 : i32
    return %c0_i32, %c0_i32_0 : i32, i32
  }
  func.func @transform_4(%arg0: i32) -> (i32, i32) {
    %c0_i32 = arith.constant 0 : i32
    %c0_i32_0 = arith.constant 0 : i32
    %c0_i32_1 = arith.constant 0 : i32
    return %c0_i32, %c0_i32_0 : i32, i32
  }
  func.func @transform_5(%arg0: i32) -> (i32, i32) {
    %c0_i32 = arith.constant 0 : i32
    %c0_i32_0 = arith.constant 0 : i32
    %c0_i32_1 = arith.constant 0 : i32
    return %c0_i32, %c0_i32_0 : i32, i32
  }
  func.func @transform_6(%arg0: i32) -> (i32, i32) {
    %c0_i32 = arith.constant 0 : i32
    %c0_i32_0 = arith.constant 0 : i32
    %c0_i32_1 = arith.constant 0 : i32
    return %c0_i32, %c0_i32_0 : i32, i32
  }
  func.func @transform_7(%arg0: i32) -> (i32, i32) {
    %c0_i32 = arith.constant 0 : i32
    %c0_i32_0 = arith.constant 0 : i32
    %c0_i32_1 = arith.constant 0 : i32
    return %c0_i32, %c0_i32_0 : i32, i32
  }
}

</mosaic_0001>

<llo_original>
// kernel: tpu_custom_call.1
$region0: #{tpu_custom_call.1}
  #allocation0 [shape = 'u32[]', space=smem, size = 0x4, offset = 0x4, fixed_abs, tag = 'smem constant byte address 0x4 - core index']
  #allocation1 [shape = 'u32[144,128]{1,0:T(1,128)}', space=vmem, size = 0x12000, scoped, tag = 'internal scratch']
  #allocation2 [shape = 'f32[16,128]{1,0:T(8,128)}', space=vmem, size = 0x2000, scoped, tag = 'scratch operand']
  %s0 = inlined_call_operand.vmem [shape: f32[8,2,4], index: 0, kind: input, shape index: {}]
  %s1 = inlined_call_operand.vmem [shape: f32[4,384], index: 1, kind: input, shape index: {}]
  %s2 = inlined_call_operand.hbm [shape: f32[128,384], index: 2, kind: input, shape index: {}]
  %s3 = inlined_call_operand.vmem [shape: f32[1,384], index: 3, kind: input, shape index: {}]
  %s4 = inlined_call_operand.vmem [shape: f32[1,384], index: 4, kind: input, shape index: {}]
  %s5 = inlined_call_operand.vmem [shape: f32[128,2], index: 5, kind: input, shape index: {}]
  %s6 = inlined_call_operand.vmem [shape: f32[1,2], index: 6, kind: input, shape index: {}]
  %s7 = inlined_call_operand.vmem [shape: f32[16,2], index: 7, kind: output, shape index: {}]
  %s8 = sld [smem:[#allocation0]]
  $region42: #{tpu_custom_call.1} parent=0
    _
  %s10 = ssub.s32 1, %s8
  %s11 = scalar_select 0, %s10, %s8
  $region1: #{tpu_custom_call.1} parent=0
    #allocation3 [shape = 'u8[196608]{0}', space=vmem, size = 0x30000, scoped, tag = 'input window, operand 2, single buffered']
    #allocation4 [shape = 's32[1]{0}', space=sflag, size = 0x4, scoped, tag = 'scoped memory for tpu_custom_call.1']
    %12 = vsyncpa [#allocation4], 0
    // Predicated region
    $region2: #{tpu_custom_call.1} parent=1 // pred_check
      _
    $region3: #{tpu_custom_call.1} parent=1 // pred_check_branch
      %14 = sbr.rel (0) target = $region5
    $region4: #{tpu_custom_call.1} parent=1 // pred_region
      _
    $region5: #{tpu_custom_call.1} parent=1 // pred_fallthru
      _
    // Predicated region
    $region6: #{tpu_custom_call.1} parent=1 // pred_check
      _
    $region7: #{tpu_custom_call.1} parent=1 // pred_check_branch
      %16 = sbr.rel (0) target = $region9
    $region8: #{tpu_custom_call.1} parent=1 // pred_region
      _
    $region9: #{tpu_custom_call.1} parent=1 // pred_fallthru
      _
    // Predicated region
    $region10: #{tpu_custom_call.1} parent=1 // pred_check
      _
    $region11: #{tpu_custom_call.1} parent=1 // pred_check_branch
      %18 = sbr.rel (0) target = $region13
    $region12: #{tpu_custom_call.1} parent=1 // pred_region
      %s20 = ssub.s32 6144, 6144
      %21 = vsyncadd [#allocation4], %s20
      %s22 = sshll.u32 [#allocation3], 4
      %s23 = int_to_ptr.vmem [resolvable:$true] %s22
      %28 = dma.hbm_to_vmem [thread:$0]  %s2, 6144, %s23, [#allocation4], 384, 384, 24
    $region13: #{tpu_custom_call.1} parent=1 // pred_fallthru
      _
    // Predicated region
    $region14: #{tpu_custom_call.1} parent=1 // pred_check
      _
    $region15: #{tpu_custom_call.1} parent=1 // pred_check_branch
      %30 = sbr.rel (0) target = $region17
    $region16: #{tpu_custom_call.1} parent=1 // pred_region
      _
    $region17: #{tpu_custom_call.1} parent=1 // pred_fallthru
      _
    // Predicated region
    $region18: #{tpu_custom_call.1} parent=1 // pred_check
      _
    $region19: #{tpu_custom_call.1} parent=1 // pred_check_branch
      %32 = sbr.rel (0) target = $region21
    $region20: #{tpu_custom_call.1} parent=1 // pred_region
      _
    $region21: #{tpu_custom_call.1} parent=1 // pred_fallthru
      _
    // Predicated region
    $region22: #{tpu_custom_call.1} parent=1 // pred_check
      _
    $region23: #{tpu_custom_call.1} parent=1 // pred_check_branch
      %34 = sbr.rel (0) target = $region25
    $region24: #{tpu_custom_call.1} parent=1 // pred_region
      _
    $region25: #{tpu_custom_call.1} parent=1 // pred_fallthru
      _
    // Predicated region
    $region26: #{tpu_custom_call.1} parent=1 // pred_check
      _
    $region27: #{tpu_custom_call.1} parent=1 // pred_check_branch
      %36 = sbr.rel (0) target = $region29
    $region28: #{tpu_custom_call.1} parent=1 // pred_region
      _
    $region29: #{tpu_custom_call.1} parent=1 // pred_fallthru
      _
    // Predicated region
    $region30: #{tpu_custom_call.1} parent=1 // pred_check
      _
    $region31: #{tpu_custom_call.1} parent=1 // pred_check_branch
      %38 = sbr.rel (0) target = $region33
    $region32: #{tpu_custom_call.1} parent=1 // pred_region
      %39 = dma.done [#allocation4], 6144
    $region33: #{tpu_custom_call.1} parent=1 // pred_fallthru
      _
    %v40 = vld [vmem:[%s1] sm:$0xff]
    %v41 = vld [vmem:[%s1 + $0x8] sm:$0xf]
    %v42 = vld [vmem:[#allocation3] sm:$0xff]
    %v43 = vld [vmem:[#allocation3 + $0x8] sm:$0xff]
    %v44 = vld [vmem:[#allocation3 + $0x10] sm:$0xff]
    %v45 = vld [vmem:[#allocation3 + $0x18] sm:$0xff]
    %v46 = vld [vmem:[#allocation3 + $0x20] sm:$0xff]
    %v47 = vld [vmem:[#allocation3 + $0x28] sm:$0xff]
    %v48 = vld [vmem:[#allocation3 + $0x30] sm:$0xff]
    %v49 = vld [vmem:[#allocation3 + $0x38] sm:$0xff]
    %v50 = vld [vmem:[#allocation3 + $0x40] sm:$0xff]
    %v51 = vld [vmem:[#allocation3 + $0x48] sm:$0xff]
    %v52 = vld [vmem:[#allocation3 + $0x50] sm:$0xff]
    %v53 = vld [vmem:[#allocation3 + $0x58] sm:$0xff]
    %v54 = vld [vmem:[#allocation3 + $0x60] sm:$0xff]
    %v55 = vld [vmem:[#allocation3 + $0x68] sm:$0xff]
    %v56 = vld [vmem:[#allocation3 + $0x70] sm:$0xff]
    %v57 = vld [vmem:[#allocation3 + $0x78] sm:$0xff]
    %v58 = vld [vmem:[#allocation3 + $0x80] sm:$0xff]
    %v59 = vld [vmem:[#allocation3 + $0x88] sm:$0xff]
    %v60 = vld [vmem:[#allocation3 + $0x90] sm:$0xff]
    %v61 = vld [vmem:[#allocation3 + $0x98] sm:$0xff]
    %v62 = vld [vmem:[#allocation3 + $0xa0] sm:$0xff]
    %v63 = vld [vmem:[#allocation3 + $0xa8] sm:$0xff]
    %v64 = vld [vmem:[#allocation3 + $0xb0] sm:$0xff]
    %v65 = vld [vmem:[#allocation3 + $0xb8] sm:$0xff]
    %v66 = vld [vmem:[#allocation3 + $0xc0] sm:$0xff]
    %v67 = vld [vmem:[#allocation3 + $0xc8] sm:$0xff]
    %v68 = vld [vmem:[#allocation3 + $0xd0] sm:$0xff]
    %v69 = vld [vmem:[#allocation3 + $0xd8] sm:$0xff]
    %v70 = vld [vmem:[#allocation3 + $0xe0] sm:$0xff]
    %v71 = vld [vmem:[#allocation3 + $0xe8] sm:$0xff]
    %v72 = vld [vmem:[#allocation3 + $0xf0] sm:$0xff]
    %v73 = vld [vmem:[#allocation3 + $0xf8] sm:$0xff]
    %v74 = vld [vmem:[#allocation3 + $0x100] sm:$0xff]
    %v75 = vld [vmem:[#allocation3 + $0x108] sm:$0xff]
    %v76 = vld [vmem:[#allocation3 + $0x110] sm:$0xff]
    %v77 = vld [vmem:[#allocation3 + $0x118] sm:$0xff]
    %v78 = vld [vmem:[#allocation3 + $0x120] sm:$0xff]
    %v79 = vld [vmem:[#allocation3 + $0x128] sm:$0xff]
    %v80 = vld [vmem:[#allocation3 + $0x130] sm:$0xff]
    %v81 = vld [vmem:[#allocation3 + $0x138] sm:$0xff]
    %v82 = vld [vmem:[#allocation3 + $0x140] sm:$0xff]
    %v83 = vld [vmem:[#allocation3 + $0x148] sm:$0xff]
    %v84 = vld [vmem:[#allocation3 + $0x150] sm:$0xff]
    %v85 = vld [vmem:[#allocation3 + $0x158] sm:$0xff]
    %v86 = vld [vmem:[#allocation3 + $0x160] sm:$0xff]
    %v87 = vld [vmem:[#allocation3 + $0x168] sm:$0xff]
    %v88 = vld [vmem:[#allocation3 + $0x170] sm:$0xff]
    %v89 = vld [vmem:[#allocation3 + $0x178] sm:$0xff]
    %v90 = vld [vmem:[%s3] sm:$0x7]
    %v92 = vlaneseq
    %v93 = vshrl.u32 %v92, 7
    %v94 = vsub.s32 0, %v93
    %v95 = vrot.slane %v90, %v94
    %v96 = vlaneseq
    %v97 = vshrl.u32 %v96, 7
    %v98 = vsub.s32 1, %v97
    %v99 = vrot.slane %v90, %v98
    %v100 = vlaneseq
    %v101 = vshrl.u32 %v100, 7
    %v102 = vsub.s32 2, %v101
    %v103 = vrot.slane %v90, %v102
    %v107 = vld [vmem:[%s4] sm:$0x7]
    %v109 = vlaneseq
    %v110 = vshrl.u32 %v109, 7
    %v111 = vsub.s32 0, %v110
    %v112 = vrot.slane %v107, %v111
    %v113 = vlaneseq
    %v114 = vshrl.u32 %v113, 7
    %v115 = vsub.s32 1, %v114
    %v116 = vrot.slane %v107, %v115
    %v117 = vlaneseq
    %v118 = vshrl.u32 %v117, 7
    %v119 = vsub.s32 2, %v118
    %v120 = vrot.slane %v107, %v119
    %v124 = vld [vmem:[%s0] sm:$0x3]
    %v127 = vcombine.high %v40, %v40
    %vm128 = vcmask 31744
    %v130 = vsel %vm128, %v124, 0
    %vm132 = vcmask 1043456
    %v133 = vsel %vm132, %v40, 0
    %v135 = vsel %vm132, %v127, 0
    %v137 = vsel %vm132, %v41, 0
    %139 = vmatprep.subr.mxu0 0.0
    %140 = vmatpush1.msra.mxu0 0.0
    %141 = vmatprep.subr.mxu0 0.0
    %142 = vmatpush1.msra.mxu0 0.0
    %143 = vmatprep.subr.mxu0 0.0
    %144 = vmatpush1.msra.mxu0 0.0
    %145 = vmatprep.subr.mxu0 0.0
    %146 = vmatpush1.msra.mxu0 0.0
    %147 = vmatprep.subr.mxu0 0.0
    %148 = vmatpush1.msra.mxu0 0.0
    %149 = vmatprep.subr.mxu0 0.0
    %150 = vmatpush1.msra.mxu0 0.0
    %151 = vmatprep.subr.mxu0 0.0
    %152 = vmatpush1.msra.mxu0 0.0
    %153 = vmatprep.subr.mxu0 0.0
    %154 = vmatpush1.msra.mxu0 0.0
    %155 = vmatprep.subr.mxu0 0.0
    %156 = vmatpush1.msra.mxu0 0.0
    %157 = vmatprep.subr.mxu0 0.0
    %158 = vmatpush1.msra.mxu0 0.0
    %159 = vmatprep.subr.mxu0 0.0
    %160 = vmatpush1.msra.mxu0 0.0
    %161 = vmatprep.subr.mxu0 0.0
    %162 = vmatpush1.msra.mxu0 0.0
    %163 = vmatprep.subr.mxu0 0.0
    %164 = vmatpush1.msra.mxu0 0.0
    %165 = vmatprep.subr.mxu0 0.0
    %166 = vmatpush1.msra.mxu0 0.0
    %167 = vmatprep.subr.mxu0 0.0
    %168 = vmatpush1.msra.mxu0 0.0
    %169 = vmatprep.subr.mxu0 %v135
    %170 = vmatpush1.msra.mxu0 %v133
    %171 = vmatprep.subr.mxu0 0.0
    %172 = vmatpush2.msra.mxu0 0.0
    %173 = vmatprep.subr.mxu0 0.0
    %174 = vmatpush2.msra.mxu0 0.0
    %175 = vmatprep.subr.mxu0 0.0
    %176 = vmatpush2.msra.mxu0 0.0
    %177 = vmatprep.subr.mxu0 0.0
    %178 = vmatpush2.msra.mxu0 0.0
    %179 = vmatprep.subr.mxu0 0.0
    %180 = vmatpush2.msra.mxu0 0.0
    %181 = vmatprep.subr.mxu0 0.0
    %182 = vmatpush2.msra.mxu0 0.0
    %183 = vmatprep.subr.mxu0 0.0
    %184 = vmatpush2.msra.mxu0 0.0
    %185 = vmatprep.subr.mxu0 0.0
    %186 = vmatpush2.msra.mxu0 0.0
    %187 = vmatprep.subr.mxu0 0.0
    %188 = vmatpush2.msra.mxu0 0.0
    %189 = vmatprep.subr.mxu0 0.0
    %190 = vmatpush2.msra.mxu0 0.0
    %191 = vmatprep.subr.mxu0 0.0
    %192 = vmatpush2.msra.mxu0 0.0
    %193 = vmatprep.subr.mxu0 0.0
    %194 = vmatpush2.msra.mxu0 0.0
    %195 = vmatprep.subr.mxu0 0.0
    %196 = vmatpush2.msra.mxu0 0.0
    %197 = vmatprep.subr.mxu0 0.0
    %198 = vmatpush2.msra.mxu0 0.0
    %199 = vmatprep.subr.mxu0 0.0
    %200 = vmatpush2.msra.mxu0 0.0
    %201 = vmatprep.subr.mxu0 0.0
    %202 = vmatpush2.msra.mxu0 0.0
    %203 = vmatprep.mubr.f32.mxu0 0.0
    %204 = vmatmul.mubr.f32.gmra.mxu0 %v130
    %v205 = vpop.f32.mrf.mxu0
    %v206 = vadd.f32 %v95, %v205
    %v207 = vpop.f32.mrf.mxu0
    %v208 = vadd.f32 %v99, %v207
    %209 = vdwg.mxu0
    %210 = vmatprep.subr.mxu0 0.0
    %211 = vmatpush1.msra.mxu0 0.0
    %212 = vmatprep.subr.mxu0 0.0
    %213 = vmatpush1.msra.mxu0 0.0
    %214 = vmatprep.subr.mxu0 0.0
    %215 = vmatpush1.msra.mxu0 0.0
    %216 = vmatprep.subr.mxu0 0.0
    %217 = vmatpush1.msra.mxu0 0.0
    %218 = vmatprep.subr.mxu0 0.0
    %219 = vmatpush1.msra.mxu0 0.0
    %220 = vmatprep.subr.mxu0 0.0
    %221 = vmatpush1.msra.mxu0 0.0
    %222 = vmatprep.subr.mxu0 0.0
    %223 = vmatpush1.msra.mxu0 0.0
    %224 = vmatprep.subr.mxu0 0.0
    %225 = vmatpush1.msra.mxu0 0.0
    %226 = vmatprep.subr.mxu0 0.0
    %227 = vmatpush1.msra.mxu0 0.0
    %228 = vmatprep.subr.mxu0 0.0
    %229 = vmatpush1.msra.mxu0 0.0
    %230 = vmatprep.subr.mxu0 0.0
    %231 = vmatpush1.msra.mxu0 0.0
    %232 = vmatprep.subr.mxu0 0.0
    %233 = vmatpush1.msra.mxu0 0.0
    %234 = vmatprep.subr.mxu0 0.0
    %235 = vmatpush1.msra.mxu0 0.0
    %236 = vmatprep.subr.mxu0 0.0
    %237 = vmatpush1.msra.mxu0 0.0
    %238 = vmatprep.subr.mxu0 0.0
    %239 = vmatpush1.msra.mxu0 0.0
    %240 = vmatprep.subr.mxu0 0.0
    %241 = vmatpush1.msra.mxu0 %v137
    %242 = vmatprep.subr.mxu0 0.0
    %243 = vmatpush2.msra.mxu0 0.0
    %244 = vmatprep.subr.mxu0 0.0
    %245 = vmatpush2.msra.mxu0 0.0
    %246 = vmatprep.subr.mxu0 0.0
    %247 = vmatpush2.msra.mxu0 0.0
    %248 = vmatprep.subr.mxu0 0.0
    %249 = vmatpush2.msra.mxu0 0.0
    %250 = vmatprep.subr.mxu0 0.0
    %251 = vmatpush2.msra.mxu0 0.0
    %252 = vmatprep.subr.mxu0 0.0
    %253 = vmatpush2.msra.mxu0 0.0
    %254 = vmatprep.subr.mxu0 0.0
    %255 = vmatpush2.msra.mxu0 0.0
    %256 = vmatprep.subr.mxu0 0.0
    %257 = vmatpush2.msra.mxu0 0.0
    %258 = vmatprep.subr.mxu0 0.0
    %259 = vmatpush2.msra.mxu0 0.0
    %260 = vmatprep.subr.mxu0 0.0
    %261 = vmatpush2.msra.mxu0 0.0
    %262 = vmatprep.subr.mxu0 0.0
    %263 = vmatpush2.msra.mxu0 0.0
    %264 = vmatprep.subr.mxu0 0.0
    %265 = vmatpush2.msra.mxu0 0.0
    %266 = vmatprep.subr.mxu0 0.0
    %267 = vmatpush2.msra.mxu0 0.0
    %268 = vmatprep.subr.mxu0 0.0
    %269 = vmatpush2.msra.mxu0 0.0
    %270 = vmatprep.subr.mxu0 0.0
    %271 = vmatpush2.msra.mxu0 0.0
    %272 = vmatprep.subr.mxu0 0.0
    %273 = vmatpush2.msra.mxu0 0.0
    %274 = vmatprep.mubr.f32.mxu0 0.0
    %275 = vmatmul.mubr.f32.gmra.mxu0 %v130
    %v276 = vpop.f32.mrf.mxu0
    %v277 = vadd.f32 %v103, %v276
    %v278 = vpop.f32.mrf.mxu0
    %279 = vdwg.mxu0
    %280 = vmatprep.subr.mxu0 %v88
    %281 = vmatpush1.msra.mxu0 %v87
    %282 = vmatprep.subr.mxu0 %v85
    %283 = vmatpush1.msra.mxu0 %v84
    %284 = vmatprep.subr.mxu0 %v82
    %285 = vmatpush1.msra.mxu0 %v81
    %286 = vmatprep.subr.mxu0 %v79
    %287 = vmatpush1.msra.mxu0 %v78
    %288 = vmatprep.subr.mxu0 %v76
    %289 = vmatpush1.msra.mxu0 %v75
    %290 = vmatprep.subr.mxu0 %v73
    %291 = vmatpush1.msra.mxu0 %v72
    %292 = vmatprep.subr.mxu0 %v70
    %293 = vmatpush1.msra.mxu0 %v69
    %294 = vmatprep.subr.mxu0 %v67
    %295 = vmatpush1.msra.mxu0 %v66
    %296 = vmatprep.subr.mxu0 %v64
    %297 = vmatpush1.msra.mxu0 %v63
    %298 = vmatprep.subr.mxu0 %v61
    %299 = vmatpush1.msra.mxu0 %v60
    %300 = vmatprep.subr.mxu0 %v58
    %301 = vmatpush1.msra.mxu0 %v57
    %302 = vmatprep.subr.mxu0 %v55
    %303 = vmatpush1.msra.mxu0 %v54
    %304 = vmatprep.subr.mxu0 %v52
    %305 = vmatpush1.msra.mxu0 %v51
    %306 = vmatprep.subr.mxu0 %v49
    %307 = vmatpush1.msra.mxu0 %v48
    %308 = vmatprep.subr.mxu0 %v46
    %309 = vmatpush1.msra.mxu0 %v45
    %310 = vmatprep.subr.mxu0 %v43
    %311 = vmatpush1.msra.mxu0 %v42
    %312 = vmatprep.subr.mxu0 0.0
    %313 = vmatpush2.msra.mxu0 0.0
    %314 = vmatprep.subr.mxu0 0.0
    %315 = vmatpush2.msra.mxu0 0.0
    %316 = vmatprep.subr.mxu0 0.0
    %317 = vmatpush2.msra.mxu0 0.0
    %318 = vmatprep.subr.mxu0 0.0
    %319 = vmatpush2.msra.mxu0 0.0
    %320 = vmatprep.subr.mxu0 0.0
    %321 = vmatpush2.msra.mxu0 0.0
    %322 = vmatprep.subr.mxu0 0.0
    %323 = vmatpush2.msra.mxu0 0.0
    %324 = vmatprep.subr.mxu0 0.0
    %325 = vmatpush2.msra.mxu0 0.0
    %326 = vmatprep.subr.mxu0 0.0
    %327 = vmatpush2.msra.mxu0 0.0
    %328 = vmatprep.subr.mxu0 0.0
    %329 = vmatpush2.msra.mxu0 0.0
    %330 = vmatprep.subr.mxu0 0.0
    %331 = vmatpush2.msra.mxu0 0.0
    %332 = vmatprep.subr.mxu0 0.0
    %333 = vmatpush2.msra.mxu0 0.0
    %334 = vmatprep.subr.mxu0 0.0
    %335 = vmatpush2.msra.mxu0 0.0
    %336 = vmatprep.subr.mxu0 0.0
    %337 = vmatpush2.msra.mxu0 0.0
    %338 = vmatprep.subr.mxu0 0.0
    %339 = vmatpush2.msra.mxu0 0.0
    %340 = vmatprep.subr.mxu0 0.0
    %341 = vmatpush2.msra.mxu0 0.0
    %342 = vmatprep.subr.mxu0 0.0
    %343 = vmatpush2.msra.mxu0 0.0
    %344 = vmatprep.mubr.f32.mxu0 0.0
    %345 = vmatmul.mubr.f32.gmra.mxu0 0.0
    %v346 = vpop.f32.mrf.mxu0
    %v347 = vadd.f32 %v112, %v346
    %v348 = vpop.f32.mrf.mxu0
    %v349 = vadd.f32 %v116, %v348
    %350 = vdwg.mxu0
    %351 = vmatprep.subr.mxu0 0.0
    %352 = vmatpush1.msra.mxu0 %v89
    %353 = vmatprep.subr.mxu0 0.0
    %354 = vmatpush1.msra.mxu0 %v86
    %355 = vmatprep.subr.mxu0 0.0
    %356 = vmatpush1.msra.mxu0 %v83
    %357 = vmatprep.subr.mxu0 0.0
    %358 = vmatpush1.msra.mxu0 %v80
    %359 = vmatprep.subr.mxu0 0.0
    %360 = vmatpush1.msra.mxu0 %v77
    %361 = vmatprep.subr.mxu0 0.0
    %362 = vmatpush1.msra.mxu0 %v74
    %363 = vmatprep.subr.mxu0 0.0
    %364 = vmatpush1.msra.mxu0 %v71
    %365 = vmatprep.subr.mxu0 0.0
    %366 = vmatpush1.msra.mxu0 %v68
    %367 = vmatprep.subr.mxu0 0.0
    %368 = vmatpush1.msra.mxu0 %v65
    %369 = vmatprep.subr.mxu0 0.0
    %370 = vmatpush1.msra.mxu0 %v62
    %371 = vmatprep.subr.mxu0 0.0
    %372 = vmatpush1.msra.mxu0 %v59
    %373 = vmatprep.subr.mxu0 0.0
    %374 = vmatpush1.msra.mxu0 %v56
    %375 = vmatprep.subr.mxu0 0.0
    %376 = vmatpush1.msra.mxu0 %v53
    %377 = vmatprep.subr.mxu0 0.0
    %378 = vmatpush1.msra.mxu0 %v50
    %379 = vmatprep.subr.mxu0 0.0
    %380 = vmatpush1.msra.mxu0 %v47
    %381 = vmatprep.subr.mxu0 0.0
    %382 = vmatpush1.msra.mxu0 %v44
    %383 = vmatprep.subr.mxu0 0.0
    %384 = vmatpush2.msra.mxu0 0.0
    %385 = vmatprep.subr.mxu0 0.0
    %386 = vmatpush2.msra.mxu0 0.0
    %387 = vmatprep.subr.mxu0 0.0
    %388 = vmatpush2.msra.mxu0 0.0
    %389 = vmatprep.subr.mxu0 0.0
    %390 = vmatpush2.msra.mxu0 0.0
    %391 = vmatprep.subr.mxu0 0.0
    %392 = vmatpush2.msra.mxu0 0.0
    %393 = vmatprep.subr.mxu0 0.0
    %394 = vmatpush2.msra.mxu0 0.0
    %395 = vmatprep.subr.mxu0 0.0
    %396 = vmatpush2.msra.mxu0 0.0
    %397 = vmatprep.subr.mxu0 0.0
    %398 = vmatpush2.msra.mxu0 0.0
    %399 = vmatprep.subr.mxu0 0.0
    %400 = vmatpush2.msra.mxu0 0.0
    %401 = vmatprep.subr.mxu0 0.0
    %402 = vmatpush2.msra.mxu0 0.0
    %403 = vmatprep.subr.mxu0 0.0
    %404 = vmatpush2.msra.mxu0 0.0
    %405 = vmatprep.subr.mxu0 0.0
    %406 = vmatpush2.msra.mxu0 0.0
    %407 = vmatprep.subr.mxu0 0.0
    %408 = vmatpush2.msra.mxu0 0.0
    %409 = vmatprep.subr.mxu0 0.0
    %410 = vmatpush2.msra.mxu0 0.0
    %411 = vmatprep.subr.mxu0 0.0
    %412 = vmatpush2.msra.mxu0 0.0
    %413 = vmatprep.subr.mxu0 0.0
    %414 = vmatpush2.msra.mxu0 0.0
    %415 = vmatprep.mubr.f32.mxu0 0.0
    %416 = vmatmul.mubr.f32.gmra.mxu0 0.0
    %v417 = vpop.f32.mrf.mxu0
    %v418 = vadd.f32 %v120, %v417
    %v419 = vpop.f32.mrf.mxu0
    %420 = vdwg.mxu0
    %v421 = vadd.f32 %v206, %v347
    %v422 = vxor.u32 %v421, 2147483648
    %v423 = vmul.f32 %v422, 1.442695
    %v424 = vpow.pop %v423
    %v425 = vadd.f32 %v424, 1.0
    %v426 = vrcp.pop %v425
    %v427 = vmul.f32 1.0, %v426
    %v428 = vadd.f32 %v208, %v349
    %v429 = vxor.u32 %v428, 2147483648
    %v430 = vmul.f32 %v429, 1.442695
    %v431 = vpow.pop %v430
    %v432 = vadd.f32 %v431, 1.0
    %v433 = vrcp.pop %v432
    %v434 = vmul.f32 1.0, %v433
    %v435 = vmul.f32 %v427, %v418
    %v436 = vadd.f32 %v277, %v435
    %v437 = vtanh.pop %v436
    %v438 = vsub.f32 1.0, %v434
    %v439 = vmul.f32 %v438, %v437
    %v440 = vmul.f32 %v434, 0.0
    %v441 = vadd.f32 %v439, %v440
    %442 = vst [vmem:[#allocation2] sm:$0x3] %v441
    %s443 = scalar_lea.vmem %s0, 2
    %v444 = vld [vmem:[%s443] sm:$0x3]
    %v446 = vsel %vm128, %v444, 0
    %448 = vmatprep.subr.mxu0 0.0
    %449 = vmatpush1.msra.mxu0 0.0
    %450 = vmatprep.subr.mxu0 0.0
    %451 = vmatpush1.msra.mxu0 0.0
    %452 = vmatprep.subr.mxu0 0.0
    %453 = vmatpush1.msra.mxu0 0.0
    %454 = vmatprep.subr.mxu0 0.0
    %455 = vmatpush1.msra.mxu0 0.0
    %456 = vmatprep.subr.mxu0 0.0
    %457 = vmatpush1.msra.mxu0 0.0
    %458 = vmatprep.subr.mxu0 0.0
    %459 = vmatpush1.msra.mxu0 0.0
    %460 = vmatprep.subr.mxu0 0.0
    %461 = vmatpush1.msra.mxu0 0.0
    %462 = vmatprep.subr.mxu0 0.0
    %463 = vmatpush1.msra.mxu0 0.0
    %464 = vmatprep.subr.mxu0 0.0
    %465 = vmatpush1.msra.mxu0 0.0
    %466 = vmatprep.subr.mxu0 0.0
    %467 = vmatpush1.msra.mxu0 0.0
    %468 = vmatprep.subr.mxu0 0.0
    %469 = vmatpush1.msra.mxu0 0.0
    %470 = vmatprep.subr.mxu0 0.0
    %471 = vmatpush1.msra.mxu0 0.0
    %472 = vmatprep.subr.mxu0 0.0
    %473 = vmatpush1.msra.mxu0 0.0
    %474 = vmatprep.subr.mxu0 0.0
    %475 = vmatpush1.msra.mxu0 0.0
    %476 = vmatprep.subr.mxu0 0.0
    %477 = vmatpush1.msra.mxu0 0.0
    %478 = vmatprep.subr.mxu0 %v135
    %479 = vmatpush1.msra.mxu0 %v133
    %480 = vmatprep.subr.mxu0 0.0
    %481 = vmatpush2.msra.mxu0 0.0
    %482 = vmatprep.subr.mxu0 0.0
    %483 = vmatpush2.msra.mxu0 0.0
    %484 = vmatprep.subr.mxu0 0.0
    %485 = vmatpush2.msra.mxu0 0.0
    %486 = vmatprep.subr.mxu0 0.0
    %487 = vmatpush2.msra.mxu0 0.0
    %488 = vmatprep.subr.mxu0 0.0
    %489 = vmatpush2.msra.mxu0 0.0
    %490 = vmatprep.subr.mxu0 0.0
    %491 = vmatpush2.msra.mxu0 0.0
    %492 = vmatprep.subr.mxu0 0.0
    %493 = vmatpush2.msra.mxu0 0.0
    %494 = vmatprep.subr.mxu0 0.0
    %495 = vmatpush2.msra.mxu0 0.0
    %496 = vmatprep.subr.mxu0 0.0
    %497 = vmatpush2.msra.mxu0 0.0
    %498 = vmatprep.subr.mxu0 0.0
    %499 = vmatpush2.msra.mxu0 0.0
    %500 = vmatprep.subr.mxu0 0.0
    %501 = vmatpush2.msra.mxu0 0.0
    %502 = vmatprep.subr.mxu0 0.0
    %503 = vmatpush2.msra.mxu0 0.0
    %504 = vmatprep.subr.mxu0 0.0
    %505 = vmatpush2.msra.mxu0 0.0
    %506 = vmatprep.subr.mxu0 0.0
    %507 = vmatpush2.msra.mxu0 0.0
    %508 = vmatprep.subr.mxu0 0.0
    %509 = vmatpush2.msra.mxu0 0.0
    %510 = vmatprep.subr.mxu0 0.0
    %511 = vmatpush2.msra.mxu0 0.0
    %512 = vmatprep.mubr.f32.mxu0 0.0
    %513 = vmatmul.mubr.f32.gmra.mxu0 %v446
    %v514 = vpop.f32.mrf.mxu0
    %v515 = vadd.f32 %v95, %v514
    %v516 = vpop.f32.mrf.mxu0
    %v517 = vadd.f32 %v99, %v516
    %518 = vdwg.mxu0
    %519 = vmatprep.subr.mxu0 0.0
    %520 = vmatpush1.msra.mxu0 0.0
    %521 = vmatprep.subr.mxu0 0.0
    %522 = vmatpush1.msra.mxu0 0.0
    %523 = vmatprep.subr.mxu0 0.0
    %524 = vmatpush1.msra.mxu0 0.0
    %525 = vmatprep.subr.mxu0 0.0
    %526 = vmatpush1.msra.mxu0 0.0
    %527 = vmatprep.subr.mxu0 0.0
    %528 = vmatpush1.msra.mxu0 0.0
    %529 = vmatprep.subr.mxu0 0.0
    %530 = vmatpush1.msra.mxu0 0.0
    %531 = vmatprep.subr.mxu0 0.0
    %532 = vmatpush1.msra.mxu0 0.0
    %533 = vmatprep.subr.mxu0 0.0
    %534 = vmatpush1.msra.mxu0 0.0
    %535 = vmatprep.subr.mxu0 0.0
    %536 = vmatpush1.msra.mxu0 0.0
    %537 = vmatprep.subr.mxu0 0.0
    %538 = vmatpush1.msra.mxu0 0.0
    %539 = vmatprep.subr.mxu0 0.0
    %540 = vmatpush1.msra.mxu0 0.0
    %541 = vmatprep.subr.mxu0 0.0
    %542 = vmatpush1.msra.mxu0 0.0
    %543 = vmatprep.subr.mxu0 0.0
    %544 = vmatpush1.msra.mxu0 0.0
    %545 = vmatprep.subr.mxu0 0.0
    %546 = vmatpush1.msra.mxu0 0.0
    %547 = vmatprep.subr.mxu0 0.0
    %548 = vmatpush1.msra.mxu0 0.0
    %549 = vmatprep.subr.mxu0 0.0
    %550 = vmatpush1.msra.mxu0 %v137
    %551 = vmatprep.subr.mxu0 0.0
    %552 = vmatpush2.msra.mxu0 0.0
    %553 = vmatprep.subr.mxu0 0.0
    %554 = vmatpush2.msra.mxu0 0.0
    %555 = vmatprep.subr.mxu0 0.0
    %556 = vmatpush2.msra.mxu0 0.0
    %557 = vmatprep.subr.mxu0 0.0
    %558 = vmatpush2.msra.mxu0 0.0
    %559 = vmatprep.subr.mxu0 0.0
    %560 = vmatpush2.msra.mxu0 0.0
    %561 = vmatprep.subr.mxu0 0.0
    %562 = vmatpush2.msra.mxu0 0.0
    %563 = vmatprep.subr.mxu0 0.0
    %564 = vmatpush2.msra.mxu0 0.0
    %565 = vmatprep.subr.mxu0 0.0
    %566 = vmatpush2.msra.mxu0 0.0
    %567 = vmatprep.subr.mxu0 0.0
    %568 = vmatpush2.msra.mxu0 0.0
    %569 = vmatprep.subr.mxu0 0.0
    %570 = vmatpush2.msra.mxu0 0.0
    %571 = vmatprep.subr.mxu0 0.0
    %572 = vmatpush2.msra.mxu0 0.0
    %573 = vmatprep.subr.mxu0 0.0
    %574 = vmatpush2.msra.mxu0 0.0
    %575 = vmatprep.subr.mxu0 0.0
    %576 = vmatpush2.msra.mxu0 0.0
    %577 = vmatprep.subr.mxu0 0.0
    %578 = vmatpush2.msra.mxu0 0.0
    %579 = vmatprep.subr.mxu0 0.0
    %580 = vmatpush2.msra.mxu0 0.0
    %581 = vmatprep.subr.mxu0 0.0
    %582 = vmatpush2.msra.mxu0 0.0
    %583 = vmatprep.mubr.f32.mxu0 0.0
    %584 = vmatmul.mubr.f32.gmra.mxu0 %v446
    %v585 = vpop.f32.mrf.mxu0
    %v586 = vadd.f32 %v103, %v585
    %v587 = vpop.f32.mrf.mxu0
    %588 = vdwg.mxu0
    %589 = vmatprep.subr.mxu0 %v88
    %590 = vmatpush1.msra.mxu0 %v87
    %591 = vmatprep.subr.mxu0 %v85
    %592 = vmatpush1.msra.mxu0 %v84
    %593 = vmatprep.subr.mxu0 %v82
    %594 = vmatpush1.msra.mxu0 %v81
    %595 = vmatprep.subr.mxu0 %v79
    %596 = vmatpush1.msra.mxu0 %v78
    %597 = vmatprep.subr.mxu0 %v76
    %598 = vmatpush1.msra.mxu0 %v75
    %599 = vmatprep.subr.mxu0 %v73
    %600 = vmatpush1.msra.mxu0 %v72
    %601 = vmatprep.subr.mxu0 %v70
    %602 = vmatpush1.msra.mxu0 %v69
    %603 = vmatprep.subr.mxu0 %v67
    %604 = vmatpush1.msra.mxu0 %v66
    %605 = vmatprep.subr.mxu0 %v64
    %606 = vmatpush1.msra.mxu0 %v63
    %607 = vmatprep.subr.mxu0 %v61
    %608 = vmatpush1.msra.mxu0 %v60
    %609 = vmatprep.subr.mxu0 %v58
    %610 = vmatpush1.msra.mxu0 %v57
    %611 = vmatprep.subr.mxu0 %v55
    %612 = vmatpush1.msra.mxu0 %v54
    %613 = vmatprep.subr.mxu0 %v52
    %614 = vmatpush1.msra.mxu0 %v51
    %615 = vmatprep.subr.mxu0 %v49
    %616 = vmatpush1.msra.mxu0 %v48
    %617 = vmatprep.subr.mxu0 %v46
    %618 = vmatpush1.msra.mxu0 %v45
    %619 = vmatprep.subr.mxu0 %v43
    %620 = vmatpush1.msra.mxu0 %v42
    %621 = vmatprep.subr.mxu0 0.0
    %622 = vmatpush2.msra.mxu0 0.0
    %623 = vmatprep.subr.mxu0 0.0
    %624 = vmatpush2.msra.mxu0 0.0
    %625 = vmatprep.subr.mxu0 0.0
    %626 = vmatpush2.msra.mxu0 0.0
    %627 = vmatprep.subr.mxu0 0.0
    %628 = vmatpush2.msra.mxu0 0.0
    %629 = vmatprep.subr.mxu0 0.0
    %630 = vmatpush2.msra.mxu0 0.0
    %631 = vmatprep.subr.mxu0 0.0
    %632 = vmatpush2.msra.mxu0 0.0
    %633 = vmatprep.subr.mxu0 0.0
    %634 = vmatpush2.msra.mxu0 0.0
    %635 = vmatprep.subr.mxu0 0.0
    %636 = vmatpush2.msra.mxu0 0.0
    %637 = vmatprep.subr.mxu0 0.0
    %638 = vmatpush2.msra.mxu0 0.0
    %639 = vmatprep.subr.mxu0 0.0
    %640 = vmatpush2.msra.mxu0 0.0
    %641 = vmatprep.subr.mxu0 0.0
    %642 = vmatpush2.msra.mxu0 0.0
    %643 = vmatprep.subr.mxu0 0.0
    %644 = vmatpush2.msra.mxu0 0.0
    %645 = vmatprep.subr.mxu0 0.0
    %646 = vmatpush2.msra.mxu0 0.0
    %647 = vmatprep.subr.mxu0 0.0
    %648 = vmatpush2.msra.mxu0 0.0
    %649 = vmatprep.subr.mxu0 0.0
    %650 = vmatpush2.msra.mxu0 0.0
    %651 = vmatprep.subr.mxu0 0.0
    %652 = vmatpush2.msra.mxu0 0.0
    %653 = vmatprep.mubr.f32.mxu0 0.0
    %654 = vmatmul.mubr.f32.gmra.mxu0 %v441
    %v655 = vpop.f32.mrf.mxu0
    %v656 = vadd.f32 %v112, %v655
    %v657 = vpop.f32.mrf.mxu0
    %v658 = vadd.f32 %v116, %v657
    %659 = vdwg.mxu0
    %660 = vmatprep.subr.mxu0 0.0
    %661 = vmatpush1.msra.mxu0 %v89
    %662 = vmatprep.subr.mxu0 0.0
    %663 = vmatpush1.msra.mxu0 %v86
    %664 = vmatprep.subr.mxu0 0.0
    %665 = vmatpush1.msra.mxu0 %v83
    %666 = vmatprep.subr.mxu0 0.0
    %667 = vmatpush1.msra.mxu0 %v80
    %668 = vmatprep.subr.mxu0 0.0
    %669 = vmatpush1.msra.mxu0 %v77
    %670 = vmatprep.subr.mxu0 0.0
    %671 = vmatpush1.msra.mxu0 %v74
    %672 = vmatprep.subr.mxu0 0.0
    %673 = vmatpush1.msra.mxu0 %v71
    %674 = vmatprep.subr.mxu0 0.0
    %675 = vmatpush1.msra.mxu0 %v68
    %676 = vmatprep.subr.mxu0 0.0
    %677 = vmatpush1.msra.mxu0 %v65
    %678 = vmatprep.subr.mxu0 0.0
    %679 = vmatpush1.msra.mxu0 %v62
    %680 = vmatprep.subr.mxu0 0.0
    %681 = vmatpush1.msra.mxu0 %v59
    %682 = vmatprep.subr.mxu0 0.0
    %683 = vmatpush1.msra.mxu0 %v56
    %684 = vmatprep.subr.mxu0 0.0
    %685 = vmatpush1.msra.mxu0 %v53
    %686 = vmatprep.subr.mxu0 0.0
    %687 = vmatpush1.msra.mxu0 %v50
    %688 = vmatprep.subr.mxu0 0.0
    %689 = vmatpush1.msra.mxu0 %v47
    %690 = vmatprep.subr.mxu0 0.0
    %691 = vmatpush1.msra.mxu0 %v44
    %692 = vmatprep.subr.mxu0 0.0
    %693 = vmatpush2.msra.mxu0 0.0
    %694 = vmatprep.subr.mxu0 0.0
    %695 = vmatpush2.msra.mxu0 0.0
    %696 = vmatprep.subr.mxu0 0.0
    %697 = vmatpush2.msra.mxu0 0.0
    %698 = vmatprep.subr.mxu0 0.0
    %699 = vmatpush2.msra.mxu0 0.0
    %700 = vmatprep.subr.mxu0 0.0
    %701 = vmatpush2.msra.mxu0 0.0
    %702 = vmatprep.subr.mxu0 0.0
    %703 = vmatpush2.msra.mxu0 0.0
    %704 = vmatprep.subr.mxu0 0.0
    %705 = vmatpush2.msra.mxu0 0.0
    %706 = vmatprep.subr.mxu0 0.0
    %707 = vmatpush2.msra.mxu0 0.0
    %708 = vmatprep.subr.mxu0 0.0
    %709 = vmatpush2.msra.mxu0 0.0
    %710 = vmatprep.subr.mxu0 0.0
    %711 = vmatpush2.msra.mxu0 0.0
    %712 = vmatprep.subr.mxu0 0.0
    %713 = vmatpush2.msra.mxu0 0.0
    %714 = vmatprep.subr.mxu0 0.0
    %715 = vmatpush2.msra.mxu0 0.0
    %716 = vmatprep.subr.mxu0 0.0
    %717 = vmatpush2.msra.mxu0 0.0
    %718 = vmatprep.subr.mxu0 0.0
    %719 = vmatpush2.msra.mxu0 0.0
    %720 = vmatprep.subr.mxu0 0.0
    %721 = vmatpush2.msra.mxu0 0.0
    %722 = vmatprep.subr.mxu0 0.0
    %723 = vmatpush2.msra.mxu0 0.0
    %724 = vmatprep.mubr.f32.mxu0 0.0
    %725 = vmatmul.mubr.f32.gmra.mxu0 %v441
    %v726 = vpop.f32.mrf.mxu0
    %v727 = vadd.f32 %v120, %v726
    %v728 = vpop.f32.mrf.mxu0
    %729 = vdwg.mxu0
    %v730 = vadd.f32 %v515, %v656
    %v731 = vxor.u32 %v730, 2147483648
    %v732 = vmul.f32 %v731, 1.442695
    %v733 = vpow.pop %v732
    %v734 = vadd.f32 %v733, 1.0
    %v735 = vrcp.pop %v734
    %v736 = vmul.f32 1.0, %v735
    %v737 = vadd.f32 %v517, %v658
    %v738 = vxor.u32 %v737, 2147483648
    %v739 = vmul.f32 %v738, 1.442695
    %v740 = vpow.pop %v739
    %v741 = vadd.f32 %v740, 1.0
    %v742 = vrcp.pop %v741
    %v743 = vmul.f32 1.0, %v742
    %v744 = vmul.f32 %v736, %v727
    %v745 = vadd.f32 %v586, %v744
    %v746 = vtanh.pop %v745
    %v747 = vsub.f32 1.0, %v743
    %v748 = vmul.f32 %v747, %v746
    %v749 = vmul.f32 %v743, %v441
    %v750 = vadd.f32 %v748, %v749
    %751 = vst [vmem:[#allocation2 + $0x2] sm:$0x3] %v750
    %s752 = scalar_lea.vmem %s0, 4
    %v753 = vld [vmem:[%s752] sm:$0x3]
    %v755 = vsel %vm128, %v753, 0
    %757 = vmatprep.subr.mxu0 0.0
    %758 = vmatpush1.msra.mxu0 0.0
    %759 = vmatprep.subr.mxu0 0.0
    %760 = vmatpush1.msra.mxu0 0.0
    %761 = vmatprep.subr.mxu0 0.0
    %762 = vmatpush1.msra.mxu0 0.0
    %763 = vmatprep.subr.mxu0 0.0
    %764 = vmatpush1.msra.mxu0 0.0
    %765 = vmatprep.subr.mxu0 0.0
    %766 = vmatpush1.msra.mxu0 0.0
    %767 = vmatprep.subr.mxu0 0.0
    %768 = vmatpush1.msra.mxu0 0.0
    %769 = vmatprep.subr.mxu0 0.0
    %770 = vmatpush1.msra.mxu0 0.0
    %771 = vmatprep.subr.mxu0 0.0
    %772 = vmatpush1.msra.mxu0 0.0
    %773 = vmatprep.subr.mxu0 0.0
    %774 = vmatpush1.msra.mxu0 0.0
    %775 = vmatprep.subr.mxu0 0.0
    %776 = vmatpush1.msra.mxu0 0.0
    %777 = vmatprep.subr.mxu0 0.0
    %778 = vmatpush1.msra.mxu0 0.0
    %779 = vmatprep.subr.mxu0 0.0
    %780 = vmatpush1.msra.mxu0 0.0
    %781 = vmatprep.subr.mxu0 0.0
    %782 = vmatpush1.msra.mxu0 0.0
    %783 = vmatprep.subr.mxu0 0.0
    %784 = vmatpush1.msra.mxu0 0.0
    %785 = vmatprep.subr.mxu0 0.0
    %786 = vmatpush1.msra.mxu0 0.0
    %787 = vmatprep.subr.mxu0 %v135
    %788 = vmatpush1.msra.mxu0 %v133
    %789 = vmatprep.subr.mxu0 0.0
    %790 = vmatpush2.msra.mxu0 0.0
    %791 = vmatprep.subr.mxu0 0.0
    %792 = vmatpush2.msra.mxu0 0.0
    %793 = vmatprep.subr.mxu0 0.0
    %794 = vmatpush2.msra.mxu0 0.0
    %795 = vmatprep.subr.mxu0 0.0
    %796 = vmatpush2.msra.mxu0 0.0
    %797 = vmatprep.subr.mxu0 0.0
    %798 = vmatpush2.msra.mxu0 0.0
    %799 = vmatprep.subr.mxu0 0.0
    %800 = vmatpush2.msra.mxu0 0.0
    %801 = vmatprep.subr.mxu0 0.0
    %802 = vmatpush2.msra.mxu0 0.0
    %803 = vmatprep.subr.mxu0 0.0
    %804 = vmatpush2.msra.mxu0 0.0
    %805 = vmatprep.subr.mxu0 0.0
    %806 = vmatpush2.msra.mxu0 0.0
    %807 = vmatprep.subr.mxu0 0.0
    %808 = vmatpush2.msra.mxu0 0.0
    %809 = vmatprep.subr.mxu0 0.0
    %810 = vmatpush2.msra.mxu0 0.0
    %811 = vmatprep.subr.mxu0 0.0
    %812 = vmatpush2.msra.mxu0 0.0
    %813 = vmatprep.subr.mxu0 0.0
    %814 = vmatpush2.msra.mxu0 0.0
    %815 = vmatprep.subr.mxu0 0.0
    %816 = vmatpush2.msra.mxu0 0.0
    %817 = vmatprep.subr.mxu0 0.0
    %818 = vmatpush2.msra.mxu0 0.0
    %819 = vmatprep.subr.mxu0 0.0
    %820 = vmatpush2.msra.mxu0 0.0
    %821 = vmatprep.mubr.f32.mxu0 0.0
    %822 = vmatmul.mubr.f32.gmra.mxu0 %v755
    %v823 = vpop.f32.mrf.mxu0
    %v824 = vadd.f32 %v95, %v823
    %v825 = vpop.f32.mrf.mxu0
    %v826 = vadd.f32 %v99, %v825
    %827 = vdwg.mxu0
    %828 = vmatprep.subr.mxu0 0.0
    %829 = vmatpush1.msra.mxu0 0.0
    %830 = vmatprep.subr.mxu0 0.0
    %831 = vmatpush1.msra.mxu0 0.0
    %832 = vmatprep.subr.mxu0 0.0
    %833 = vmatpush1.msra.mxu0 0.0
    %834 = vmatprep.subr.mxu0 0.0
    %835 = vmatpush1.msra.mxu0 0.0
    %836 = vmatprep.subr.mxu0 0.0
    %837 = vmatpush1.msra.mxu0 0.0
    %838 = vmatprep.subr.mxu0 0.0
    %839 = vmatpush1.msra.mxu0 0.0
    %840 = vmatprep.subr.mxu0 0.0
    %841 = vmatpush1.msra.mxu0 0.0
    %842 = vmatprep.subr.mxu0 0.0
    %843 = vmatpush1.msra.mxu0 0.0
    %844 = vmatprep.subr.mxu0 0.0
    %845 = vmatpush1.msra.mxu0 0.0
    %846 = vmatprep.subr.mxu0 0.0
    %847 = vmatpush1.msra.mxu0 0.0
    %848 = vmatprep.subr.mxu0 0.0
    %849 = vmatpush1.msra.mxu0 0.0
    %850 = vmatprep.subr.mxu0 0.0
    %851 = vmatpush1.msra.mxu0 0.0
    %852 = vmatprep.subr.mxu0 0.0
    %853 = vmatpush1.msra.mxu0 0.0
    %854 = vmatprep.subr.mxu0 0.0
    %855 = vmatpush1.msra.mxu0 0.0
    %856 = vmatprep.subr.mxu0 0.0
    %857 = vmatpush1.msra.mxu0 0.0
    %858 = vmatprep.subr.mxu0 0.0
    %859 = vmatpush1.msra.mxu0 %v137
    %860 = vmatprep.subr.mxu0 0.0
    %861 = vmatpush2.msra.mxu0 0.0
    %862 = vmatprep.subr.mxu0 0.0
    %863 = vmatpush2.msra.mxu0 0.0
    %864 = vmatprep.subr.mxu0 0.0
    %865 = vmatpush2.msra.mxu0 0.0
    %866 = vmatprep.subr.mxu0 0.0
    %867 = vmatpush2.msra.mxu0 0.0
    %868 = vmatprep.subr.mxu0 0.0
    %869 = vmatpush2.msra.mxu0 0.0
    %870 = vmatprep.subr.mxu0 0.0
    %871 = vmatpush2.msra.mxu0 0.0
    %872 = vmatprep.subr.mxu0 0.0
    %873 = vmatpush2.msra.mxu0 0.0
    %874 = vmatprep.subr.mxu0 0.0
    %875 = vmatpush2.msra.mxu0 0.0
    %876 = vmatprep.subr.mxu0 0.0
    %877 = vmatpush2.msra.mxu0 0.0
    %878 = vmatprep.subr.mxu0 0.0
    %879 = vmatpush2.msra.mxu0 0.0
    %880 = vmatprep.subr.mxu0 0.0
    %881 = vmatpush2.msra.mxu0 0.0
    %882 = vmatprep.subr.mxu0 0.0
    %883 = vmatpush2.msra.mxu0 0.0
    %884 = vmatprep.subr.mxu0 0.0
    %885 = vmatpush2.msra.mxu0 0.0
    %886 = vmatprep.subr.mxu0 0.0
    %887 = vmatpush2.msra.mxu0 0.0
    %888 = vmatprep.subr.mxu0 0.0
    %889 = vmatpush2.msra.mxu0 0.0
    %890 = vmatprep.subr.mxu0 0.0
    %891 = vmatpush2.msra.mxu0 0.0
    %892 = vmatprep.mubr.f32.mxu0 0.0
    %893 = vmatmul.mubr.f32.gmra.mxu0 %v755
    %v894 = vpop.f32.mrf.mxu0
    %v895 = vadd.f32 %v103, %v894
    %v896 = vpop.f32.mrf.mxu0
    %897 = vdwg.mxu0
    %898 = vmatprep.subr.mxu0 %v88
    %899 = vmatpush1.msra.mxu0 %v87
    %900 = vmatprep.subr.mxu0 %v85
    %901 = vmatpush1.msra.mxu0 %v84
    %902 = vmatprep.subr.mxu0 %v82
    %903 = vmatpush1.msra.mxu0 %v81
    %904 = vmatprep.subr.mxu0 %v79
    %905 = vmatpush1.msra.mxu0 %v78
    %906 = vmatprep.subr.mxu0 %v76
    %907 = vmatpush1.msra.mxu0 %v75
    %908 = vmatprep.subr.mxu0 %v73
    %909 = vmatpush1.msra.mxu0 %v72
    %910 = vmatprep.subr.mxu0 %v70
    %911 = vmatpush1.msra.mxu0 %v69
    %912 = vmatprep.subr.mxu0 %v67
    %913 = vmatpush1.msra.mxu0 %v66
    %914 = vmatprep.subr.mxu0 %v64
    %915 = vmatpush1.msra.mxu0 %v63
    %916 = vmatprep.subr.mxu0 %v61
    %917 = vmatpush1.msra.mxu0 %v60
    %918 = vmatprep.subr.mxu0 %v58
    %919 = vmatpush1.msra.mxu0 %v57
    %920 = vmatprep.subr.mxu0 %v55
    %921 = vmatpush1.msra.mxu0 %v54
    %922 = vmatprep.subr.mxu0 %v52
    %923 = vmatpush1.msra.mxu0 %v51
    %924 = vmatprep.subr.mxu0 %v49
    %925 = vmatpush1.msra.mxu0 %v48
    %926 = vmatprep.subr.mxu0 %v46
    %927 = vmatpush1.msra.mxu0 %v45
    %928 = vmatprep.subr.mxu0 %v43
    %929 = vmatpush1.msra.mxu0 %v42
    %930 = vmatprep.subr.mxu0 0.0
    %931 = vmatpush2.msra.mxu0 0.0
    %932 = vmatprep.subr.mxu0 0.0
    %933 = vmatpush2.msra.mxu0 0.0
    %934 = vmatprep.subr.mxu0 0.0
    %935 = vmatpush2.msra.mxu0 0.0
    %936 = vmatprep.subr.mxu0 0.0
    %937 = vmatpush2.msra.mxu0 0.0
    %938 = vmatprep.subr.mxu0 0.0
    %939 = vmatpush2.msra.mxu0 0.0
    %940 = vmatprep.subr.mxu0 0.0
    %941 = vmatpush2.msra.mxu0 0.0
    %942 = vmatprep.subr.mxu0 0.0
    %943 = vmatpush2.msra.mxu0 0.0
    %944 = vmatprep.subr.mxu0 0.0
    %945 = vmatpush2.msra.mxu0 0.0
    %946 = vmatprep.subr.mxu0 0.0
    %947 = vmatpush2.msra.mxu0 0.0
    %948 = vmatprep.subr.mxu0 0.0
    %949 = vmatpush2.msra.mxu0 0.0
    %950 = vmatprep.subr.mxu0 0.0
    %951 = vmatpush2.msra.mxu0 0.0
    %952 = vmatprep.subr.mxu0 0.0
    %953 = vmatpush2.msra.mxu0 0.0
    %954 = vmatprep.subr.mxu0 0.0
    %955 = vmatpush2.msra.mxu0 0.0
    %956 = vmatprep.subr.mxu0 0.0
    %957 = vmatpush2.msra.mxu0 0.0
    %958 = vmatprep.subr.mxu0 0.0
    %959 = vmatpush2.msra.mxu0 0.0
    %960 = vmatprep.subr.mxu0 0.0
    %961 = vmatpush2.msra.mxu0 0.0
    %962 = vmatprep.mubr.f32.mxu0 0.0
    %963 = vmatmul.mubr.f32.gmra.mxu0 %v750
    %v964 = vpop.f32.mrf.mxu0
    %v965 = vadd.f32 %v112, %v964
    %v966 = vpop.f32.mrf.mxu0
    %v967 = vadd.f32 %v116, %v966
    %968 = vdwg.mxu0
    %969 = vmatprep.subr.mxu0 0.0
    %970 = vmatpush1.msra.mxu0 %v89
    %971 = vmatprep.subr.mxu0 0.0
    %972 = vmatpush1.msra.mxu0 %v86
    %973 = vmatprep.subr.mxu0 0.0
    %974 = vmatpush1.msra.mxu0 %v83
    %975 = vmatprep.subr.mxu0 0.0
    %976 = vmatpush1.msra.mxu0 %v80
    %977 = vmatprep.subr.mxu0 0.0
    %978 = vmatpush1.msra.mxu0 %v77
    %979 = vmatprep.subr.mxu0 0.0
    %980 = vmatpush1.msra.mxu0 %v74
    %981 = vmatprep.subr.mxu0 0.0
    %982 = vmatpush1.msra.mxu0 %v71
    %983 = vmatprep.subr.mxu0 0.0
    %984 = vmatpush1.msra.mxu0 %v68
    %985 = vmatprep.subr.mxu0 0.0
    %986 = vmatpush1.msra.mxu0 %v65
    %987 = vmatprep.subr.mxu0 0.0
    %988 = vmatpush1.msra.mxu0 %v62
    %989 = vmatprep.subr.mxu0 0.0
    %990 = vmatpush1.msra.mxu0 %v59
    %991 = vmatprep.subr.mxu0 0.0
    %992 = vmatpush1.msra.mxu0 %v56
    %993 = vmatprep.subr.mxu0 0.0
    %994 = vmatpush1.msra.mxu0 %v53
    %995 = vmatprep.subr.mxu0 0.0
    %996 = vmatpush1.msra.mxu0 %v50
    %997 = vmatprep.subr.mxu0 0.0
    %998 = vmatpush1.msra.mxu0 %v47
    %999 = vmatprep.subr.mxu0 0.0
    %1000 = vmatpush1.msra.mxu0 %v44
    %1001 = vmatprep.subr.mxu0 0.0
    %1002 = vmatpush2.msra.mxu0 0.0
    %1003 = vmatprep.subr.mxu0 0.0
    %1004 = vmatpush2.msra.mxu0 0.0
    %1005 = vmatprep.subr.mxu0 0.0
    %1006 = vmatpush2.msra.mxu0 0.0
    %1007 = vmatprep.subr.mxu0 0.0
    %1008 = vmatpush2.msra.mxu0 0.0
    %1009 = vmatprep.subr.mxu0 0.0
    %1010 = vmatpush2.msra.mxu0 0.0
    %1011 = vmatprep.subr.mxu0 0.0
    %1012 = vmatpush2.msra.mxu0 0.0
    %1013 = vmatprep.subr.mxu0 0.0
    %1014 = vmatpush2.msra.mxu0 0.0
    %1015 = vmatprep.subr.mxu0 0.0
    %1016 = vmatpush2.msra.mxu0 0.0
    %1017 = vmatprep.subr.mxu0 0.0
    %1018 = vmatpush2.msra.mxu0 0.0
    %1019 = vmatprep.subr.mxu0 0.0
    %1020 = vmatpush2.msra.mxu0 0.0
    %1021 = vmatprep.subr.mxu0 0.0
    %1022 = vmatpush2.msra.mxu0 0.0
    %1023 = vmatprep.subr.mxu0 0.0
    %1024 = vmatpush2.msra.mxu0 0.0
    %1025 = vmatprep.subr.mxu0 0.0
    %1026 = vmatpush2.msra.mxu0 0.0
    %1027 = vmatprep.subr.mxu0 0.0
    %1028 = vmatpush2.msra.mxu0 0.0
    %1029 = vmatprep.subr.mxu0 0.0
    %1030 = vmatpush2.msra.mxu0 0.0
    %1031 = vmatprep.subr.mxu0 0.0
    %1032 = vmatpush2.msra.mxu0 0.0
    %1033 = vmatprep.mubr.f32.mxu0 0.0
    %1034 = vmatmul.mubr.f32.gmra.mxu0 %v750
    %v1035 = vpop.f32.mrf.mxu0
    %v1036 = vadd.f32 %v120, %v1035
    %v1037 = vpop.f32.mrf.mxu0
    %1038 = vdwg.mxu0
    %v1039 = vadd.f32 %v824, %v965
    %v1040 = vxor.u32 %v1039, 2147483648
    %v1041 = vmul.f32 %v1040, 1.442695
    %v1042 = vpow.pop %v1041
    %v1043 = vadd.f32 %v1042, 1.0
    %v1044 = vrcp.pop %v1043
    %v1045 = vmul.f32 1.0, %v1044
    %v1046 = vadd.f32 %v826, %v967
    %v1047 = vxor.u32 %v1046, 2147483648
    %v1048 = vmul.f32 %v1047, 1.442695
    %v1049 = vpow.pop %v1048
    %v1050 = vadd.f32 %v1049, 1.0
    %v1051 = vrcp.pop %v1050
    %v1052 = vmul.f32 1.0, %v1051
    %v1053 = vmul.f32 %v1045, %v1036
    %v1054 = vadd.f32 %v895, %v1053
    %v1055 = vtanh.pop %v1054
    %v1056 = vsub.f32 1.0, %v1052
    %v1057 = vmul.f32 %v1056, %v1055
    %v1058 = vmul.f32 %v1052, %v750
    %v1059 = vadd.f32 %v1057, %v1058
    %1060 = vst [vmem:[#allocation2 + $0x4] sm:$0x3] %v1059
    %s1061 = scalar_lea.vmem %s0, 6
    %v1062 = vld [vmem:[%s1061] sm:$0x3]
    %v1064 = vsel %vm128, %v1062, 0
    %1066 = vmatprep.subr.mxu0 0.0
    %1067 = vmatpush1.msra.mxu0 0.0
    %1068 = vmatprep.subr.mxu0 0.0
    %1069 = vmatpush1.msra.mxu0 0.0
    %1070 = vmatprep.subr.mxu0 0.0
    %1071 = vmatpush1.msra.mxu0 0.0
    %1072 = vmatprep.subr.mxu0 0.0
    %1073 = vmatpush1.msra.mxu0 0.0
    %1074 = vmatprep.subr.mxu0 0.0
    %1075 = vmatpush1.msra.mxu0 0.0
    %1076 = vmatprep.subr.mxu0 0.0
    %1077 = vmatpush1.msra.mxu0 0.0
    %1078 = vmatprep.subr.mxu0 0.0
    %1079 = vmatpush1.msra.mxu0 0.0
    %1080 = vmatprep.subr.mxu0 0.0
    %1081 = vmatpush1.msra.mxu0 0.0
    %1082 = vmatprep.subr.mxu0 0.0
    %1083 = vmatpush1.msra.mxu0 0.0
    %1084 = vmatprep.subr.mxu0 0.0
    %1085 = vmatpush1.msra.mxu0 0.0
    %1086 = vmatprep.subr.mxu0 0.0
    %1087 = vmatpush1.msra.mxu0 0.0
    %1088 = vmatprep.subr.mxu0 0.0
    %1089 = vmatpush1.msra.mxu0 0.0
    %1090 = vmatprep.subr.mxu0 0.0
    %1091 = vmatpush1.msra.mxu0 0.0
    %1092 = vmatprep.subr.mxu0 0.0
    %1093 = vmatpush1.msra.mxu0 0.0
    %1094 = vmatprep.subr.mxu0 0.0
    %1095 = vmatpush1.msra.mxu0 0.0
    %1096 = vmatprep.subr.mxu0 %v135
    %1097 = vmatpush1.msra.mxu0 %v133
    %1098 = vmatprep.subr.mxu0 0.0
    %1099 = vmatpush2.msra.mxu0 0.0
    %1100 = vmatprep.subr.mxu0 0.0
    %1101 = vmatpush2.msra.mxu0 0.0
    %1102 = vmatprep.subr.mxu0 0.0
    %1103 = vmatpush2.msra.mxu0 0.0
    %1104 = vmatprep.subr.mxu0 0.0
    %1105 = vmatpush2.msra.mxu0 0.0
    %1106 = vmatprep.subr.mxu0 0.0
    %1107 = vmatpush2.msra.mxu0 0.0
    %1108 = vmatprep.subr.mxu0 0.0
    %1109 = vmatpush2.msra.mxu0 0.0
    %1110 = vmatprep.subr.mxu0 0.0
    %1111 = vmatpush2.msra.mxu0 0.0
    %1112 = vmatprep.subr.mxu0 0.0
    %1113 = vmatpush2.msra.mxu0 0.0
    %1114 = vmatprep.subr.mxu0 0.0
    %1115 = vmatpush2.msra.mxu0 0.0
    %1116 = vmatprep.subr.mxu0 0.0
    %1117 = vmatpush2.msra.mxu0 0.0
    %1118 = vmatprep.subr.mxu0 0.0
    %1119 = vmatpush2.msra.mxu0 0.0
    %1120 = vmatprep.subr.mxu0 0.0
    %1121 = vmatpush2.msra.mxu0 0.0
    %1122 = vmatprep.subr.mxu0 0.0
    %1123 = vmatpush2.msra.mxu0 0.0
    %1124 = vmatprep.subr.mxu0 0.0
    %1125 = vmatpush2.msra.mxu0 0.0
    %1126 = vmatprep.subr.mxu0 0.0
    %1127 = vmatpush2.msra.mxu0 0.0
    %1128 = vmatprep.subr.mxu0 0.0
    %1129 = vmatpush2.msra.mxu0 0.0
    %1130 = vmatprep.mubr.f32.mxu0 0.0
    %1131 = vmatmul.mubr.f32.gmra.mxu0 %v1064
    %v1132 = vpop.f32.mrf.mxu0
    %v1133 = vadd.f32 %v95, %v1132
    %v1134 = vpop.f32.mrf.mxu0
    %v1135 = vadd.f32 %v99, %v1134
    %1136 = vdwg.mxu0
    %1137 = vmatprep.subr.mxu0 0.0
    %1138 = vmatpush1.msra.mxu0 0.0
    %1139 = vmatprep.subr.mxu0 0.0
    %1140 = vmatpush1.msra.mxu0 0.0
    %1141 = vmatprep.subr.mxu0 0.0
    %1142 = vmatpush1.msra.mxu0 0.0
    %1143 = vmatprep.subr.mxu0 0.0
    %1144 = vmatpush1.msra.mxu0 0.0
    %1145 = vmatprep.subr.mxu0 0.0
    %1146 = vmatpush1.msra.mxu0 0.0
    %1147 = vmatprep.subr.mxu0 0.0
    %1148 = vmatpush1.msra.mxu0 0.0
    %1149 = vmatprep.subr.mxu0 0.0
    %1150 = vmatpush1.msra.mxu0 0.0
    %1151 = vmatprep.subr.mxu0 0.0
    %1152 = vmatpush1.msra.mxu0 0.0
    %1153 = vmatprep.subr.mxu0 0.0
    %1154 = vmatpush1.msra.mxu0 0.0
    %1155 = vmatprep.subr.mxu0 0.0
    %1156 = vmatpush1.msra.mxu0 0.0
    %1157 = vmatprep.subr.mxu0 0.0
    %1158 = vmatpush1.msra.mxu0 0.0
    %1159 = vmatprep.subr.mxu0 0.0
    %1160 = vmatpush1.msra.mxu0 0.0
    %1161 = vmatprep.subr.mxu0 0.0
    %1162 = vmatpush1.msra.mxu0 0.0
    %1163 = vmatprep.subr.mxu0 0.0
    %1164 = vmatpush1.msra.mxu0 0.0
    %1165 = vmatprep.subr.mxu0 0.0
    %1166 = vmatpush1.msra.mxu0 0.0
    %1167 = vmatprep.subr.mxu0 0.0
    %1168 = vmatpush1.msra.mxu0 %v137
    %1169 = vmatprep.subr.mxu0 0.0
    %1170 = vmatpush2.msra.mxu0 0.0
    %1171 = vmatprep.subr.mxu0 0.0
    %1172 = vmatpush2.msra.mxu0 0.0
    %1173 = vmatprep.subr.mxu0 0.0
    %1174 = vmatpush2.msra.mxu0 0.0
    %1175 = vmatprep.subr.mxu0 0.0
    %1176 = vmatpush2.msra.mxu0 0.0
    %1177 = vmatprep.subr.mxu0 0.0
    %1178 = vmatpush2.msra.mxu0 0.0
    %1179 = vmatprep.subr.mxu0 0.0
    %1180 = vmatpush2.msra.mxu0 0.0
    %1181 = vmatprep.subr.mxu0 0.0
    %1182 = vmatpush2.msra.mxu0 0.0
    %1183 = vmatprep.subr.mxu0 0.0
    %1184 = vmatpush2.msra.mxu0 0.0
    %1185 = vmatprep.subr.mxu0 0.0
    %1186 = vmatpush2.msra.mxu0 0.0
    %1187 = vmatprep.subr.mxu0 0.0
    %1188 = vmatpush2.msra.mxu0 0.0
    %1189 = vmatprep.subr.mxu0 0.0
    %1190 = vmatpush2.msra.mxu0 0.0
    %1191 = vmatprep.subr.mxu0 0.0
    %1192 = vmatpush2.msra.mxu0 0.0
    %1193 = vmatprep.subr.mxu0 0.0
    %1194 = vmatpush2.msra.mxu0 0.0
    %1195 = vmatprep.subr.mxu0 0.0
    %1196 = vmatpush2.msra.mxu0 0.0
    %1197 = vmatprep.subr.mxu0 0.0
    %1198 = vmatpush2.msra.mxu0 0.0
    %1199 = vmatprep.subr.mxu0 0.0
    %1200 = vmatpush2.msra.mxu0 0.0
    %1201 = vmatprep.mubr.f32.mxu0 0.0
    %1202 = vmatmul.mubr.f32.gmra.mxu0 %v1064
    %v1203 = vpop.f32.mrf.mxu0
    %v1204 = vadd.f32 %v103, %v1203
    %v1205 = vpop.f32.mrf.mxu0
    %1206 = vdwg.mxu0
    %1207 = vmatprep.subr.mxu0 %v88
    %1208 = vmatpush1.msra.mxu0 %v87
    %1209 = vmatprep.subr.mxu0 %v85
    %1210 = vmatpush1.msra.mxu0 %v84
    %1211 = vmatprep.subr.mxu0 %v82
    %1212 = vmatpush1.msra.mxu0 %v81
    %1213 = vmatprep.subr.mxu0 %v79
    %1214 = vmatpush1.msra.mxu0 %v78
    %1215 = vmatprep.subr.mxu0 %v76
    %1216 = vmatpush1.msra.mxu0 %v75
    %1217 = vmatprep.subr.mxu0 %v73
    %1218 = vmatpush1.msra.mxu0 %v72
    %1219 = vmatprep.subr.mxu0 %v70
    %1220 = vmatpush1.msra.mxu0 %v69
    %1221 = vmatprep.subr.mxu0 %v67
    %1222 = vmatpush1.msra.mxu0 %v66
    %1223 = vmatprep.subr.mxu0 %v64
    %1224 = vmatpush1.msra.mxu0 %v63
    %1225 = vmatprep.subr.mxu0 %v61
    %1226 = vmatpush1.msra.mxu0 %v60
    %1227 = vmatprep.subr.mxu0 %v58
    %1228 = vmatpush1.msra.mxu0 %v57
    %1229 = vmatprep.subr.mxu0 %v55
    %1230 = vmatpush1.msra.mxu0 %v54
    %1231 = vmatprep.subr.mxu0 %v52
    %1232 = vmatpush1.msra.mxu0 %v51
    %1233 = vmatprep.subr.mxu0 %v49
    %1234 = vmatpush1.msra.mxu0 %v48
    %1235 = vmatprep.subr.mxu0 %v46
    %1236 = vmatpush1.msra.mxu0 %v45
    %1237 = vmatprep.subr.mxu0 %v43
    %1238 = vmatpush1.msra.mxu0 %v42
    %1239 = vmatprep.subr.mxu0 0.0
    %1240 = vmatpush2.msra.mxu0 0.0
    %1241 = vmatprep.subr.mxu0 0.0
    %1242 = vmatpush2.msra.mxu0 0.0
    %1243 = vmatprep.subr.mxu0 0.0
    %1244 = vmatpush2.msra.mxu0 0.0
    %1245 = vmatprep.subr.mxu0 0.0
    %1246 = vmatpush2.msra.mxu0 0.0
    %1247 = vmatprep.subr.mxu0 0.0
    %1248 = vmatpush2.msra.mxu0 0.0
    %1249 = vmatprep.subr.mxu0 0.0
    %1250 = vmatpush2.msra.mxu0 0.0
    %1251 = vmatprep.subr.mxu0 0.0
    %1252 = vmatpush2.msra.mxu0 0.0
    %1253 = vmatprep.subr.mxu0 0.0
    %1254 = vmatpush2.msra.mxu0 0.0
    %1255 = vmatprep.subr.mxu0 0.0
    %1256 = vmatpush2.msra.mxu0 0.0
    %1257 = vmatprep.subr.mxu0 0.0
    %1258 = vmatpush2.msra.mxu0 0.0
    %1259 = vmatprep.subr.mxu0 0.0
    %1260 = vmatpush2.msra.mxu0 0.0
    %1261 = vmatprep.subr.mxu0 0.0
    %1262 = vmatpush2.msra.mxu0 0.0
    %1263 = vmatprep.subr.mxu0 0.0
    %1264 = vmatpush2.msra.mxu0 0.0
    %1265 = vmatprep.subr.mxu0 0.0
    %1266 = vmatpush2.msra.mxu0 0.0
    %1267 = vmatprep.subr.mxu0 0.0
    %1268 = vmatpush2.msra.mxu0 0.0
    %1269 = vmatprep.subr.mxu0 0.0
    %1270 = vmatpush2.msra.mxu0 0.0
    %1271 = vmatprep.mubr.f32.mxu0 0.0
    %1272 = vmatmul.mubr.f32.gmra.mxu0 %v1059
    %v1273 = vpop.f32.mrf.mxu0
    %v1274 = vadd.f32 %v112, %v1273
    %v1275 = vpop.f32.mrf.mxu0
    %v1276 = vadd.f32 %v116, %v1275
    %1277 = vdwg.mxu0
    %1278 = vmatprep.subr.mxu0 0.0
    %1279 = vmatpush1.msra.mxu0 %v89
    %1280 = vmatprep.subr.mxu0 0.0
    %1281 = vmatpush1.msra.mxu0 %v86
    %1282 = vmatprep.subr.mxu0 0.0
    %1283 = vmatpush1.msra.mxu0 %v83
    %1284 = vmatprep.subr.mxu0 0.0
    %1285 = vmatpush1.msra.mxu0 %v80
    %1286 = vmatprep.subr.mxu0 0.0
    %1287 = vmatpush1.msra.mxu0 %v77
    %1288 = vmatprep.subr.mxu0 0.0
    %1289 = vmatpush1.msra.mxu0 %v74
    %1290 = vmatprep.subr.mxu0 0.0
    %1291 = vmatpush1.msra.mxu0 %v71
    %1292 = vmatprep.subr.mxu0 0.0
    %1293 = vmatpush1.msra.mxu0 %v68
    %1294 = vmatprep.subr.mxu0 0.0
    %1295 = vmatpush1.msra.mxu0 %v65
    %1296 = vmatprep.subr.mxu0 0.0
    %1297 = vmatpush1.msra.mxu0 %v62
    %1298 = vmatprep.subr.mxu0 0.0
    %1299 = vmatpush1.msra.mxu0 %v59
    %1300 = vmatprep.subr.mxu0 0.0
    %1301 = vmatpush1.msra.mxu0 %v56
    %1302 = vmatprep.subr.mxu0 0.0
    %1303 = vmatpush1.msra.mxu0 %v53
    %1304 = vmatprep.subr.mxu0 0.0
    %1305 = vmatpush1.msra.mxu0 %v50
    %1306 = vmatprep.subr.mxu0 0.0
    %1307 = vmatpush1.msra.mxu0 %v47
    %1308 = vmatprep.subr.mxu0 0.0
    %1309 = vmatpush1.msra.mxu0 %v44
    %1310 = vmatprep.subr.mxu0 0.0
    %1311 = vmatpush2.msra.mxu0 0.0
    %1312 = vmatprep.subr.mxu0 0.0
    %1313 = vmatpush2.msra.mxu0 0.0
    %1314 = vmatprep.subr.mxu0 0.0
    %1315 = vmatpush2.msra.mxu0 0.0
    %1316 = vmatprep.subr.mxu0 0.0
    %1317 = vmatpush2.msra.mxu0 0.0
    %1318 = vmatprep.subr.mxu0 0.0
    %1319 = vmatpush2.msra.mxu0 0.0
    %1320 = vmatprep.subr.mxu0 0.0
    %1321 = vmatpush2.msra.mxu0 0.0
    %1322 = vmatprep.subr.mxu0 0.0
    %1323 = vmatpush2.msra.mxu0 0.0
    %1324 = vmatprep.subr.mxu0 0.0
    %1325 = vmatpush2.msra.mxu0 0.0
    %1326 = vmatprep.subr.mxu0 0.0
    %1327 = vmatpush2.msra.mxu0 0.0
    %1328 = vmatprep.subr.mxu0 0.0
    %1329 = vmatpush2.msra.mxu0 0.0
    %1330 = vmatprep.subr.mxu0 0.0
    %1331 = vmatpush2.msra.mxu0 0.0
    %1332 = vmatprep.subr.mxu0 0.0
    %1333 = vmatpush2.msra.mxu0 0.0
    %1334 = vmatprep.subr.mxu0 0.0
    %1335 = vmatpush2.msra.mxu0 0.0
    %1336 = vmatprep.subr.mxu0 0.0
    %1337 = vmatpush2.msra.mxu0 0.0
    %1338 = vmatprep.subr.mxu0 0.0
    %1339 = vmatpush2.msra.mxu0 0.0
    %1340 = vmatprep.subr.mxu0 0.0
    %1341 = vmatpush2.msra.mxu0 0.0
    %1342 = vmatprep.mubr.f32.mxu0 0.0
    %1343 = vmatmul.mubr.f32.gmra.mxu0 %v1059
    %v1344 = vpop.f32.mrf.mxu0
    %v1345 = vadd.f32 %v120, %v1344
    %v1346 = vpop.f32.mrf.mxu0
    %1347 = vdwg.mxu0
    %v1348 = vadd.f32 %v1133, %v1274
    %v1349 = vxor.u32 %v1348, 2147483648
    %v1350 = vmul.f32 %v1349, 1.442695
    %v1351 = vpow.pop %v1350
    %v1352 = vadd.f32 %v1351, 1.0
    %v1353 = vrcp.pop %v1352
    %v1354 = vmul.f32 1.0, %v1353
    %v1355 = vadd.f32 %v1135, %v1276
    %v1356 = vxor.u32 %v1355, 2147483648
    %v1357 = vmul.f32 %v1356, 1.442695
    %v1358 = vpow.pop %v1357
    %v1359 = vadd.f32 %v1358, 1.0
    %v1360 = vrcp.pop %v1359
    %v1361 = vmul.f32 1.0, %v1360
    %v1362 = vmul.f32 %v1354, %v1345
    %v1363 = vadd.f32 %v1204, %v1362
    %v1364 = vtanh.pop %v1363
    %v1365 = vsub.f32 1.0, %v1361
    %v1366 = vmul.f32 %v1365, %v1364
    %v1367 = vmul.f32 %v1361, %v1059
    %v1368 = vadd.f32 %v1366, %v1367
    %1369 = vst [vmem:[#allocation2 + $0x6] sm:$0x3] %v1368
    %s1370 = scalar_lea.vmem %s0, 8
    %v1371 = vld [vmem:[%s1370] sm:$0x3]
    %v1373 = vsel %vm128, %v1371, 0
    %1375 = vmatprep.subr.mxu0 0.0
    %1376 = vmatpush1.msra.mxu0 0.0
    %1377 = vmatprep.subr.mxu0 0.0
    %1378 = vmatpush1.msra.mxu0 0.0
    %1379 = vmatprep.subr.mxu0 0.0
    %1380 = vmatpush1.msra.mxu0 0.0
    %1381 = vmatprep.subr.mxu0 0.0
    %1382 = vmatpush1.msra.mxu0 0.0
    %1383 = vmatprep.subr.mxu0 0.0
    %1384 = vmatpush1.msra.mxu0 0.0
    %1385 = vmatprep.subr.mxu0 0.0
    %1386 = vmatpush1.msra.mxu0 0.0
    %1387 = vmatprep.subr.mxu0 0.0
    %1388 = vmatpush1.msra.mxu0 0.0
    %1389 = vmatprep.subr.mxu0 0.0
    %1390 = vmatpush1.msra.mxu0 0.0
    %1391 = vmatprep.subr.mxu0 0.0
    %1392 = vmatpush1.msra.mxu0 0.0
    %1393 = vmatprep.subr.mxu0 0.0
    %1394 = vmatpush1.msra.mxu0 0.0
    %1395 = vmatprep.subr.mxu0 0.0
    %1396 = vmatpush1.msra.mxu0 0.0
    %1397 = vmatprep.subr.mxu0 0.0
    %1398 = vmatpush1.msra.mxu0 0.0
    %1399 = vmatprep.subr.mxu0 0.0
    %1400 = vmatpush1.msra.mxu0 0.0
    %1401 = vmatprep.subr.mxu0 0.0
    %1402 = vmatpush1.msra.mxu0 0.0
    %1403 = vmatprep.subr.mxu0 0.0
    %1404 = vmatpush1.msra.mxu0 0.0
    %1405 = vmatprep.subr.mxu0 %v135
    %1406 = vmatpush1.msra.mxu0 %v133
    %1407 = vmatprep.subr.mxu0 0.0
    %1408 = vmatpush2.msra.mxu0 0.0
    %1409 = vmatprep.subr.mxu0 0.0
    %1410 = vmatpush2.msra.mxu0 0.0
    %1411 = vmatprep.subr.mxu0 0.0
    %1412 = vmatpush2.msra.mxu0 0.0
    %1413 = vmatprep.subr.mxu0 0.0
    %1414 = vmatpush2.msra.mxu0 0.0
    %1415 = vmatprep.subr.mxu0 0.0
    %1416 = vmatpush2.msra.mxu0 0.0
    %1417 = vmatprep.subr.mxu0 0.0
    %1418 = vmatpush2.msra.mxu0 0.0
    %1419 = vmatprep.subr.mxu0 0.0
    %1420 = vmatpush2.msra.mxu0 0.0
    %1421 = vmatprep.subr.mxu0 0.0
    %1422 = vmatpush2.msra.mxu0 0.0
    %1423 = vmatprep.subr.mxu0 0.0
    %1424 = vmatpush2.msra.mxu0 0.0
    %1425 = vmatprep.subr.mxu0 0.0
    %1426 = vmatpush2.msra.mxu0 0.0
    %1427 = vmatprep.subr.mxu0 0.0
    %1428 = vmatpush2.msra.mxu0 0.0
    %1429 = vmatprep.subr.mxu0 0.0
    %1430 = vmatpush2.msra.mxu0 0.0
    %1431 = vmatprep.subr.mxu0 0.0
    %1432 = vmatpush2.msra.mxu0 0.0
    %1433 = vmatprep.subr.mxu0 0.0
    %1434 = vmatpush2.msra.mxu0 0.0
    %1435 = vmatprep.subr.mxu0 0.0
    %1436 = vmatpush2.msra.mxu0 0.0
    %1437 = vmatprep.subr.mxu0 0.0
    %1438 = vmatpush2.msra.mxu0 0.0
    %1439 = vmatprep.mubr.f32.mxu0 0.0
    %1440 = vmatmul.mubr.f32.gmra.mxu0 %v1373
    %v1441 = vpop.f32.mrf.mxu0
    %v1442 = vadd.f32 %v95, %v1441
    %v1443 = vpop.f32.mrf.mxu0
    %v1444 = vadd.f32 %v99, %v1443
    %1445 = vdwg.mxu0
    %1446 = vmatprep.subr.mxu0 0.0
    %1447 = vmatpush1.msra.mxu0 0.0
    %1448 = vmatprep.subr.mxu0 0.0
    %1449 = vmatpush1.msra.mxu0 0.0
    %1450 = vmatprep.subr.mxu0 0.0
    %1451 = vmatpush1.msra.mxu0 0.0
    %1452 = vmatprep.subr.mxu0 0.0
    %1453 = vmatpush1.msra.mxu0 0.0
    %1454 = vmatprep.subr.mxu0 0.0
    %1455 = vmatpush1.msra.mxu0 0.0
    %1456 = vmatprep.subr.mxu0 0.0
    %1457 = vmatpush1.msra.mxu0 0.0
    %1458 = vmatprep.subr.mxu0 0.0
    %1459 = vmatpush1.msra.mxu0 0.0
    %1460 = vmatprep.subr.mxu0 0.0
    %1461 = vmatpush1.msra.mxu0 0.0
    %1462 = vmatprep.subr.mxu0 0.0
    %1463 = vmatpush1.msra.mxu0 0.0
    %1464 = vmatprep.subr.mxu0 0.0
    %1465 = vmatpush1.msra.mxu0 0.0
    %1466 = vmatprep.subr.mxu0 0.0
    %1467 = vmatpush1.msra.mxu0 0.0
    %1468 = vmatprep.subr.mxu0 0.0
    %1469 = vmatpush1.msra.mxu0 0.0
    %1470 = vmatprep.subr.mxu0 0.0
    %1471 = vmatpush1.msra.mxu0 0.0
    %1472 = vmatprep.subr.mxu0 0.0
    %1473 = vmatpush1.msra.mxu0 0.0
    %1474 = vmatprep.subr.mxu0 0.0
    %1475 = vmatpush1.msra.mxu0 0.0
    %1476 = vmatprep.subr.mxu0 0.0
    %1477 = vmatpush1.msra.mxu0 %v137
    %1478 = vmatprep.subr.mxu0 0.0
    %1479 = vmatpush2.msra.mxu0 0.0
    %1480 = vmatprep.subr.mxu0 0.0
    %1481 = vmatpush2.msra.mxu0 0.0
    %1482 = vmatprep.subr.mxu0 0.0
    %1483 = vmatpush2.msra.mxu0 0.0
    %1484 = vmatprep.subr.mxu0 0.0
    %1485 = vmatpush2.msra.mxu0 0.0
    %1486 = vmatprep.subr.mxu0 0.0
    %1487 = vmatpush2.msra.mxu0 0.0
    %1488 = vmatprep.subr.mxu0 0.0
    %1489 = vmatpush2.msra.mxu0 0.0
    %1490 = vmatprep.subr.mxu0 0.0
    %1491 = vmatpush2.msra.mxu0 0.0
    %1492 = vmatprep.subr.mxu0 0.0
    %1493 = vmatpush2.msra.mxu0 0.0
    %1494 = vmatprep.subr.mxu0 0.0
    %1495 = vmatpush2.msra.mxu0 0.0
    %1496 = vmatprep.subr.mxu0 0.0
    %1497 = vmatpush2.msra.mxu0 0.0
    %1498 = vmatprep.subr.mxu0 0.0
    %1499 = vmatpush2.msra.mxu0 0.0
    %1500 = vmatprep.subr.mxu0 0.0
    %1501 = vmatpush2.msra.mxu0 0.0
    %1502 = vmatprep.subr.mxu0 0.0
    %1503 = vmatpush2.msra.mxu0 0.0
    %1504 = vmatprep.subr.mxu0 0.0
    %1505 = vmatpush2.msra.mxu0 0.0
    %1506 = vmatprep.subr.mxu0 0.0
    %1507 = vmatpush2.msra.mxu0 0.0
    %1508 = vmatprep.subr.mxu0 0.0
    %1509 = vmatpush2.msra.mxu0 0.0
    %1510 = vmatprep.mubr.f32.mxu0 0.0
    %1511 = vmatmul.mubr.f32.gmra.mxu0 %v1373
    %v1512 = vpop.f32.mrf.mxu0
    %v1513 = vadd.f32 %v103, %v1512
    %v1514 = vpop.f32.mrf.mxu0
    %1515 = vdwg.mxu0
    %1516 = vmatprep.subr.mxu0 %v88
    %1517 = vmatpush1.msra.mxu0 %v87
    %1518 = vmatprep.subr.mxu0 %v85
    %1519 = vmatpush1.msra.mxu0 %v84
    %1520 = vmatprep.subr.mxu0 %v82
    %1521 = vmatpush1.msra.mxu0 %v81
    %1522 = vmatprep.subr.mxu0 %v79
    %1523 = vmatpush1.msra.mxu0 %v78
    %1524 = vmatprep.subr.mxu0 %v76
    %1525 = vmatpush1.msra.mxu0 %v75
    %1526 = vmatprep.subr.mxu0 %v73
    %1527 = vmatpush1.msra.mxu0 %v72
    %1528 = vmatprep.subr.mxu0 %v70
    %1529 = vmatpush1.msra.mxu0 %v69
    %1530 = vmatprep.subr.mxu0 %v67
    %1531 = vmatpush1.msra.mxu0 %v66
    %1532 = vmatprep.subr.mxu0 %v64
    %1533 = vmatpush1.msra.mxu0 %v63
    %1534 = vmatprep.subr.mxu0 %v61
    %1535 = vmatpush1.msra.mxu0 %v60
    %1536 = vmatprep.subr.mxu0 %v58
    %1537 = vmatpush1.msra.mxu0 %v57
    %1538 = vmatprep.subr.mxu0 %v55
    %1539 = vmatpush1.msra.mxu0 %v54
    %1540 = vmatprep.subr.mxu0 %v52
    %1541 = vmatpush1.msra.mxu0 %v51
    %1542 = vmatprep.subr.mxu0 %v49
    %1543 = vmatpush1.msra.mxu0 %v48
    %1544 = vmatprep.subr.mxu0 %v46
    %1545 = vmatpush1.msra.mxu0 %v45
    %1546 = vmatprep.subr.mxu0 %v43
    %1547 = vmatpush1.msra.mxu0 %v42
    %1548 = vmatprep.subr.mxu0 0.0
    %1549 = vmatpush2.msra.mxu0 0.0
    %1550 = vmatprep.subr.mxu0 0.0
    %1551 = vmatpush2.msra.mxu0 0.0
    %1552 = vmatprep.subr.mxu0 0.0
    %1553 = vmatpush2.msra.mxu0 0.0
    %1554 = vmatprep.subr.mxu0 0.0
    %1555 = vmatpush2.msra.mxu0 0.0
    %1556 = vmatprep.subr.mxu0 0.0
    %1557 = vmatpush2.msra.mxu0 0.0
    %1558 = vmatprep.subr.mxu0 0.0
    %1559 = vmatpush2.msra.mxu0 0.0
    %1560 = vmatprep.subr.mxu0 0.0
    %1561 = vmatpush2.msra.mxu0 0.0
    %1562 = vmatprep.subr.mxu0 0.0
    %1563 = vmatpush2.msra.mxu0 0.0
    %1564 = vmatprep.subr.mxu0 0.0
    %1565 = vmatpush2.msra.mxu0 0.0
    %1566 = vmatprep.subr.mxu0 0.0
    %1567 = vmatpush2.msra.mxu0 0.0
    %1568 = vmatprep.subr.mxu0 0.0
    %1569 = vmatpush2.msra.mxu0 0.0
    %1570 = vmatprep.subr.mxu0 0.0
    %1571 = vmatpush2.msra.mxu0 0.0
    %1572 = vmatprep.subr.mxu0 0.0
    %1573 = vmatpush2.msra.mxu0 0.0
    %1574 = vmatprep.subr.mxu0 0.0
    %1575 = vmatpush2.msra.mxu0 0.0
    %1576 = vmatprep.subr.mxu0 0.0
    %1577 = vmatpush2.msra.mxu0 0.0
    %1578 = vmatprep.subr.mxu0 0.0
    %1579 = vmatpush2.msra.mxu0 0.0
    %1580 = vmatprep.mubr.f32.mxu0 0.0
    %1581 = vmatmul.mubr.f32.gmra.mxu0 %v1368
    %v1582 = vpop.f32.mrf.mxu0
    %v1583 = vadd.f32 %v112, %v1582
    %v1584 = vpop.f32.mrf.mxu0
    %v1585 = vadd.f32 %v116, %v1584
    %1586 = vdwg.mxu0
    %1587 = vmatprep.subr.mxu0 0.0
    %1588 = vmatpush1.msra.mxu0 %v89
    %1589 = vmatprep.subr.mxu0 0.0
    %1590 = vmatpush1.msra.mxu0 %v86
    %1591 = vmatprep.subr.mxu0 0.0
    %1592 = vmatpush1.msra.mxu0 %v83
    %1593 = vmatprep.subr.mxu0 0.0
    %1594 = vmatpush1.msra.mxu0 %v80
    %1595 = vmatprep.subr.mxu0 0.0
    %1596 = vmatpush1.msra.mxu0 %v77
    %1597 = vmatprep.subr.mxu0 0.0
    %1598 = vmatpush1.msra.mxu0 %v74
    %1599 = vmatprep.subr.mxu0 0.0
    %1600 = vmatpush1.msra.mxu0 %v71
    %1601 = vmatprep.subr.mxu0 0.0
    %1602 = vmatpush1.msra.mxu0 %v68
    %1603 = vmatprep.subr.mxu0 0.0
    %1604 = vmatpush1.msra.mxu0 %v65
    %1605 = vmatprep.subr.mxu0 0.0
    %1606 = vmatpush1.msra.mxu0 %v62
    %1607 = vmatprep.subr.mxu0 0.0
    %1608 = vmatpush1.msra.mxu0 %v59
    %1609 = vmatprep.subr.mxu0 0.0
    %1610 = vmatpush1.msra.mxu0 %v56
    %1611 = vmatprep.subr.mxu0 0.0
    %1612 = vmatpush1.msra.mxu0 %v53
    %1613 = vmatprep.subr.mxu0 0.0
    %1614 = vmatpush1.msra.mxu0 %v50
    %1615 = vmatprep.subr.mxu0 0.0
    %1616 = vmatpush1.msra.mxu0 %v47
    %1617 = vmatprep.subr.mxu0 0.0
    %1618 = vmatpush1.msra.mxu0 %v44
    %1619 = vmatprep.subr.mxu0 0.0
    %1620 = vmatpush2.msra.mxu0 0.0
    %1621 = vmatprep.subr.mxu0 0.0
    %1622 = vmatpush2.msra.mxu0 0.0
    %1623 = vmatprep.subr.mxu0 0.0
    %1624 = vmatpush2.msra.mxu0 0.0
    %1625 = vmatprep.subr.mxu0 0.0
    %1626 = vmatpush2.msra.mxu0 0.0
    %1627 = vmatprep.subr.mxu0 0.0
    %1628 = vmatpush2.msra.mxu0 0.0
    %1629 = vmatprep.subr.mxu0 0.0
    %1630 = vmatpush2.msra.mxu0 0.0
    %1631 = vmatprep.subr.mxu0 0.0
    %1632 = vmatpush2.msra.mxu0 0.0
    %1633 = vmatprep.subr.mxu0 0.0
    %1634 = vmatpush2.msra.mxu0 0.0
    %1635 = vmatprep.subr.mxu0 0.0
    %1636 = vmatpush2.msra.mxu0 0.0
    %1637 = vmatprep.subr.mxu0 0.0
    %1638 = vmatpush2.msra.mxu0 0.0
    %1639 = vmatprep.subr.mxu0 0.0
    %1640 = vmatpush2.msra.mxu0 0.0
    %1641 = vmatprep.subr.mxu0 0.0
    %1642 = vmatpush2.msra.mxu0 0.0
    %1643 = vmatprep.subr.mxu0 0.0
    %1644 = vmatpush2.msra.mxu0 0.0
    %1645 = vmatprep.subr.mxu0 0.0
    %1646 = vmatpush2.msra.mxu0 0.0
    %1647 = vmatprep.subr.mxu0 0.0
    %1648 = vmatpush2.msra.mxu0 0.0
    %1649 = vmatprep.subr.mxu0 0.0
    %1650 = vmatpush2.msra.mxu0 0.0
    %1651 = vmatprep.mubr.f32.mxu0 0.0
    %1652 = vmatmul.mubr.f32.gmra.mxu0 %v1368
    %v1653 = vpop.f32.mrf.mxu0
    %v1654 = vadd.f32 %v120, %v1653
    %v1655 = vpop.f32.mrf.mxu0
    %1656 = vdwg.mxu0
    %v1657 = vadd.f32 %v1442, %v1583
    %v1658 = vxor.u32 %v1657, 2147483648
    %v1659 = vmul.f32 %v1658, 1.442695
    %v1660 = vpow.pop %v1659
    %v1661 = vadd.f32 %v1660, 1.0
    %v1662 = vrcp.pop %v1661
    %v1663 = vmul.f32 1.0, %v1662
    %v1664 = vadd.f32 %v1444, %v1585
    %v1665 = vxor.u32 %v1664, 2147483648
    %v1666 = vmul.f32 %v1665, 1.442695
    %v1667 = vpow.pop %v1666
    %v1668 = vadd.f32 %v1667, 1.0
    %v1669 = vrcp.pop %v1668
    %v1670 = vmul.f32 1.0, %v1669
    %v1671 = vmul.f32 %v1663, %v1654
    %v1672 = vadd.f32 %v1513, %v1671
    %v1673 = vtanh.pop %v1672
    %v1674 = vsub.f32 1.0, %v1670
    %v1675 = vmul.f32 %v1674, %v1673
    %v1676 = vmul.f32 %v1670, %v1368
    %v1677 = vadd.f32 %v1675, %v1676
    %1678 = vst [vmem:[#allocation2 + $0x8] sm:$0x3] %v1677
    %s1679 = scalar_lea.vmem %s0, 10
    %v1680 = vld [vmem:[%s1679] sm:$0x3]
    %v1682 = vsel %vm128, %v1680, 0
    %1684 = vmatprep.subr.mxu0 0.0
    %1685 = vmatpush1.msra.mxu0 0.0
    %1686 = vmatprep.subr.mxu0 0.0
    %1687 = vmatpush1.msra.mxu0 0.0
    %1688 = vmatprep.subr.mxu0 0.0
    %1689 = vmatpush1.msra.mxu0 0.0
    %1690 = vmatprep.subr.mxu0 0.0
    %1691 = vmatpush1.msra.mxu0 0.0
    %1692 = vmatprep.subr.mxu0 0.0
    %1693 = vmatpush1.msra.mxu0 0.0
    %1694 = vmatprep.subr.mxu0 0.0
    %1695 = vmatpush1.msra.mxu0 0.0
    %1696 = vmatprep.subr.mxu0 0.0
    %1697 = vmatpush1.msra.mxu0 0.0
    %1698 = vmatprep.subr.mxu0 0.0
    %1699 = vmatpush1.msra.mxu0 0.0
    %1700 = vmatprep.subr.mxu0 0.0
    %1701 = vmatpush1.msra.mxu0 0.0
    %1702 = vmatprep.subr.mxu0 0.0
    %1703 = vmatpush1.msra.mxu0 0.0
    %1704 = vmatprep.subr.mxu0 0.0
    %1705 = vmatpush1.msra.mxu0 0.0
    %1706 = vmatprep.subr.mxu0 0.0
    %1707 = vmatpush1.msra.mxu0 0.0
    %1708 = vmatprep.subr.mxu0 0.0
    %1709 = vmatpush1.msra.mxu0 0.0
    %1710 = vmatprep.subr.mxu0 0.0
    %1711 = vmatpush1.msra.mxu0 0.0
    %1712 = vmatprep.subr.mxu0 0.0
    %1713 = vmatpush1.msra.mxu0 0.0
    %1714 = vmatprep.subr.mxu0 %v135
    %1715 = vmatpush1.msra.mxu0 %v133
    %1716 = vmatprep.subr.mxu0 0.0
    %1717 = vmatpush2.msra.mxu0 0.0
    %1718 = vmatprep.subr.mxu0 0.0
    %1719 = vmatpush2.msra.mxu0 0.0
    %1720 = vmatprep.subr.mxu0 0.0
    %1721 = vmatpush2.msra.mxu0 0.0
    %1722 = vmatprep.subr.mxu0 0.0
    %1723 = vmatpush2.msra.mxu0 0.0
    %1724 = vmatprep.subr.mxu0 0.0
    %1725 = vmatpush2.msra.mxu0 0.0
    %1726 = vmatprep.subr.mxu0 0.0
    %1727 = vmatpush2.msra.mxu0 0.0
    %1728 = vmatprep.subr.mxu0 0.0
    %1729 = vmatpush2.msra.mxu0 0.0
    %1730 = vmatprep.subr.mxu0 0.0
    %1731 = vmatpush2.msra.mxu0 0.0
    %1732 = vmatprep.subr.mxu0 0.0
    %1733 = vmatpush2.msra.mxu0 0.0
    %1734 = vmatprep.subr.mxu0 0.0
    %1735 = vmatpush2.msra.mxu0 0.0
    %1736 = vmatprep.subr.mxu0 0.0
    %1737 = vmatpush2.msra.mxu0 0.0
    %1738 = vmatprep.subr.mxu0 0.0
    %1739 = vmatpush2.msra.mxu0 0.0
    %1740 = vmatprep.subr.mxu0 0.0
    %1741 = vmatpush2.msra.mxu0 0.0
    %1742 = vmatprep.subr.mxu0 0.0
    %1743 = vmatpush2.msra.mxu0 0.0
    %1744 = vmatprep.subr.mxu0 0.0
    %1745 = vmatpush2.msra.mxu0 0.0
    %1746 = vmatprep.subr.mxu0 0.0
    %1747 = vmatpush2.msra.mxu0 0.0
    %1748 = vmatprep.mubr.f32.mxu0 0.0
    %1749 = vmatmul.mubr.f32.gmra.mxu0 %v1682
    %v1750 = vpop.f32.mrf.mxu0
    %v1751 = vadd.f32 %v95, %v1750
    %v1752 = vpop.f32.mrf.mxu0
    %v1753 = vadd.f32 %v99, %v1752
    %1754 = vdwg.mxu0
    %1755 = vmatprep.subr.mxu0 0.0
    %1756 = vmatpush1.msra.mxu0 0.0
    %1757 = vmatprep.subr.mxu0 0.0
    %1758 = vmatpush1.msra.mxu0 0.0
    %1759 = vmatprep.subr.mxu0 0.0
    %1760 = vmatpush1.msra.mxu0 0.0
    %1761 = vmatprep.subr.mxu0 0.0
    %1762 = vmatpush1.msra.mxu0 0.0
    %1763 = vmatprep.subr.mxu0 0.0
    %1764 = vmatpush1.msra.mxu0 0.0
    %1765 = vmatprep.subr.mxu0 0.0
    %1766 = vmatpush1.msra.mxu0 0.0
    %1767 = vmatprep.subr.mxu0 0.0
    %1768 = vmatpush1.msra.mxu0 0.0
    %1769 = vmatprep.subr.mxu0 0.0
    %1770 = vmatpush1.msra.mxu0 0.0
    %1771 = vmatprep.subr.mxu0 0.0
    %1772 = vmatpush1.msra.mxu0 0.0
    %1773 = vmatprep.subr.mxu0 0.0
    %1774 = vmatpush1.msra.mxu0 0.0
    %1775 = vmatprep.subr.mxu0 0.0
    %1776 = vmatpush1.msra.mxu0 0.0
    %1777 = vmatprep.subr.mxu0 0.0
    %1778 = vmatpush1.msra.mxu0 0.0
    %1779 = vmatprep.subr.mxu0 0.0
    %1780 = vmatpush1.msra.mxu0 0.0
    %1781 = vmatprep.subr.mxu0 0.0
    %1782 = vmatpush1.msra.mxu0 0.0
    %1783 = vmatprep.subr.mxu0 0.0
    %1784 = vmatpush1.msra.mxu0 0.0
    %1785 = vmatprep.subr.mxu0 0.0
    %1786 = vmatpush1.msra.mxu0 %v137
    %1787 = vmatprep.subr.mxu0 0.0
    %1788 = vmatpush2.msra.mxu0 0.0
    %1789 = vmatprep.subr.mxu0 0.0
    %1790 = vmatpush2.msra.mxu0 0.0
    %1791 = vmatprep.subr.mxu0 0.0
    %1792 = vmatpush2.msra.mxu0 0.0
    %1793 = vmatprep.subr.mxu0 0.0
    %1794 = vmatpush2.msra.mxu0 0.0
    %1795 = vmatprep.subr.mxu0 0.0
    %1796 = vmatpush2.msra.mxu0 0.0
    %1797 = vmatprep.subr.mxu0 0.0
    %1798 = vmatpush2.msra.mxu0 0.0
    %1799 = vmatprep.subr.mxu0 0.0
    %1800 = vmatpush2.msra.mxu0 0.0
    %1801 = vmatprep.subr.mxu0 0.0
    %1802 = vmatpush2.msra.mxu0 0.0
    %1803 = vmatprep.subr.mxu0 0.0
    %1804 = vmatpush2.msra.mxu0 0.0
    %1805 = vmatprep.subr.mxu0 0.0
    %1806 = vmatpush2.msra.mxu0 0.0
    %1807 = vmatprep.subr.mxu0 0.0
    %1808 = vmatpush2.msra.mxu0 0.0
    %1809 = vmatprep.subr.mxu0 0.0
    %1810 = vmatpush2.msra.mxu0 0.0
    %1811 = vmatprep.subr.mxu0 0.0
    %1812 = vmatpush2.msra.mxu0 0.0
    %1813 = vmatprep.subr.mxu0 0.0
    %1814 = vmatpush2.msra.mxu0 0.0
    %1815 = vmatprep.subr.mxu0 0.0
    %1816 = vmatpush2.msra.mxu0 0.0
    %1817 = vmatprep.subr.mxu0 0.0
    %1818 = vmatpush2.msra.mxu0 0.0
    %1819 = vmatprep.mubr.f32.mxu0 0.0
    %1820 = vmatmul.mubr.f32.gmra.mxu0 %v1682
    %v1821 = vpop.f32.mrf.mxu0
    %v1822 = vadd.f32 %v103, %v1821
    %v1823 = vpop.f32.mrf.mxu0
    %1824 = vdwg.mxu0
    %1825 = vmatprep.subr.mxu0 %v88
    %1826 = vmatpush1.msra.mxu0 %v87
    %1827 = vmatprep.subr.mxu0 %v85
    %1828 = vmatpush1.msra.mxu0 %v84
    %1829 = vmatprep.subr.mxu0 %v82
    %1830 = vmatpush1.msra.mxu0 %v81
    %1831 = vmatprep.subr.mxu0 %v79
    %1832 = vmatpush1.msra.mxu0 %v78
    %1833 = vmatprep.subr.mxu0 %v76
    %1834 = vmatpush1.msra.mxu0 %v75
    %1835 = vmatprep.subr.mxu0 %v73
    %1836 = vmatpush1.msra.mxu0 %v72
    %1837 = vmatprep.subr.mxu0 %v70
    %1838 = vmatpush1.msra.mxu0 %v69
    %1839 = vmatprep.subr.mxu0 %v67
    %1840 = vmatpush1.msra.mxu0 %v66
    %1841 = vmatprep.subr.mxu0 %v64
    %1842 = vmatpush1.msra.mxu0 %v63
    %1843 = vmatprep.subr.mxu0 %v61
    %1844 = vmatpush1.msra.mxu0 %v60
    %1845 = vmatprep.subr.mxu0 %v58
    %1846 = vmatpush1.msra.mxu0 %v57
    %1847 = vmatprep.subr.mxu0 %v55
    %1848 = vmatpush1.msra.mxu0 %v54
    %1849 = vmatprep.subr.mxu0 %v52
    %1850 = vmatpush1.msra.mxu0 %v51
    %1851 = vmatprep.subr.mxu0 %v49
    %1852 = vmatpush1.msra.mxu0 %v48
    %1853 = vmatprep.subr.mxu0 %v46
    %1854 = vmatpush1.msra.mxu0 %v45
    %1855 = vmatprep.subr.mxu0 %v43
    %1856 = vmatpush1.msra.mxu0 %v42
    %1857 = vmatprep.subr.mxu0 0.0
    %1858 = vmatpush2.msra.mxu0 0.0
    %1859 = vmatprep.subr.mxu0 0.0
    %1860 = vmatpush2.msra.mxu0 0.0
    %1861 = vmatprep.subr.mxu0 0.0
    %1862 = vmatpush2.msra.mxu0 0.0
    %1863 = vmatprep.subr.mxu0 0.0
    %1864 = vmatpush2.msra.mxu0 0.0
    %1865 = vmatprep.subr.mxu0 0.0
    %1866 = vmatpush2.msra.mxu0 0.0
    %1867 = vmatprep.subr.mxu0 0.0
    %1868 = vmatpush2.msra.mxu0 0.0
    %1869 = vmatprep.subr.mxu0 0.0
    %1870 = vmatpush2.msra.mxu0 0.0
    %1871 = vmatprep.subr.mxu0 0.0
    %1872 = vmatpush2.msra.mxu0 0.0
    %1873 = vmatprep.subr.mxu0 0.0
    %1874 = vmatpush2.msra.mxu0 0.0
    %1875 = vmatprep.subr.mxu0 0.0
    %1876 = vmatpush2.msra.mxu0 0.0
    %1877 = vmatprep.subr.mxu0 0.0
    %1878 = vmatpush2.msra.mxu0 0.0
    %1879 = vmatprep.subr.mxu0 0.0
    %1880 = vmatpush2.msra.mxu0 0.0
    %1881 = vmatprep.subr.mxu0 0.0
    %1882 = vmatpush2.msra.mxu0 0.0
    %1883 = vmatprep.subr.mxu0 0.0
    %1884 = vmatpush2.msra.mxu0 0.0
    %1885 = vmatprep.subr.mxu0 0.0
    %1886 = vmatpush2.msra.mxu0 0.0
    %1887 = vmatprep.subr.mxu0 0.0
    %1888 = vmatpush2.msra.mxu0 0.0
    %1889 = vmatprep.mubr.f32.mxu0 0.0
    %1890 = vmatmul.mubr.f32.gmra.mxu0 %v1677
    %v1891 = vpop.f32.mrf.mxu0
    %v1892 = vadd.f32 %v112, %v1891
    %v1893 = vpop.f32.mrf.mxu0
    %v1894 = vadd.f32 %v116, %v1893
    %1895 = vdwg.mxu0
    %1896 = vmatprep.subr.mxu0 0.0
    %1897 = vmatpush1.msra.mxu0 %v89
    %1898 = vmatprep.subr.mxu0 0.0
    %1899 = vmatpush1.msra.mxu0 %v86
    %1900 = vmatprep.subr.mxu0 0.0
    %1901 = vmatpush1.msra.mxu0 %v83
    %1902 = vmatprep.subr.mxu0 0.0
    %1903 = vmatpush1.msra.mxu0 %v80
    %1904 = vmatprep.subr.mxu0 0.0
    %1905 = vmatpush1.msra.mxu0 %v77
    %1906 = vmatprep.subr.mxu0 0.0
    %1907 = vmatpush1.msra.mxu0 %v74
    %1908 = vmatprep.subr.mxu0 0.0
    %1909 = vmatpush1.msra.mxu0 %v71
    %1910 = vmatprep.subr.mxu0 0.0
    %1911 = vmatpush1.msra.mxu0 %v68
    %1912 = vmatprep.subr.mxu0 0.0
    %1913 = vmatpush1.msra.mxu0 %v65
    %1914 = vmatprep.subr.mxu0 0.0
    %1915 = vmatpush1.msra.mxu0 %v62
    %1916 = vmatprep.subr.mxu0 0.0
    %1917 = vmatpush1.msra.mxu0 %v59
    %1918 = vmatprep.subr.mxu0 0.0
    %1919 = vmatpush1.msra.mxu0 %v56
    %1920 = vmatprep.subr.mxu0 0.0
    %1921 = vmatpush1.msra.mxu0 %v53
    %1922 = vmatprep.subr.mxu0 0.0
    %1923 = vmatpush1.msra.mxu0 %v50
    %1924 = vmatprep.subr.mxu0 0.0
    %1925 = vmatpush1.msra.mxu0 %v47
    %1926 = vmatprep.subr.mxu0 0.0
    %1927 = vmatpush1.msra.mxu0 %v44
    %1928 = vmatprep.subr.mxu0 0.0
    %1929 = vmatpush2.msra.mxu0 0.0
    %1930 = vmatprep.subr.mxu0 0.0
    %1931 = vmatpush2.msra.mxu0 0.0
    %1932 = vmatprep.subr.mxu0 0.0
    %1933 = vmatpush2.msra.mxu0 0.0
    %1934 = vmatprep.subr.mxu0 0.0
    %1935 = vmatpush2.msra.mxu0 0.0
    %1936 = vmatprep.subr.mxu0 0.0
    %1937 = vmatpush2.msra.mxu0 0.0
    %1938 = vmatprep.subr.mxu0 0.0
    %1939 = vmatpush2.msra.mxu0 0.0
    %1940 = vmatprep.subr.mxu0 0.0
    %1941 = vmatpush2.msra.mxu0 0.0
    %1942 = vmatprep.subr.mxu0 0.0
    %1943 = vmatpush2.msra.mxu0 0.0
    %1944 = vmatprep.subr.mxu0 0.0
    %1945 = vmatpush2.msra.mxu0 0.0
    %1946 = vmatprep.subr.mxu0 0.0
    %1947 = vmatpush2.msra.mxu0 0.0
    %1948 = vmatprep.subr.mxu0 0.0
    %1949 = vmatpush2.msra.mxu0 0.0
    %1950 = vmatprep.subr.mxu0 0.0
    %1951 = vmatpush2.msra.mxu0 0.0
    %1952 = vmatprep.subr.mxu0 0.0
    %1953 = vmatpush2.msra.mxu0 0.0
    %1954 = vmatprep.subr.mxu0 0.0
    %1955 = vmatpush2.msra.mxu0 0.0
    %1956 = vmatprep.subr.mxu0 0.0
    %1957 = vmatpush2.msra.mxu0 0.0
    %1958 = vmatprep.subr.mxu0 0.0
    %1959 = vmatpush2.msra.mxu0 0.0
    %1960 = vmatprep.mubr.f32.mxu0 0.0
    %1961 = vmatmul.mubr.f32.gmra.mxu0 %v1677
    %v1962 = vpop.f32.mrf.mxu0
    %v1963 = vadd.f32 %v120, %v1962
    %v1964 = vpop.f32.mrf.mxu0
    %1965 = vdwg.mxu0
    %v1966 = vadd.f32 %v1751, %v1892
    %v1967 = vxor.u32 %v1966, 2147483648
    %v1968 = vmul.f32 %v1967, 1.442695
    %v1969 = vpow.pop %v1968
    %v1970 = vadd.f32 %v1969, 1.0
    %v1971 = vrcp.pop %v1970
    %v1972 = vmul.f32 1.0, %v1971
    %v1973 = vadd.f32 %v1753, %v1894
    %v1974 = vxor.u32 %v1973, 2147483648
    %v1975 = vmul.f32 %v1974, 1.442695
    %v1976 = vpow.pop %v1975
    %v1977 = vadd.f32 %v1976, 1.0
    %v1978 = vrcp.pop %v1977
    %v1979 = vmul.f32 1.0, %v1978
    %v1980 = vmul.f32 %v1972, %v1963
    %v1981 = vadd.f32 %v1822, %v1980
    %v1982 = vtanh.pop %v1981
    %v1983 = vsub.f32 1.0, %v1979
    %v1984 = vmul.f32 %v1983, %v1982
    %v1985 = vmul.f32 %v1979, %v1677
    %v1986 = vadd.f32 %v1984, %v1985
    %1987 = vst [vmem:[#allocation2 + $0xa] sm:$0x3] %v1986
    %s1988 = scalar_lea.vmem %s0, 12
    %v1989 = vld [vmem:[%s1988] sm:$0x3]
    %v1991 = vsel %vm128, %v1989, 0
    %1993 = vmatprep.subr.mxu0 0.0
    %1994 = vmatpush1.msra.mxu0 0.0
    %1995 = vmatprep.subr.mxu0 0.0
    %1996 = vmatpush1.msra.mxu0 0.0
    %1997 = vmatprep.subr.mxu0 0.0
    %1998 = vmatpush1.msra.mxu0 0.0
    %1999 = vmatprep.subr.mxu0 0.0
    %2000 = vmatpush1.msra.mxu0 0.0
    %2001 = vmatprep.subr.mxu0 0.0
    %2002 = vmatpush1.msra.mxu0 0.0
    %2003 = vmatprep.subr.mxu0 0.0
    %2004 = vmatpush1.msra.mxu0 0.0
    %2005 = vmatprep.subr.mxu0 0.0
    %2006 = vmatpush1.msra.mxu0 0.0
    %2007 = vmatprep.subr.mxu0 0.0
    %2008 = vmatpush1.msra.mxu0 0.0
    %2009 = vmatprep.subr.mxu0 0.0
    %2010 = vmatpush1.msra.mxu0 0.0
    %2011 = vmatprep.subr.mxu0 0.0
    %2012 = vmatpush1.msra.mxu0 0.0
    %2013 = vmatprep.subr.mxu0 0.0
    %2014 = vmatpush1.msra.mxu0 0.0
    %2015 = vmatprep.subr.mxu0 0.0
    %2016 = vmatpush1.msra.mxu0 0.0
    %2017 = vmatprep.subr.mxu0 0.0
    %2018 = vmatpush1.msra.mxu0 0.0
    %2019 = vmatprep.subr.mxu0 0.0
    %2020 = vmatpush1.msra.mxu0 0.0
    %2021 = vmatprep.subr.mxu0 0.0
    %2022 = vmatpush1.msra.mxu0 0.0
    %2023 = vmatprep.subr.mxu0 %v135
    %2024 = vmatpush1.msra.mxu0 %v133
    %2025 = vmatprep.subr.mxu0 0.0
    %2026 = vmatpush2.msra.mxu0 0.0
    %2027 = vmatprep.subr.mxu0 0.0
    %2028 = vmatpush2.msra.mxu0 0.0
    %2029 = vmatprep.subr.mxu0 0.0
    %2030 = vmatpush2.msra.mxu0 0.0
    %2031 = vmatprep.subr.mxu0 0.0
    %2032 = vmatpush2.msra.mxu0 0.0
    %2033 = vmatprep.subr.mxu0 0.0
    %2034 = vmatpush2.msra.mxu0 0.0
    %2035 = vmatprep.subr.mxu0 0.0
    %2036 = vmatpush2.msra.mxu0 0.0
    %2037 = vmatprep.subr.mxu0 0.0
    %2038 = vmatpush2.msra.mxu0 0.0
    %2039 = vmatprep.subr.mxu0 0.0
    %2040 = vmatpush2.msra.mxu0 0.0
    %2041 = vmatprep.subr.mxu0 0.0
    %2042 = vmatpush2.msra.mxu0 0.0
    %2043 = vmatprep.subr.mxu0 0.0
    %2044 = vmatpush2.msra.mxu0 0.0
    %2045 = vmatprep.subr.mxu0 0.0
    %2046 = vmatpush2.msra.mxu0 0.0
    %2047 = vmatprep.subr.mxu0 0.0
    %2048 = vmatpush2.msra.mxu0 0.0
    %2049 = vmatprep.subr.mxu0 0.0
    %2050 = vmatpush2.msra.mxu0 0.0
    %2051 = vmatprep.subr.mxu0 0.0
    %2052 = vmatpush2.msra.mxu0 0.0
    %2053 = vmatprep.subr.mxu0 0.0
    %2054 = vmatpush2.msra.mxu0 0.0
    %2055 = vmatprep.subr.mxu0 0.0
    %2056 = vmatpush2.msra.mxu0 0.0
    %2057 = vmatprep.mubr.f32.mxu0 0.0
    %2058 = vmatmul.mubr.f32.gmra.mxu0 %v1991
    %v2059 = vpop.f32.mrf.mxu0
    %v2060 = vadd.f32 %v95, %v2059
    %v2061 = vpop.f32.mrf.mxu0
    %v2062 = vadd.f32 %v99, %v2061
    %2063 = vdwg.mxu0
    %2064 = vmatprep.subr.mxu0 0.0
    %2065 = vmatpush1.msra.mxu0 0.0
    %2066 = vmatprep.subr.mxu0 0.0
    %2067 = vmatpush1.msra.mxu0 0.0
    %2068 = vmatprep.subr.mxu0 0.0
    %2069 = vmatpush1.msra.mxu0 0.0
    %2070 = vmatprep.subr.mxu0 0.0
    %2071 = vmatpush1.msra.mxu0 0.0
    %2072 = vmatprep.subr.mxu0 0.0
    %2073 = vmatpush1.msra.mxu0 0.0
    %2074 = vmatprep.subr.mxu0 0.0
    %2075 = vmatpush1.msra.mxu0 0.0
    %2076 = vmatprep.subr.mxu0 0.0
    %2077 = vmatpush1.msra.mxu0 0.0
    %2078 = vmatprep.subr.mxu0 0.0
    %2079 = vmatpush1.msra.mxu0 0.0
    %2080 = vmatprep.subr.mxu0 0.0
    %2081 = vmatpush1.msra.mxu0 0.0
    %2082 = vmatprep.subr.mxu0 0.0
    %2083 = vmatpush1.msra.mxu0 0.0
    %2084 = vmatprep.subr.mxu0 0.0
    %2085 = vmatpush1.msra.mxu0 0.0
    %2086 = vmatprep.subr.mxu0 0.0
    %2087 = vmatpush1.msra.mxu0 0.0
    %2088 = vmatprep.subr.mxu0 0.0
    %2089 = vmatpush1.msra.mxu0 0.0
    %2090 = vmatprep.subr.mxu0 0.0
    %2091 = vmatpush1.msra.mxu0 0.0
    %2092 = vmatprep.subr.mxu0 0.0
    %2093 = vmatpush1.msra.mxu0 0.0
    %2094 = vmatprep.subr.mxu0 0.0
    %2095 = vmatpush1.msra.mxu0 %v137
    %2096 = vmatprep.subr.mxu0 0.0
    %2097 = vmatpush2.msra.mxu0 0.0
    %2098 = vmatprep.subr.mxu0 0.0
    %2099 = vmatpush2.msra.mxu0 0.0
    %2100 = vmatprep.subr.mxu0 0.0
    %2101 = vmatpush2.msra.mxu0 0.0
    %2102 = vmatprep.subr.mxu0 0.0
    %2103 = vmatpush2.msra.mxu0 0.0
    %2104 = vmatprep.subr.mxu0 0.0
    %2105 = vmatpush2.msra.mxu0 0.0
    %2106 = vmatprep.subr.mxu0 0.0
    %2107 = vmatpush2.msra.mxu0 0.0
    %2108 = vmatprep.subr.mxu0 0.0
    %2109 = vmatpush2.msra.mxu0 0.0
    %2110 = vmatprep.subr.mxu0 0.0
    %2111 = vmatpush2.msra.mxu0 0.0
    %2112 = vmatprep.subr.mxu0 0.0
    %2113 = vmatpush2.msra.mxu0 0.0
    %2114 = vmatprep.subr.mxu0 0.0
    %2115 = vmatpush2.msra.mxu0 0.0
    %2116 = vmatprep.subr.mxu0 0.0
    %2117 = vmatpush2.msra.mxu0 0.0
    %2118 = vmatprep.subr.mxu0 0.0
    %2119 = vmatpush2.msra.mxu0 0.0
    %2120 = vmatprep.subr.mxu0 0.0
    %2121 = vmatpush2.msra.mxu0 0.0
    %2122 = vmatprep.subr.mxu0 0.0
    %2123 = vmatpush2.msra.mxu0 0.0
    %2124 = vmatprep.subr.mxu0 0.0
    %2125 = vmatpush2.msra.mxu0 0.0
    %2126 = vmatprep.subr.mxu0 0.0
    %2127 = vmatpush2.msra.mxu0 0.0
    %2128 = vmatprep.mubr.f32.mxu0 0.0
    %2129 = vmatmul.mubr.f32.gmra.mxu0 %v1991
    %v2130 = vpop.f32.mrf.mxu0
    %v2131 = vadd.f32 %v103, %v2130
    %v2132 = vpop.f32.mrf.mxu0
    %2133 = vdwg.mxu0
    %2134 = vmatprep.subr.mxu0 %v88
    %2135 = vmatpush1.msra.mxu0 %v87
    %2136 = vmatprep.subr.mxu0 %v85
    %2137 = vmatpush1.msra.mxu0 %v84
    %2138 = vmatprep.subr.mxu0 %v82
    %2139 = vmatpush1.msra.mxu0 %v81
    %2140 = vmatprep.subr.mxu0 %v79
    %2141 = vmatpush1.msra.mxu0 %v78
    %2142 = vmatprep.subr.mxu0 %v76
    %2143 = vmatpush1.msra.mxu0 %v75
    %2144 = vmatprep.subr.mxu0 %v73
    %2145 = vmatpush1.msra.mxu0 %v72
    %2146 = vmatprep.subr.mxu0 %v70
    %2147 = vmatpush1.msra.mxu0 %v69
    %2148 = vmatprep.subr.mxu0 %v67
    %2149 = vmatpush1.msra.mxu0 %v66
    %2150 = vmatprep.subr.mxu0 %v64
    %2151 = vmatpush1.msra.mxu0 %v63
    %2152 = vmatprep.subr.mxu0 %v61
    %2153 = vmatpush1.msra.mxu0 %v60
    %2154 = vmatprep.subr.mxu0 %v58
    %2155 = vmatpush1.msra.mxu0 %v57
    %2156 = vmatprep.subr.mxu0 %v55
    %2157 = vmatpush1.msra.mxu0 %v54
    %2158 = vmatprep.subr.mxu0 %v52
    %2159 = vmatpush1.msra.mxu0 %v51
    %2160 = vmatprep.subr.mxu0 %v49
    %2161 = vmatpush1.msra.mxu0 %v48
    %2162 = vmatprep.subr.mxu0 %v46
    %2163 = vmatpush1.msra.mxu0 %v45
    %2164 = vmatprep.subr.mxu0 %v43
    %2165 = vmatpush1.msra.mxu0 %v42
    %2166 = vmatprep.subr.mxu0 0.0
    %2167 = vmatpush2.msra.mxu0 0.0
    %2168 = vmatprep.subr.mxu0 0.0
    %2169 = vmatpush2.msra.mxu0 0.0
    %2170 = vmatprep.subr.mxu0 0.0
    %2171 = vmatpush2.msra.mxu0 0.0
    %2172 = vmatprep.subr.mxu0 0.0
    %2173 = vmatpush2.msra.mxu0 0.0
    %2174 = vmatprep.subr.mxu0 0.0
    %2175 = vmatpush2.msra.mxu0 0.0
    %2176 = vmatprep.subr.mxu0 0.0
    %2177 = vmatpush2.msra.mxu0 0.0
    %2178 = vmatprep.subr.mxu0 0.0
    %2179 = vmatpush2.msra.mxu0 0.0
    %2180 = vmatprep.subr.mxu0 0.0
    %2181 = vmatpush2.msra.mxu0 0.0
    %2182 = vmatprep.subr.mxu0 0.0
    %2183 = vmatpush2.msra.mxu0 0.0
    %2184 = vmatprep.subr.mxu0 0.0
    %2185 = vmatpush2.msra.mxu0 0.0
    %2186 = vmatprep.subr.mxu0 0.0
    %2187 = vmatpush2.msra.mxu0 0.0
    %2188 = vmatprep.subr.mxu0 0.0
    %2189 = vmatpush2.msra.mxu0 0.0
    %2190 = vmatprep.subr.mxu0 0.0
    %2191 = vmatpush2.msra.mxu0 0.0
    %2192 = vmatprep.subr.mxu0 0.0
    %2193 = vmatpush2.msra.mxu0 0.0
    %2194 = vmatprep.subr.mxu0 0.0
    %2195 = vmatpush2.msra.mxu0 0.0
    %2196 = vmatprep.subr.mxu0 0.0
    %2197 = vmatpush2.msra.mxu0 0.0
    %2198 = vmatprep.mubr.f32.mxu0 0.0
    %2199 = vmatmul.mubr.f32.gmra.mxu0 %v1986
    %v2200 = vpop.f32.mrf.mxu0
    %v2201 = vadd.f32 %v112, %v2200
    %v2202 = vpop.f32.mrf.mxu0
    %v2203 = vadd.f32 %v116, %v2202
    %2204 = vdwg.mxu0
    %2205 = vmatprep.subr.mxu0 0.0
    %2206 = vmatpush1.msra.mxu0 %v89
    %2207 = vmatprep.subr.mxu0 0.0
    %2208 = vmatpush1.msra.mxu0 %v86
    %2209 = vmatprep.subr.mxu0 0.0
    %2210 = vmatpush1.msra.mxu0 %v83
    %2211 = vmatprep.subr.mxu0 0.0
    %2212 = vmatpush1.msra.mxu0 %v80
    %2213 = vmatprep.subr.mxu0 0.0
    %2214 = vmatpush1.msra.mxu0 %v77
    %2215 = vmatprep.subr.mxu0 0.0
    %2216 = vmatpush1.msra.mxu0 %v74
    %2217 = vmatprep.subr.mxu0 0.0
    %2218 = vmatpush1.msra.mxu0 %v71
    %2219 = vmatprep.subr.mxu0 0.0
    %2220 = vmatpush1.msra.mxu0 %v68
    %2221 = vmatprep.subr.mxu0 0.0
    %2222 = vmatpush1.msra.mxu0 %v65
    %2223 = vmatprep.subr.mxu0 0.0
    %2224 = vmatpush1.msra.mxu0 %v62
    %2225 = vmatprep.subr.mxu0 0.0
    %2226 = vmatpush1.msra.mxu0 %v59
    %2227 = vmatprep.subr.mxu0 0.0
    %2228 = vmatpush1.msra.mxu0 %v56
    %2229 = vmatprep.subr.mxu0 0.0
    %2230 = vmatpush1.msra.mxu0 %v53
    %2231 = vmatprep.subr.mxu0 0.0
    %2232 = vmatpush1.msra.mxu0 %v50
    %2233 = vmatprep.subr.mxu0 0.0
    %2234 = vmatpush1.msra.mxu0 %v47
    %2235 = vmatprep.subr.mxu0 0.0
    %2236 = vmatpush1.msra.mxu0 %v44
    %2237 = vmatprep.subr.mxu0 0.0
    %2238 = vmatpush2.msra.mxu0 0.0
    %2239 = vmatprep.subr.mxu0 0.0
    %2240 = vmatpush2.msra.mxu0 0.0
    %2241 = vmatprep.subr.mxu0 0.0
    %2242 = vmatpush2.msra.mxu0 0.0
    %2243 = vmatprep.subr.mxu0 0.0
    %2244 = vmatpush2.msra.mxu0 0.0
    %2245 = vmatprep.subr.mxu0 0.0
    %2246 = vmatpush2.msra.mxu0 0.0
    %2247 = vmatprep.subr.mxu0 0.0
    %2248 = vmatpush2.msra.mxu0 0.0
    %2249 = vmatprep.subr.mxu0 0.0
    %2250 = vmatpush2.msra.mxu0 0.0
    %2251 = vmatprep.subr.mxu0 0.0
    %2252 = vmatpush2.msra.mxu0 0.0
    %2253 = vmatprep.subr.mxu0 0.0
    %2254 = vmatpush2.msra.mxu0 0.0
    %2255 = vmatprep.subr.mxu0 0.0
    %2256 = vmatpush2.msra.mxu0 0.0
    %2257 = vmatprep.subr.mxu0 0.0
    %2258 = vmatpush2.msra.mxu0 0.0
    %2259 = vmatprep.subr.mxu0 0.0
    %2260 = vmatpush2.msra.mxu0 0.0
    %2261 = vmatprep.subr.mxu0 0.0
    %2262 = vmatpush2.msra.mxu0 0.0
    %2263 = vmatprep.subr.mxu0 0.0
    %2264 = vmatpush2.msra.mxu0 0.0
    %2265 = vmatprep.subr.mxu0 0.0
    %2266 = vmatpush2.msra.mxu0 0.0
    %2267 = vmatprep.subr.mxu0 0.0
    %2268 = vmatpush2.msra.mxu0 0.0
    %2269 = vmatprep.mubr.f32.mxu0 0.0
    %2270 = vmatmul.mubr.f32.gmra.mxu0 %v1986
    %v2271 = vpop.f32.mrf.mxu0
    %v2272 = vadd.f32 %v120, %v2271
    %v2273 = vpop.f32.mrf.mxu0
    %2274 = vdwg.mxu0
    %v2275 = vadd.f32 %v2060, %v2201
    %v2276 = vxor.u32 %v2275, 2147483648
    %v2277 = vmul.f32 %v2276, 1.442695
    %v2278 = vpow.pop %v2277
    %v2279 = vadd.f32 %v2278, 1.0
    %v2280 = vrcp.pop %v2279
    %v2281 = vmul.f32 1.0, %v2280
    %v2282 = vadd.f32 %v2062, %v2203
    %v2283 = vxor.u32 %v2282, 2147483648
    %v2284 = vmul.f32 %v2283, 1.442695
    %v2285 = vpow.pop %v2284
    %v2286 = vadd.f32 %v2285, 1.0
    %v2287 = vrcp.pop %v2286
    %v2288 = vmul.f32 1.0, %v2287
    %v2289 = vmul.f32 %v2281, %v2272
    %v2290 = vadd.f32 %v2131, %v2289
    %v2291 = vtanh.pop %v2290
    %v2292 = vsub.f32 1.0, %v2288
    %v2293 = vmul.f32 %v2292, %v2291
    %v2294 = vmul.f32 %v2288, %v1986
    %v2295 = vadd.f32 %v2293, %v2294
    %2296 = vst [vmem:[#allocation2 + $0xc] sm:$0x3] %v2295
    %s2297 = scalar_lea.vmem %s0, 14
    %v2298 = vld [vmem:[%s2297] sm:$0x3]
    %v2300 = vsel %vm128, %v2298, 0
    %2302 = vmatprep.subr.mxu0 0.0
    %2303 = vmatpush1.msra.mxu0 0.0
    %2304 = vmatprep.subr.mxu0 0.0
    %2305 = vmatpush1.msra.mxu0 0.0
    %2306 = vmatprep.subr.mxu0 0.0
    %2307 = vmatpush1.msra.mxu0 0.0
    %2308 = vmatprep.subr.mxu0 0.0
    %2309 = vmatpush1.msra.mxu0 0.0
    %2310 = vmatprep.subr.mxu0 0.0
    %2311 = vmatpush1.msra.mxu0 0.0
    %2312 = vmatprep.subr.mxu0 0.0
    %2313 = vmatpush1.msra.mxu0 0.0
    %2314 = vmatprep.subr.mxu0 0.0
    %2315 = vmatpush1.msra.mxu0 0.0
    %2316 = vmatprep.subr.mxu0 0.0
    %2317 = vmatpush1.msra.mxu0 0.0
    %2318 = vmatprep.subr.mxu0 0.0
    %2319 = vmatpush1.msra.mxu0 0.0
    %2320 = vmatprep.subr.mxu0 0.0
    %2321 = vmatpush1.msra.mxu0 0.0
    %2322 = vmatprep.subr.mxu0 0.0
    %2323 = vmatpush1.msra.mxu0 0.0
    %2324 = vmatprep.subr.mxu0 0.0
    %2325 = vmatpush1.msra.mxu0 0.0
    %2326 = vmatprep.subr.mxu0 0.0
    %2327 = vmatpush1.msra.mxu0 0.0
    %2328 = vmatprep.subr.mxu0 0.0
    %2329 = vmatpush1.msra.mxu0 0.0
    %2330 = vmatprep.subr.mxu0 0.0
    %2331 = vmatpush1.msra.mxu0 0.0
    %2332 = vmatprep.subr.mxu0 %v135
    %2333 = vmatpush1.msra.mxu0 %v133
    %2334 = vmatprep.subr.mxu0 0.0
    %2335 = vmatpush2.msra.mxu0 0.0
    %2336 = vmatprep.subr.mxu0 0.0
    %2337 = vmatpush2.msra.mxu0 0.0
    %2338 = vmatprep.subr.mxu0 0.0
    %2339 = vmatpush2.msra.mxu0 0.0
    %2340 = vmatprep.subr.mxu0 0.0
    %2341 = vmatpush2.msra.mxu0 0.0
    %2342 = vmatprep.subr.mxu0 0.0
    %2343 = vmatpush2.msra.mxu0 0.0
    %2344 = vmatprep.subr.mxu0 0.0
    %2345 = vmatpush2.msra.mxu0 0.0
    %2346 = vmatprep.subr.mxu0 0.0
    %2347 = vmatpush2.msra.mxu0 0.0
    %2348 = vmatprep.subr.mxu0 0.0
    %2349 = vmatpush2.msra.mxu0 0.0
    %2350 = vmatprep.subr.mxu0 0.0
    %2351 = vmatpush2.msra.mxu0 0.0
    %2352 = vmatprep.subr.mxu0 0.0
    %2353 = vmatpush2.msra.mxu0 0.0
    %2354 = vmatprep.subr.mxu0 0.0
    %2355 = vmatpush2.msra.mxu0 0.0
    %2356 = vmatprep.subr.mxu0 0.0
    %2357 = vmatpush2.msra.mxu0 0.0
    %2358 = vmatprep.subr.mxu0 0.0
    %2359 = vmatpush2.msra.mxu0 0.0
    %2360 = vmatprep.subr.mxu0 0.0
    %2361 = vmatpush2.msra.mxu0 0.0
    %2362 = vmatprep.subr.mxu0 0.0
    %2363 = vmatpush2.msra.mxu0 0.0
    %2364 = vmatprep.subr.mxu0 0.0
    %2365 = vmatpush2.msra.mxu0 0.0
    %2366 = vmatprep.mubr.f32.mxu0 0.0
    %2367 = vmatmul.mubr.f32.gmra.mxu0 %v2300
    %v2368 = vpop.f32.mrf.mxu0
    %v2369 = vadd.f32 %v95, %v2368
    %v2370 = vpop.f32.mrf.mxu0
    %v2371 = vadd.f32 %v99, %v2370
    %2372 = vdwg.mxu0
    %2373 = vmatprep.subr.mxu0 0.0
    %2374 = vmatpush1.msra.mxu0 0.0
    %2375 = vmatprep.subr.mxu0 0.0
    %2376 = vmatpush1.msra.mxu0 0.0
    %2377 = vmatprep.subr.mxu0 0.0
    %2378 = vmatpush1.msra.mxu0 0.0
    %2379 = vmatprep.subr.mxu0 0.0
    %2380 = vmatpush1.msra.mxu0 0.0
    %2381 = vmatprep.subr.mxu0 0.0
    %2382 = vmatpush1.msra.mxu0 0.0
    %2383 = vmatprep.subr.mxu0 0.0
    %2384 = vmatpush1.msra.mxu0 0.0
    %2385 = vmatprep.subr.mxu0 0.0
    %2386 = vmatpush1.msra.mxu0 0.0
    %2387 = vmatprep.subr.mxu0 0.0
    %2388 = vmatpush1.msra.mxu0 0.0
    %2389 = vmatprep.subr.mxu0 0.0
    %2390 = vmatpush1.msra.mxu0 0.0
    %2391 = vmatprep.subr.mxu0 0.0
    %2392 = vmatpush1.msra.mxu0 0.0
    %2393 = vmatprep.subr.mxu0 0.0
    %2394 = vmatpush1.msra.mxu0 0.0
    %2395 = vmatprep.subr.mxu0 0.0
    %2396 = vmatpush1.msra.mxu0 0.0
    %2397 = vmatprep.subr.mxu0 0.0
    %2398 = vmatpush1.msra.mxu0 0.0
    %2399 = vmatprep.subr.mxu0 0.0
    %2400 = vmatpush1.msra.mxu0 0.0
    %2401 = vmatprep.subr.mxu0 0.0
    %2402 = vmatpush1.msra.mxu0 0.0
    %2403 = vmatprep.subr.mxu0 0.0
    %2404 = vmatpush1.msra.mxu0 %v137
    %2405 = vmatprep.subr.mxu0 0.0
    %2406 = vmatpush2.msra.mxu0 0.0
    %2407 = vmatprep.subr.mxu0 0.0
    %2408 = vmatpush2.msra.mxu0 0.0
    %2409 = vmatprep.subr.mxu0 0.0
    %2410 = vmatpush2.msra.mxu0 0.0
    %2411 = vmatprep.subr.mxu0 0.0
    %2412 = vmatpush2.msra.mxu0 0.0
    %2413 = vmatprep.subr.mxu0 0.0
    %2414 = vmatpush2.msra.mxu0 0.0
    %2415 = vmatprep.subr.mxu0 0.0
    %2416 = vmatpush2.msra.mxu0 0.0
    %2417 = vmatprep.subr.mxu0 0.0
    %2418 = vmatpush2.msra.mxu0 0.0
    %2419 = vmatprep.subr.mxu0 0.0
    %2420 = vmatpush2.msra.mxu0 0.0
    %2421 = vmatprep.subr.mxu0 0.0
    %2422 = vmatpush2.msra.mxu0 0.0
    %2423 = vmatprep.subr.mxu0 0.0
    %2424 = vmatpush2.msra.mxu0 0.0
    %2425 = vmatprep.subr.mxu0 0.0
    %2426 = vmatpush2.msra.mxu0 0.0
    %2427 = vmatprep.subr.mxu0 0.0
    %2428 = vmatpush2.msra.mxu0 0.0
    %2429 = vmatprep.subr.mxu0 0.0
    %2430 = vmatpush2.msra.mxu0 0.0
    %2431 = vmatprep.subr.mxu0 0.0
    %2432 = vmatpush2.msra.mxu0 0.0
    %2433 = vmatprep.subr.mxu0 0.0
    %2434 = vmatpush2.msra.mxu0 0.0
    %2435 = vmatprep.subr.mxu0 0.0
    %2436 = vmatpush2.msra.mxu0 0.0
    %2437 = vmatprep.mubr.f32.mxu0 0.0
    %2438 = vmatmul.mubr.f32.gmra.mxu0 %v2300
    %v2439 = vpop.f32.mrf.mxu0
    %v2440 = vadd.f32 %v103, %v2439
    %v2441 = vpop.f32.mrf.mxu0
    %2442 = vdwg.mxu0
    %2443 = vmatprep.subr.mxu0 %v88
    %2444 = vmatpush1.msra.mxu0 %v87
    %2445 = vmatprep.subr.mxu0 %v85
    %2446 = vmatpush1.msra.mxu0 %v84
    %2447 = vmatprep.subr.mxu0 %v82
    %2448 = vmatpush1.msra.mxu0 %v81
    %2449 = vmatprep.subr.mxu0 %v79
    %2450 = vmatpush1.msra.mxu0 %v78
    %2451 = vmatprep.subr.mxu0 %v76
    %2452 = vmatpush1.msra.mxu0 %v75
    %2453 = vmatprep.subr.mxu0 %v73
    %2454 = vmatpush1.msra.mxu0 %v72
    %2455 = vmatprep.subr.mxu0 %v70
    %2456 = vmatpush1.msra.mxu0 %v69
    %2457 = vmatprep.subr.mxu0 %v67
    %2458 = vmatpush1.msra.mxu0 %v66
    %2459 = vmatprep.subr.mxu0 %v64
    %2460 = vmatpush1.msra.mxu0 %v63
    %2461 = vmatprep.subr.mxu0 %v61
    %2462 = vmatpush1.msra.mxu0 %v60
    %2463 = vmatprep.subr.mxu0 %v58
    %2464 = vmatpush1.msra.mxu0 %v57
    %2465 = vmatprep.subr.mxu0 %v55
    %2466 = vmatpush1.msra.mxu0 %v54
    %2467 = vmatprep.subr.mxu0 %v52
    %2468 = vmatpush1.msra.mxu0 %v51
    %2469 = vmatprep.subr.mxu0 %v49
    %2470 = vmatpush1.msra.mxu0 %v48
    %2471 = vmatprep.subr.mxu0 %v46
    %2472 = vmatpush1.msra.mxu0 %v45
    %2473 = vmatprep.subr.mxu0 %v43
    %2474 = vmatpush1.msra.mxu0 %v42
    %2475 = vmatprep.subr.mxu0 0.0
    %2476 = vmatpush2.msra.mxu0 0.0
    %2477 = vmatprep.subr.mxu0 0.0
    %2478 = vmatpush2.msra.mxu0 0.0
    %2479 = vmatprep.subr.mxu0 0.0
    %2480 = vmatpush2.msra.mxu0 0.0
    %2481 = vmatprep.subr.mxu0 0.0
    %2482 = vmatpush2.msra.mxu0 0.0
    %2483 = vmatprep.subr.mxu0 0.0
    %2484 = vmatpush2.msra.mxu0 0.0
    %2485 = vmatprep.subr.mxu0 0.0
    %2486 = vmatpush2.msra.mxu0 0.0
    %2487 = vmatprep.subr.mxu0 0.0
    %2488 = vmatpush2.msra.mxu0 0.0
    %2489 = vmatprep.subr.mxu0 0.0
    %2490 = vmatpush2.msra.mxu0 0.0
    %2491 = vmatprep.subr.mxu0 0.0
    %2492 = vmatpush2.msra.mxu0 0.0
    %2493 = vmatprep.subr.mxu0 0.0
    %2494 = vmatpush2.msra.mxu0 0.0
    %2495 = vmatprep.subr.mxu0 0.0
    %2496 = vmatpush2.msra.mxu0 0.0
    %2497 = vmatprep.subr.mxu0 0.0
    %2498 = vmatpush2.msra.mxu0 0.0
    %2499 = vmatprep.subr.mxu0 0.0
    %2500 = vmatpush2.msra.mxu0 0.0
    %2501 = vmatprep.subr.mxu0 0.0
    %2502 = vmatpush2.msra.mxu0 0.0
    %2503 = vmatprep.subr.mxu0 0.0
    %2504 = vmatpush2.msra.mxu0 0.0
    %2505 = vmatprep.subr.mxu0 0.0
    %2506 = vmatpush2.msra.mxu0 0.0
    %2507 = vmatprep.mubr.f32.mxu0 0.0
    %2508 = vmatmul.mubr.f32.gmra.mxu0 %v2295
    %v2509 = vpop.f32.mrf.mxu0
    %v2510 = vadd.f32 %v112, %v2509
    %v2511 = vpop.f32.mrf.mxu0
    %v2512 = vadd.f32 %v116, %v2511
    %2513 = vdwg.mxu0
    %2514 = vmatprep.subr.mxu0 0.0
    %2515 = vmatpush1.msra.mxu0 %v89
    %2516 = vmatprep.subr.mxu0 0.0
    %2517 = vmatpush1.msra.mxu0 %v86
    %2518 = vmatprep.subr.mxu0 0.0
    %2519 = vmatpush1.msra.mxu0 %v83
    %2520 = vmatprep.subr.mxu0 0.0
    %2521 = vmatpush1.msra.mxu0 %v80
    %2522 = vmatprep.subr.mxu0 0.0
    %2523 = vmatpush1.msra.mxu0 %v77
    %2524 = vmatprep.subr.mxu0 0.0
    %2525 = vmatpush1.msra.mxu0 %v74
    %2526 = vmatprep.subr.mxu0 0.0
    %2527 = vmatpush1.msra.mxu0 %v71
    %2528 = vmatprep.subr.mxu0 0.0
    %2529 = vmatpush1.msra.mxu0 %v68
    %2530 = vmatprep.subr.mxu0 0.0
    %2531 = vmatpush1.msra.mxu0 %v65
    %2532 = vmatprep.subr.mxu0 0.0
    %2533 = vmatpush1.msra.mxu0 %v62
    %2534 = vmatprep.subr.mxu0 0.0
    %2535 = vmatpush1.msra.mxu0 %v59
    %2536 = vmatprep.subr.mxu0 0.0
    %2537 = vmatpush1.msra.mxu0 %v56
    %2538 = vmatprep.subr.mxu0 0.0
    %2539 = vmatpush1.msra.mxu0 %v53
    %2540 = vmatprep.subr.mxu0 0.0
    %2541 = vmatpush1.msra.mxu0 %v50
    %2542 = vmatprep.subr.mxu0 0.0
    %2543 = vmatpush1.msra.mxu0 %v47
    %2544 = vmatprep.subr.mxu0 0.0
    %2545 = vmatpush1.msra.mxu0 %v44
    %2546 = vmatprep.subr.mxu0 0.0
    %2547 = vmatpush2.msra.mxu0 0.0
    %2548 = vmatprep.subr.mxu0 0.0
    %2549 = vmatpush2.msra.mxu0 0.0
    %2550 = vmatprep.subr.mxu0 0.0
    %2551 = vmatpush2.msra.mxu0 0.0
    %2552 = vmatprep.subr.mxu0 0.0
    %2553 = vmatpush2.msra.mxu0 0.0
    %2554 = vmatprep.subr.mxu0 0.0
    %2555 = vmatpush2.msra.mxu0 0.0
    %2556 = vmatprep.subr.mxu0 0.0
    %2557 = vmatpush2.msra.mxu0 0.0
    %2558 = vmatprep.subr.mxu0 0.0
    %2559 = vmatpush2.msra.mxu0 0.0
    %2560 = vmatprep.subr.mxu0 0.0
    %2561 = vmatpush2.msra.mxu0 0.0
    %2562 = vmatprep.subr.mxu0 0.0
    %2563 = vmatpush2.msra.mxu0 0.0
    %2564 = vmatprep.subr.mxu0 0.0
    %2565 = vmatpush2.msra.mxu0 0.0
    %2566 = vmatprep.subr.mxu0 0.0
    %2567 = vmatpush2.msra.mxu0 0.0
    %2568 = vmatprep.subr.mxu0 0.0
    %2569 = vmatpush2.msra.mxu0 0.0
    %2570 = vmatprep.subr.mxu0 0.0
    %2571 = vmatpush2.msra.mxu0 0.0
    %2572 = vmatprep.subr.mxu0 0.0
    %2573 = vmatpush2.msra.mxu0 0.0
    %2574 = vmatprep.subr.mxu0 0.0
    %2575 = vmatpush2.msra.mxu0 0.0
    %2576 = vmatprep.subr.mxu0 0.0
    %2577 = vmatpush2.msra.mxu0 0.0
    %2578 = vmatprep.mubr.f32.mxu0 0.0
    %2579 = vmatmul.mubr.f32.gmra.mxu0 %v2295
    %v2580 = vpop.f32.mrf.mxu0
    %v2581 = vadd.f32 %v120, %v2580
    %v2582 = vpop.f32.mrf.mxu0
    %2583 = vdwg.mxu0
    %v2584 = vadd.f32 %v2369, %v2510
    %v2585 = vxor.u32 %v2584, 2147483648
    %v2586 = vmul.f32 %v2585, 1.442695
    %v2587 = vpow.pop %v2586
    %v2588 = vadd.f32 %v2587, 1.0
    %v2589 = vrcp.pop %v2588
    %v2590 = vmul.f32 1.0, %v2589
    %v2591 = vadd.f32 %v2371, %v2512
    %v2592 = vxor.u32 %v2591, 2147483648
    %v2593 = vmul.f32 %v2592, 1.442695
    %v2594 = vpow.pop %v2593
    %v2595 = vadd.f32 %v2594, 1.0
    %v2596 = vrcp.pop %v2595
    %v2597 = vmul.f32 1.0, %v2596
    %v2598 = vmul.f32 %v2590, %v2581
    %v2599 = vadd.f32 %v2440, %v2598
    %v2600 = vtanh.pop %v2599
    %v2601 = vsub.f32 1.0, %v2597
    %v2602 = vmul.f32 %v2601, %v2600
    %v2603 = vmul.f32 %v2597, %v2295
    %v2604 = vadd.f32 %v2602, %v2603
    %2605 = vst [vmem:[#allocation2 + $0xe] sm:$0x3] %v2604
    %v2606 = vld [vmem:[#allocation2] sm:$0xff]
    %v2607 = vld [vmem:[#allocation2 + $0x8] sm:$0xff]
    %v2608 = vld [vmem:[%s5] sm:$0xff]
    %v2609 = vld [vmem:[%s5 + $0x8] sm:$0xff]
    %v2610 = vld [vmem:[%s5 + $0x10] sm:$0xff]
    %v2611 = vld [vmem:[%s5 + $0x18] sm:$0xff]
    %v2612 = vld [vmem:[%s5 + $0x20] sm:$0xff]
    %v2613 = vld [vmem:[%s5 + $0x28] sm:$0xff]
    %v2614 = vld [vmem:[%s5 + $0x30] sm:$0xff]
    %v2615 = vld [vmem:[%s5 + $0x38] sm:$0xff]
    %v2616 = vld [vmem:[%s5 + $0x40] sm:$0xff]
    %v2617 = vld [vmem:[%s5 + $0x48] sm:$0xff]
    %v2618 = vld [vmem:[%s5 + $0x50] sm:$0xff]
    %v2619 = vld [vmem:[%s5 + $0x58] sm:$0xff]
    %v2620 = vld [vmem:[%s5 + $0x60] sm:$0xff]
    %v2621 = vld [vmem:[%s5 + $0x68] sm:$0xff]
    %v2622 = vld [vmem:[%s5 + $0x70] sm:$0xff]
    %v2623 = vld [vmem:[%s5 + $0x78] sm:$0xff]
    %v2624 = vld [vmem:[%s6] sm:$0x1]
    %v2626 = vlaneseq
    %v2627 = vshrl.u32 %v2626, 7
    %v2628 = vsub.s32 0, %v2627
    %v2629 = vrot.slane %v2624, %v2628
    %2631 = vmatprep.subr.mxu0 0.0
    %2632 = vmatpush1.msra.mxu0 %v2623
    %2633 = vmatprep.subr.mxu0 0.0
    %2634 = vmatpush1.msra.mxu0 %v2622
    %2635 = vmatprep.subr.mxu0 0.0
    %2636 = vmatpush1.msra.mxu0 %v2621
    %2637 = vmatprep.subr.mxu0 0.0
    %2638 = vmatpush1.msra.mxu0 %v2620
    %2639 = vmatprep.subr.mxu0 0.0
    %2640 = vmatpush1.msra.mxu0 %v2619
    %2641 = vmatprep.subr.mxu0 0.0
    %2642 = vmatpush1.msra.mxu0 %v2618
    %2643 = vmatprep.subr.mxu0 0.0
    %2644 = vmatpush1.msra.mxu0 %v2617
    %2645 = vmatprep.subr.mxu0 0.0
    %2646 = vmatpush1.msra.mxu0 %v2616
    %2647 = vmatprep.subr.mxu0 0.0
    %2648 = vmatpush1.msra.mxu0 %v2615
    %2649 = vmatprep.subr.mxu0 0.0
    %2650 = vmatpush1.msra.mxu0 %v2614
    %2651 = vmatprep.subr.mxu0 0.0
    %2652 = vmatpush1.msra.mxu0 %v2613
    %2653 = vmatprep.subr.mxu0 0.0
    %2654 = vmatpush1.msra.mxu0 %v2612
    %2655 = vmatprep.subr.mxu0 0.0
    %2656 = vmatpush1.msra.mxu0 %v2611
    %2657 = vmatprep.subr.mxu0 0.0
    %2658 = vmatpush1.msra.mxu0 %v2610
    %2659 = vmatprep.subr.mxu0 0.0
    %2660 = vmatpush1.msra.mxu0 %v2609
    %2661 = vmatprep.subr.mxu0 0.0
    %2662 = vmatpush1.msra.mxu0 %v2608
    %2663 = vmatprep.subr.mxu0 0.0
    %2664 = vmatpush2.msra.mxu0 0.0
    %2665 = vmatprep.subr.mxu0 0.0
    %2666 = vmatpush2.msra.mxu0 0.0
    %2667 = vmatprep.subr.mxu0 0.0
    %2668 = vmatpush2.msra.mxu0 0.0
    %2669 = vmatprep.subr.mxu0 0.0
    %2670 = vmatpush2.msra.mxu0 0.0
    %2671 = vmatprep.subr.mxu0 0.0
    %2672 = vmatpush2.msra.mxu0 0.0
    %2673 = vmatprep.subr.mxu0 0.0
    %2674 = vmatpush2.msra.mxu0 0.0
    %2675 = vmatprep.subr.mxu0 0.0
    %2676 = vmatpush2.msra.mxu0 0.0
    %2677 = vmatprep.subr.mxu0 0.0
    %2678 = vmatpush2.msra.mxu0 0.0
    %2679 = vmatprep.subr.mxu0 0.0
    %2680 = vmatpush2.msra.mxu0 0.0
    %2681 = vmatprep.subr.mxu0 0.0
    %2682 = vmatpush2.msra.mxu0 0.0
    %2683 = vmatprep.subr.mxu0 0.0
    %2684 = vmatpush2.msra.mxu0 0.0
    %2685 = vmatprep.subr.mxu0 0.0
    %2686 = vmatpush2.msra.mxu0 0.0
    %2687 = vmatprep.subr.mxu0 0.0
    %2688 = vmatpush2.msra.mxu0 0.0
    %2689 = vmatprep.subr.mxu0 0.0
    %2690 = vmatpush2.msra.mxu0 0.0
    %2691 = vmatprep.subr.mxu0 0.0
    %2692 = vmatpush2.msra.mxu0 0.0
    %2693 = vmatprep.subr.mxu0 0.0
    %2694 = vmatpush2.msra.mxu0 0.0
    %2695 = vmatprep.mubr.f32.mxu0 0.0
    %2696 = vmatmul.mubr.f32.gmra.mxu0 %v2606
    %v2697 = vpop.f32.mrf.mxu0
    %v2698 = vadd.f32 %v2629, %v2697
    %v2699 = vpop.f32.mrf.mxu0
    %2700 = vmatprep.mubr.f32.mxu0 0.0
    %2701 = vmatmul.mubr.f32.gmra.mxu0 %v2607
    %v2702 = vpop.f32.mrf.mxu0
    %v2703 = vadd.f32 %v2629, %v2702
    %v2704 = vpop.f32.mrf.mxu0
    %2705 = vdwg.mxu0
    %vm2706 = vcmask 15360
    %2707 = vst.msk [vmem:[%s7] sm:$0xff] %vm2706, %v2698
    %2708 = vst.msk [vmem:[%s7 + $0x8] sm:$0xff] %vm2706, %v2703
    // Predicated region
    $region34: #{tpu_custom_call.1} parent=1 // pred_check
      _
    $region35: #{tpu_custom_call.1} parent=1 // pred_check_branch
      %2710 = sbr.rel (0) target = $region37
    $region36: #{tpu_custom_call.1} parent=1 // pred_region
      _
    $region37: #{tpu_custom_call.1} parent=1 // pred_fallthru
      _
    // Predicated region
    $region38: #{tpu_custom_call.1} parent=1 // pred_check
      _
    $region39: #{tpu_custom_call.1} parent=1 // pred_check_branch
      %2712 = sbr.rel (0) target = $region41
    $region40: #{tpu_custom_call.1} parent=1 // pred_region
      _
    $region41: #{tpu_custom_call.1} parent=1 // pred_fallthru
      _
    %2713 = vsyncpa [#allocation4], 1

</llo_original>
